<compile_context>
chip_gen: v7x
topology: tpu7x:2x2x1
jax: 0.10.0
libtpu: 0.0.40
codegen_flags: <defaults>
</compile_context>

<pallas_src>
import functools

import jax
import jax.numpy as jnp
from jax import lax
from jax.experimental import pallas as pl
from jax.experimental.pallas import tpu as pltpu

_HIGHEST = lax.Precision.HIGHEST   # only used by the pure-JAX reference


def _branches_kernel(x_ref, wb_ref, wstack_ref, z_ref, stats_ref,
                     zbpad_ref, xpad_ref, slab_ref, *, k_max, pad_max, c_in):
    """All four Inception branches for one tile of batch elements.

    Writes the channel-concatenated activation z (b_tile, 4F, T) plus
    lane-dense per-tile BatchNorm partials (1, 2, 4F):
      row 0 = sum over (batch, time), row 1 = sum of squares.
    """
    b_tile, _, t = x_ref.shape
    c_b = wb_ref.shape[0]
    c_out, r = wstack_ref.shape
    mp_row = k_max * c_b

    xv = x_ref[...].astype(jnp.float32)                        # (B, C_in, T)

    # ---- bottleneck 1x1 conv on the VPU (contraction depth C_in is tiny; an
    # MXU matmul would run almost empty).  f32 accumulate keeps zb accurate. --
    zb = jnp.zeros((b_tile, c_b, t), jnp.float32)
    for c in range(c_in):                                      # static unroll
        w_col = wb_ref[:, c:c + 1].astype(jnp.float32)         # (C_b, 1)
        zb = zb + w_col[None, :, :] * xv[:, c:c + 1, :]        # (B, C_b, T)

    # ---- zero-padded bottleneck activation (bf16).  Only the pad columns and
    # the interior are written; re-writing the tiny pads every step stays
    # correct even when the parallel grid is split across TensorCores (scratch
    # is per-core, so a program_id==0 one-time init would be unsafe). ----
    zpad = jnp.zeros((b_tile, c_b, pad_max), jnp.bfloat16)
    zbpad_ref[:, :, 0:pad_max] = zpad
    zbpad_ref[:, :, pad_max + t:pad_max + t + pad_max] = zpad
    zbpad_ref[:, :, pad_max:pad_max + t] = zb.astype(jnp.bfloat16)

    # ---- maxpool(3, stride 1, pad 1) branch ----
    neg = jnp.full((b_tile, c_in, 1), -jnp.inf, dtype=xpad_ref.dtype)
    xpad_ref[:, :, 0:1] = neg
    xpad_ref[:, :, t + 1:t + 2] = neg
    xpad_ref[:, :, 1:1 + t] = xv
    mp = jnp.maximum(jnp.maximum(xpad_ref[:, :, 0:t], xpad_ref[:, :, 1:1 + t]),
                     xpad_ref[:, :, 2:2 + t])                  # (B, C_in, T)

    # ---- im2col slab: one shifted slab serves all three conv branches (9/19
    # tap windows are subsets of the 39-tap window set); the maxpool 1x1 conv
    # is folded in as C_in extra contraction rows. ----
    for b in range(b_tile):                                    # static unroll
        col = b * t
        for k in range(k_max):
            slab_ref[k * c_b:(k + 1) * c_b, col:col + t] = \
                zbpad_ref[b, :, k:k + t]
        slab_ref[mp_row:mp_row + c_in, col:col + t] = mp[b].astype(slab_ref.dtype)
    if r > mp_row + c_in:            # zero the sublane-alignment pad rows
        slab_ref[mp_row + c_in:r, :] = jnp.zeros(
            (r - mp_row - c_in, slab_ref.shape[1]), slab_ref.dtype)

    # ---- single MXU matmul for all four branches: bf16 x bf16 -> f32. ----
    z_all = jnp.dot(wstack_ref[...], slab_ref[...],
                    preferred_element_type=jnp.float32)        # (4F, B*T)

    # Fused per-tile BN partial statistics (lane-dense: channels on lanes).
    stats_ref[0:1, 0:1, :] = jnp.sum(z_all, axis=1).reshape(1, 1, c_out)
    stats_ref[0:1, 1:2, :] = jnp.sum(z_all * z_all, axis=1).reshape(1, 1, c_out)

    for b in range(b_tile):
        z_ref[b] = z_all[:, b * t:(b + 1) * t].astype(z_ref.dtype)


def _bn_relu_kernel(z_ref, scale_ref, shift_ref, o_ref):
    """Fused per-channel affine BatchNorm + ReLU on a (B2, 4F, T) block."""
    z = z_ref[...].astype(jnp.float32)                         # (B2, 4F, T)
    y = z * scale_ref[...][None] + shift_ref[...][None]        # (1, 4F, 1) bcast
    o_ref[...] = jnp.maximum(y, 0.0).astype(o_ref.dtype)


def inception_module_forward(x, w_bottleneck, w_conv1, w_conv2, w_conv3,
                             w_maxconv, bn_gamma, bn_beta, *, eps=1e-5):
    """InceptionModule forward.  Conv weights use PyTorch layout (O, I, K).

    BatchNorm uses training-mode (biased) batch statistics; dropout p = 0.
    """
    n, c_in, t = x.shape
    n_filters = w_maxconv.shape[0]
    c_out = 4 * n_filters
    ks = (w_conv1.shape[2], w_conv2.shape[2], w_conv3.shape[2])
    assert all(k % 2 == 1 for k in ks), "'same' padding requires odd kernels"
    k_max = max(ks)
    pad_max = k_max // 2

    if w_bottleneck is None:            # in_channels == 1 path: no bottleneck
        wb2 = jnp.eye(c_in, dtype=jnp.float32)
    else:
        wb2 = w_bottleneck[:, :, 0].astype(jnp.float32)
    c_b = wb2.shape[0]

    # ---- stacked im2col weights: (4F, K_max*C_b + pad16(C_in)), bf16 --------
    mp_row = k_max * c_b
    c_in_rows = max(16, -(-c_in // 16) * 16)       # bf16 sublane tile = 16
    r = mp_row + c_in_rows
    w_stack = jnp.zeros((c_out, r), jnp.float32)
    for i, w in enumerate((w_conv1, w_conv2, w_conv3)):
        ki = w.shape[2]
        off = pad_max - ki // 2
        # (F, C_b, K) -> (F, K, C_b) -> (F, K*C_b): tap-major, channel-minor.
        w_perm = jnp.transpose(w.astype(jnp.float32), (0, 2, 1)).reshape(
            n_filters, ki * c_b)
        w_stack = w_stack.at[i * n_filters:(i + 1) * n_filters,
                             off * c_b:(off + ki) * c_b].set(w_perm)
    w_stack = w_stack.at[3 * n_filters:4 * n_filters,
                         mp_row:mp_row + c_in].set(
                             w_maxconv[:, :, 0].astype(jnp.float32))
    w_stack = w_stack.astype(jnp.bfloat16)

    # Batch tiling: keep >=2 grid steps (both v7x TensorCores busy) while
    # giving each matmul b_tile*T (>=256) lanes when the batch allows it.
    b_tile = 1
    for cand in (8, 4, 2):
        if n % cand == 0 and n // cand >= 2:
            b_tile = cand
            break

    branches = functools.partial(_branches_kernel, k_max=k_max,
                                 pad_max=pad_max, c_in=c_in)
    z, stats = pl.pallas_call(
        branches,
        out_shape=(
            jax.ShapeDtypeStruct((n, c_out, t), x.dtype),
            jax.ShapeDtypeStruct((n // b_tile, 2, c_out), jnp.float32),
        ),
        grid_spec=pltpu.PrefetchScalarGridSpec(
            num_scalar_prefetch=0,
            grid=(n // b_tile,),
            in_specs=[
                pl.BlockSpec((b_tile, c_in, t), lambda i: (i, 0, 0)),
                pl.BlockSpec((c_b, c_in), lambda i: (0, 0)),
                pl.BlockSpec((c_out, r), lambda i: (0, 0)),
            ],
            out_specs=[
                pl.BlockSpec((b_tile, c_out, t), lambda i: (i, 0, 0)),
                pl.BlockSpec((1, 2, c_out), lambda i: (i, 0, 0)),
            ],
            scratch_shapes=[
                pltpu.VMEM((b_tile, c_b, t + 2 * pad_max), jnp.bfloat16),
                pltpu.VMEM((b_tile, c_in, t + 2), jnp.float32),
                pltpu.VMEM((r, b_tile * t), jnp.bfloat16),
            ],
        ),
        compiler_params=pltpu.CompilerParams(
            dimension_semantics=("parallel",)),
    )(x, wb2, w_stack)

    # BatchNorm1d statistics (training mode, biased variance) from the fused
    # f32 partials: only an O(2 * 4F * n_tiles) reduction left to XLA glue.
    cnt = jnp.float32(n * t)
    tot = jnp.sum(stats, axis=0)                        # (2, 4F)
    mean = tot[0] / cnt
    var = jnp.maximum(tot[1] / cnt - mean * mean, 0.0)
    inv_std = lax.rsqrt(var + eps)
    gamma = bn_gamma.astype(jnp.float32)
    beta = bn_beta.astype(jnp.float32)
    scale = (gamma * inv_std).reshape(c_out, 1)
    shift = (beta - mean * gamma * inv_std).reshape(c_out, 1)

    # TODO(synk): dropout with p > 0 would need pltpu.prng_*; the module
    # default (p = 0) is an identity, so it is omitted here.

    # BN+ReLU pass: HBM-bound -> use large multi-batch blocks.
    b2 = 1
    for cand in (64, 32, 16, 8, 4, 2, 1):
        if n % cand == 0 and cand * c_out * t * 4 <= (4 << 20):
            b2 = cand
            break

    out = pl.pallas_call(
        _bn_relu_kernel,
        out_shape=jax.ShapeDtypeStruct((n, c_out, t), x.dtype),
        grid_spec=pltpu.PrefetchScalarGridSpec(
            num_scalar_prefetch=0,
            grid=(n // b2,),
            in_specs=[
                pl.BlockSpec((b2, c_out, t), lambda i: (i, 0, 0)),
                pl.BlockSpec((c_out, 1), lambda i: (0, 0)),
                pl.BlockSpec((c_out, 1), lambda i: (0, 0)),
            ],
            out_specs=pl.BlockSpec((b2, c_out, t), lambda i: (i, 0, 0)),
        ),
        compiler_params=pltpu.CompilerParams(
            dimension_semantics=("parallel",)),
        input_output_aliases={0: 0},     # z is dead after this: reuse its HBM
    )(z, scale, shift)
    return out


def _reference_forward(x, w_b, w1, w2, w3, w4, gamma, beta, eps=1e-5):
    """Pure-JAX reference (PyTorch InceptionModule.forward, train-mode BN)."""
    def conv1d(inp, w, pad):
        return lax.conv_general_dilated(
            inp, w, window_strides=(1,), padding=[(pad, pad)],
            dimension_numbers=("NCH", "OIH", "NCH"), precision=_HIGHEST)

    zb = x if w_b is None else conv1d(x, w_b, 0)
    z1 = conv1d(zb, w1, w1.shape[2] // 2)
    z2 = conv1d(zb, w2, w2.shape[2] // 2)
    z3 = conv1d(zb, w3, w3.shape[2] // 2)

    t = x.shape[2]
    xpad = jnp.pad(x, ((0, 0), (0, 0), (1, 1)), constant_values=-jnp.inf)
    mp = jnp.maximum(jnp.maximum(xpad[:, :, 0:t], xpad[:, :, 1:t + 1]),
                     xpad[:, :, 2:t + 2])
    z4 = conv1d(mp, w4, 0)

    z = jnp.concatenate([z1, z2, z3, z4], axis=1)
    mean = jnp.mean(z, axis=(0, 2), keepdims=True)
    var = jnp.var(z, axis=(0, 2), keepdims=True)        # biased (train mode)
    y = ((z - mean) * lax.rsqrt(var + eps)
         * gamma[None, :, None] + beta[None, :, None])
    return jnp.maximum(y, 0.0)


if __name__ == "__main__":
    key = jax.random.PRNGKey(0)
    N, C_IN, T = 4, 4, 128
    N_FILTERS, BOTTLENECK = 32, 32
    KS = (9, 19, 39)

    keys = jax.random.split(key, 8)
    x = jax.random.normal(keys[0], (N, C_IN, T), dtype=jnp.float32)

    def conv_w(k, shape):
        fan_in = shape[1] * shape[2]
        return jax.random.normal(k, shape, dtype=jnp.float32) / jnp.sqrt(fan_in)

    w_b = conv_w(keys[1], (BOTTLENECK, C_IN, 1))
    w1 = conv_w(keys[2], (N_FILTERS, BOTTLENECK, KS[0]))
    w2 = conv_w(keys[3], (N_FILTERS, BOTTLENECK, KS[1]))
    w3 = conv_w(keys[4], (N_FILTERS, BOTTLENECK, KS[2]))
    w4 = conv_w(keys[5], (N_FILTERS, C_IN, 1))
    gamma = 1.0 + 0.1 * jax.random.normal(keys[6], (4 * N_FILTERS,), jnp.float32)
    beta = 0.1 * jax.random.normal(keys[7], (4 * N_FILTERS,), jnp.float32)

    fwd = jax.jit(inception_module_forward)
    y = jax.block_until_ready(fwd(x, w_b, w1, w2, w3, w4, gamma, beta))

    y_ref = jax.block_until_ready(
        _reference_forward(x, w_b, w1, w2, w3, w4, gamma, beta))

    assert y.shape == (N, 4 * N_FILTERS, T)
    assert y.dtype == x.dtype
    max_err = float(jnp.max(jnp.abs(y - y_ref)))
    # bf16 MXU (default precision) vs the f32 HIGHEST reference.
    assert max_err < 3e-2, f"max abs error {max_err}"
    print("KERNEL_OK")
</pallas_src>

<mosaic_0001>
module attributes {stable_mosaic.version = 11 : i64} {
  func.func @_branches_kernel(%arg0: i32, %arg1: memref<2x4x128xf32, #tpu.memory_space<vmem>>, %arg2: memref<32x4xf32, #tpu.memory_space<vmem>>, %arg3: memref<128x1264xbf16, #tpu.memory_space<vmem>>, %arg4: memref<2x128x128xf32, #tpu.memory_space<vmem>>, %arg5: memref<1x2x128xf32, #tpu.memory_space<vmem>>, %arg6: memref<2x32x166xbf16, #tpu.memory_space<vmem>>, %arg7: memref<2x4x130xf32, #tpu.memory_space<vmem>>, %arg8: memref<1264x256xbf16, #tpu.memory_space<vmem>>) attributes {dimension_semantics = [#tpu.dimension_semantics<parallel>], iteration_bounds = array<i64: 2>, scalar_prefetch = 0 : i64, scratch_operands = 3 : i64, tpu.core_type = #tpu.core_type<tc>, window_params = [{transform_indices = @transform_0, window_bounds = array<i64: 2, 4, 128>}, {pipeline_mode = #tpu.pipeline_mode<synchronous>, transform_indices = @transform_1, window_bounds = array<i64: 32, 4>}, {pipeline_mode = #tpu.pipeline_mode<synchronous>, transform_indices = @transform_2, window_bounds = array<i64: 128, 1264>}, {transform_indices = @transform_3, window_bounds = array<i64: 2, 128, 128>}, {transform_indices = @transform_4, window_bounds = array<i64: 1, 2, 128>}]} {
    %c0 = arith.constant 0 : index
    %c0_0 = arith.constant 0 : index
    %c0_1 = arith.constant 0 : index
    %0 = vector.load %arg1[%c0, %c0_0, %c0_1] : memref<2x4x128xf32, #tpu.memory_space<vmem>>, vector<2x4x128xf32>
    %cst = arith.constant 0.000000e+00 : f32
    %1 = vector.broadcast %cst : f32 to vector<2x32x128xf32>
    %c0_2 = arith.constant 0 : index
    %c0_3 = arith.constant 0 : index
    %2 = vector.load %arg2[%c0_2, %c0_3] : memref<32x4xf32, #tpu.memory_space<vmem>>, vector<32x1xf32>
    %3 = vector.shape_cast %2 : vector<32x1xf32> to vector<1x32x1xf32>
    %4 = vector.extract_strided_slice %0 {offsets = [0, 0, 0], sizes = [2, 1, 128], strides = [1, 1, 1]} : vector<2x4x128xf32> to vector<2x1x128xf32>
    %5 = vector.broadcast %3 : vector<1x32x1xf32> to vector<2x32x128xf32>
    %6 = vector.broadcast %4 : vector<2x1x128xf32> to vector<2x32x128xf32>
    %7 = arith.mulf %5, %6 : vector<2x32x128xf32>
    %8 = arith.addf %1, %7 : vector<2x32x128xf32>
    %c0_4 = arith.constant 0 : index
    %c1 = arith.constant 1 : index
    %9 = vector.load %arg2[%c0_4, %c1] : memref<32x4xf32, #tpu.memory_space<vmem>>, vector<32x1xf32>
    %10 = vector.shape_cast %9 : vector<32x1xf32> to vector<1x32x1xf32>
    %11 = vector.extract_strided_slice %0 {offsets = [0, 1, 0], sizes = [2, 1, 128], strides = [1, 1, 1]} : vector<2x4x128xf32> to vector<2x1x128xf32>
    %12 = vector.broadcast %10 : vector<1x32x1xf32> to vector<2x32x128xf32>
    %13 = vector.broadcast %11 : vector<2x1x128xf32> to vector<2x32x128xf32>
    %14 = arith.mulf %12, %13 : vector<2x32x128xf32>
    %15 = arith.addf %8, %14 : vector<2x32x128xf32>
    %c0_5 = arith.constant 0 : index
    %c2 = arith.constant 2 : index
    %16 = vector.load %arg2[%c0_5, %c2] : memref<32x4xf32, #tpu.memory_space<vmem>>, vector<32x1xf32>
    %17 = vector.shape_cast %16 : vector<32x1xf32> to vector<1x32x1xf32>
    %18 = vector.extract_strided_slice %0 {offsets = [0, 2, 0], sizes = [2, 1, 128], strides = [1, 1, 1]} : vector<2x4x128xf32> to vector<2x1x128xf32>
    %19 = vector.broadcast %17 : vector<1x32x1xf32> to vector<2x32x128xf32>
    %20 = vector.broadcast %18 : vector<2x1x128xf32> to vector<2x32x128xf32>
    %21 = arith.mulf %19, %20 : vector<2x32x128xf32>
    %22 = arith.addf %15, %21 : vector<2x32x128xf32>
    %c0_6 = arith.constant 0 : index
    %c3 = arith.constant 3 : index
    %23 = vector.load %arg2[%c0_6, %c3] : memref<32x4xf32, #tpu.memory_space<vmem>>, vector<32x1xf32>
    %24 = vector.shape_cast %23 : vector<32x1xf32> to vector<1x32x1xf32>
    %25 = vector.extract_strided_slice %0 {offsets = [0, 3, 0], sizes = [2, 1, 128], strides = [1, 1, 1]} : vector<2x4x128xf32> to vector<2x1x128xf32>
    %26 = vector.broadcast %24 : vector<1x32x1xf32> to vector<2x32x128xf32>
    %27 = vector.broadcast %25 : vector<2x1x128xf32> to vector<2x32x128xf32>
    %28 = arith.mulf %26, %27 : vector<2x32x128xf32>
    %29 = arith.addf %22, %28 : vector<2x32x128xf32>
    %cst_7 = arith.constant 0.000000e+00 : bf16
    %30 = vector.broadcast %cst_7 : bf16 to vector<2x32x19xbf16>
    %c0_8 = arith.constant 0 : index
    %c0_9 = arith.constant 0 : index
    %c0_10 = arith.constant 0 : index
    %31 = vector.load %arg6[%c0_8, %c0_9, %c0_10] : memref<2x32x166xbf16, #tpu.memory_space<vmem>>, vector<2x32x19xbf16>
    tpu.vector_store %arg6[%c0_8, %c0_9, %c0_10], %30 {strides = array<i32>} : memref<2x32x166xbf16, #tpu.memory_space<vmem>>, vector<2x32x19xbf16>,
    %c0_11 = arith.constant 0 : index
    %c0_12 = arith.constant 0 : index
    %c147 = arith.constant 147 : index
    %32 = vector.load %arg6[%c0_11, %c0_12, %c147] : memref<2x32x166xbf16, #tpu.memory_space<vmem>>, vector<2x32x19xbf16>
    tpu.vector_store %arg6[%c0_11, %c0_12, %c147], %30 {strides = array<i32>} : memref<2x32x166xbf16, #tpu.memory_space<vmem>>, vector<2x32x19xbf16>,
    %33 = arith.truncf %29 : vector<2x32x128xf32> to vector<2x32x128xbf16>
    %c0_13 = arith.constant 0 : index
    %c0_14 = arith.constant 0 : index
    %c19 = arith.constant 19 : index
    %34 = vector.load %arg6[%c0_13, %c0_14, %c19] : memref<2x32x166xbf16, #tpu.memory_space<vmem>>, vector<2x32x128xbf16>
    tpu.vector_store %arg6[%c0_13, %c0_14, %c19], %33 {strides = array<i32>} : memref<2x32x166xbf16, #tpu.memory_space<vmem>>, vector<2x32x128xbf16>,
    %cst_15 = arith.constant 0xFF800000 : f32
    %35 = vector.broadcast %cst_15 : f32 to vector<2x4x1xf32>
    %c0_16 = arith.constant 0 : index
    %c0_17 = arith.constant 0 : index
    %c0_18 = arith.constant 0 : index
    %36 = vector.load %arg7[%c0_16, %c0_17, %c0_18] : memref<2x4x130xf32, #tpu.memory_space<vmem>>, vector<2x4x1xf32>
    tpu.vector_store %arg7[%c0_16, %c0_17, %c0_18], %35 {strides = array<i32>} : memref<2x4x130xf32, #tpu.memory_space<vmem>>, vector<2x4x1xf32>,
    %c0_19 = arith.constant 0 : index
    %c0_20 = arith.constant 0 : index
    %c129 = arith.constant 129 : index
    %37 = vector.load %arg7[%c0_19, %c0_20, %c129] : memref<2x4x130xf32, #tpu.memory_space<vmem>>, vector<2x4x1xf32>
    tpu.vector_store %arg7[%c0_19, %c0_20, %c129], %35 {strides = array<i32>} : memref<2x4x130xf32, #tpu.memory_space<vmem>>, vector<2x4x1xf32>,
    %c0_21 = arith.constant 0 : index
    %c0_22 = arith.constant 0 : index
    %c1_23 = arith.constant 1 : index
    %38 = vector.load %arg7[%c0_21, %c0_22, %c1_23] : memref<2x4x130xf32, #tpu.memory_space<vmem>>, vector<2x4x128xf32>
    tpu.vector_store %arg7[%c0_21, %c0_22, %c1_23], %0 {strides = array<i32>} : memref<2x4x130xf32, #tpu.memory_space<vmem>>, vector<2x4x128xf32>,
    %c0_24 = arith.constant 0 : index
    %c0_25 = arith.constant 0 : index
    %c0_26 = arith.constant 0 : index
    %39 = vector.load %arg7[%c0_24, %c0_25, %c0_26] : memref<2x4x130xf32, #tpu.memory_space<vmem>>, vector<2x4x128xf32>
    %c0_27 = arith.constant 0 : index
    %c0_28 = arith.constant 0 : index
    %c1_29 = arith.constant 1 : index
    %40 = vector.load %arg7[%c0_27, %c0_28, %c1_29] : memref<2x4x130xf32, #tpu.memory_space<vmem>>, vector<2x4x128xf32>
    %41 = arith.maximumf %39, %40 : vector<2x4x128xf32>
    %c0_30 = arith.constant 0 : index
    %c0_31 = arith.constant 0 : index
    %c2_32 = arith.constant 2 : index
    %42 = vector.load %arg7[%c0_30, %c0_31, %c2_32] : memref<2x4x130xf32, #tpu.memory_space<vmem>>, vector<2x4x128xf32>
    %43 = arith.maximumf %41, %42 : vector<2x4x128xf32>
    %c0_33 = arith.constant 0 : index
    %c0_34 = arith.constant 0 : index
    %c0_35 = arith.constant 0 : index
    %44 = vector.load %arg6[%c0_33, %c0_34, %c0_35] : memref<2x32x166xbf16, #tpu.memory_space<vmem>>, vector<1x32x128xbf16>
    %45 = vector.shape_cast %44 : vector<1x32x128xbf16> to vector<32x128xbf16>
    %c0_36 = arith.constant 0 : index
    %c0_37 = arith.constant 0 : index
    %46 = vector.load %arg8[%c0_36, %c0_37] : memref<1264x256xbf16, #tpu.memory_space<vmem>>, vector<32x128xbf16>
    tpu.vector_store %arg8[%c0_36, %c0_37], %45 {strides = array<i32>} : memref<1264x256xbf16, #tpu.memory_space<vmem>>, vector<32x128xbf16>,
    %c0_38 = arith.constant 0 : index
    %c0_39 = arith.constant 0 : index
    %c1_40 = arith.constant 1 : index
    %47 = vector.load %arg6[%c0_38, %c0_39, %c1_40] : memref<2x32x166xbf16, #tpu.memory_space<vmem>>, vector<1x32x128xbf16>
    %48 = vector.shape_cast %47 : vector<1x32x128xbf16> to vector<32x128xbf16>
    %c32 = arith.constant 32 : index
    %c0_41 = arith.constant 0 : index
    %49 = vector.load %arg8[%c32, %c0_41] : memref<1264x256xbf16, #tpu.memory_space<vmem>>, vector<32x128xbf16>
    tpu.vector_store %arg8[%c32, %c0_41], %48 {strides = array<i32>} : memref<1264x256xbf16, #tpu.memory_space<vmem>>, vector<32x128xbf16>,
    %c0_42 = arith.constant 0 : index
    %c0_43 = arith.constant 0 : index
    %c2_44 = arith.constant 2 : index
    %50 = vector.load %arg6[%c0_42, %c0_43, %c2_44] : memref<2x32x166xbf16, #tpu.memory_space<vmem>>, vector<1x32x128xbf16>
    %51 = vector.shape_cast %50 : vector<1x32x128xbf16> to vector<32x128xbf16>
    %c64 = arith.constant 64 : index
    %c0_45 = arith.constant 0 : index
    %52 = vector.load %arg8[%c64, %c0_45] : memref<1264x256xbf16, #tpu.memory_space<vmem>>, vector<32x128xbf16>
    tpu.vector_store %arg8[%c64, %c0_45], %51 {strides = array<i32>} : memref<1264x256xbf16, #tpu.memory_space<vmem>>, vector<32x128xbf16>,
    %c0_46 = arith.constant 0 : index
    %c0_47 = arith.constant 0 : index
    %c3_48 = arith.constant 3 : index
    %53 = vector.load %arg6[%c0_46, %c0_47, %c3_48] : memref<2x32x166xbf16, #tpu.memory_space<vmem>>, vector<1x32x128xbf16>
    %54 = vector.shape_cast %53 : vector<1x32x128xbf16> to vector<32x128xbf16>
    %c96 = arith.constant 96 : index
    %c0_49 = arith.constant 0 : index
    %55 = vector.load %arg8[%c96, %c0_49] : memref<1264x256xbf16, #tpu.memory_space<vmem>>, vector<32x128xbf16>
    tpu.vector_store %arg8[%c96, %c0_49], %54 {strides = array<i32>} : memref<1264x256xbf16, #tpu.memory_space<vmem>>, vector<32x128xbf16>,
    %c0_50 = arith.constant 0 : index
    %c0_51 = arith.constant 0 : index
    %c4 = arith.constant 4 : index
    %56 = vector.load %arg6[%c0_50, %c0_51, %c4] : memref<2x32x166xbf16, #tpu.memory_space<vmem>>, vector<1x32x128xbf16>
    %57 = vector.shape_cast %56 : vector<1x32x128xbf16> to vector<32x128xbf16>
    %c128 = arith.constant 128 : index
    %c0_52 = arith.constant 0 : index
    %58 = vector.load %arg8[%c128, %c0_52] : memref<1264x256xbf16, #tpu.memory_space<vmem>>, vector<32x128xbf16>
    tpu.vector_store %arg8[%c128, %c0_52], %57 {strides = array<i32>} : memref<1264x256xbf16, #tpu.memory_space<vmem>>, vector<32x128xbf16>,
    %c0_53 = arith.constant 0 : index
    %c0_54 = arith.constant 0 : index
    %c5 = arith.constant 5 : index
    %59 = vector.load %arg6[%c0_53, %c0_54, %c5] : memref<2x32x166xbf16, #tpu.memory_space<vmem>>, vector<1x32x128xbf16>
    %60 = vector.shape_cast %59 : vector<1x32x128xbf16> to vector<32x128xbf16>
    %c160 = arith.constant 160 : index
    %c0_55 = arith.constant 0 : index
    %61 = vector.load %arg8[%c160, %c0_55] : memref<1264x256xbf16, #tpu.memory_space<vmem>>, vector<32x128xbf16>
    tpu.vector_store %arg8[%c160, %c0_55], %60 {strides = array<i32>} : memref<1264x256xbf16, #tpu.memory_space<vmem>>, vector<32x128xbf16>,
    %c0_56 = arith.constant 0 : index
    %c0_57 = arith.constant 0 : index
    %c6 = arith.constant 6 : index
    %62 = vector.load %arg6[%c0_56, %c0_57, %c6] : memref<2x32x166xbf16, #tpu.memory_space<vmem>>, vector<1x32x128xbf16>
    %63 = vector.shape_cast %62 : vector<1x32x128xbf16> to vector<32x128xbf16>
    %c192 = arith.constant 192 : index
    %c0_58 = arith.constant 0 : index
    %64 = vector.load %arg8[%c192, %c0_58] : memref<1264x256xbf16, #tpu.memory_space<vmem>>, vector<32x128xbf16>
    tpu.vector_store %arg8[%c192, %c0_58], %63 {strides = array<i32>} : memref<1264x256xbf16, #tpu.memory_space<vmem>>, vector<32x128xbf16>,
    %c0_59 = arith.constant 0 : index
    %c0_60 = arith.constant 0 : index
    %c7 = arith.constant 7 : index
    %65 = vector.load %arg6[%c0_59, %c0_60, %c7] : memref<2x32x166xbf16, #tpu.memory_space<vmem>>, vector<1x32x128xbf16>
    %66 = vector.shape_cast %65 : vector<1x32x128xbf16> to vector<32x128xbf16>
    %c224 = arith.constant 224 : index
    %c0_61 = arith.constant 0 : index
    %67 = vector.load %arg8[%c224, %c0_61] : memref<1264x256xbf16, #tpu.memory_space<vmem>>, vector<32x128xbf16>
    tpu.vector_store %arg8[%c224, %c0_61], %66 {strides = array<i32>} : memref<1264x256xbf16, #tpu.memory_space<vmem>>, vector<32x128xbf16>,
    %c0_62 = arith.constant 0 : index
    %c0_63 = arith.constant 0 : index
    %c8 = arith.constant 8 : index
    %68 = vector.load %arg6[%c0_62, %c0_63, %c8] : memref<2x32x166xbf16, #tpu.memory_space<vmem>>, vector<1x32x128xbf16>
    %69 = vector.shape_cast %68 : vector<1x32x128xbf16> to vector<32x128xbf16>
    %c256 = arith.constant 256 : index
    %c0_64 = arith.constant 0 : index
    %70 = vector.load %arg8[%c256, %c0_64] : memref<1264x256xbf16, #tpu.memory_space<vmem>>, vector<32x128xbf16>
    tpu.vector_store %arg8[%c256, %c0_64], %69 {strides = array<i32>} : memref<1264x256xbf16, #tpu.memory_space<vmem>>, vector<32x128xbf16>,
    %c0_65 = arith.constant 0 : index
    %c0_66 = arith.constant 0 : index
    %c9 = arith.constant 9 : index
    %71 = vector.load %arg6[%c0_65, %c0_66, %c9] : memref<2x32x166xbf16, #tpu.memory_space<vmem>>, vector<1x32x128xbf16>
    %72 = vector.shape_cast %71 : vector<1x32x128xbf16> to vector<32x128xbf16>
    %c288 = arith.constant 288 : index
    %c0_67 = arith.constant 0 : index
    %73 = vector.load %arg8[%c288, %c0_67] : memref<1264x256xbf16, #tpu.memory_space<vmem>>, vector<32x128xbf16>
    tpu.vector_store %arg8[%c288, %c0_67], %72 {strides = array<i32>} : memref<1264x256xbf16, #tpu.memory_space<vmem>>, vector<32x128xbf16>,
    %c0_68 = arith.constant 0 : index
    %c0_69 = arith.constant 0 : index
    %c10 = arith.constant 10 : index
    %74 = vector.load %arg6[%c0_68, %c0_69, %c10] : memref<2x32x166xbf16, #tpu.memory_space<vmem>>, vector<1x32x128xbf16>
    %75 = vector.shape_cast %74 : vector<1x32x128xbf16> to vector<32x128xbf16>
    %c320 = arith.constant 320 : index
    %c0_70 = arith.constant 0 : index
    %76 = vector.load %arg8[%c320, %c0_70] : memref<1264x256xbf16, #tpu.memory_space<vmem>>, vector<32x128xbf16>
    tpu.vector_store %arg8[%c320, %c0_70], %75 {strides = array<i32>} : memref<1264x256xbf16, #tpu.memory_space<vmem>>, vector<32x128xbf16>,
    %c0_71 = arith.constant 0 : index
    %c0_72 = arith.constant 0 : index
    %c11 = arith.constant 11 : index
    %77 = vector.load %arg6[%c0_71, %c0_72, %c11] : memref<2x32x166xbf16, #tpu.memory_space<vmem>>, vector<1x32x128xbf16>
    %78 = vector.shape_cast %77 : vector<1x32x128xbf16> to vector<32x128xbf16>
    %c352 = arith.constant 352 : index
    %c0_73 = arith.constant 0 : index
    %79 = vector.load %arg8[%c352, %c0_73] : memref<1264x256xbf16, #tpu.memory_space<vmem>>, vector<32x128xbf16>
    tpu.vector_store %arg8[%c352, %c0_73], %78 {strides = array<i32>} : memref<1264x256xbf16, #tpu.memory_space<vmem>>, vector<32x128xbf16>,
    %c0_74 = arith.constant 0 : index
    %c0_75 = arith.constant 0 : index
    %c12 = arith.constant 12 : index
    %80 = vector.load %arg6[%c0_74, %c0_75, %c12] : memref<2x32x166xbf16, #tpu.memory_space<vmem>>, vector<1x32x128xbf16>
    %81 = vector.shape_cast %80 : vector<1x32x128xbf16> to vector<32x128xbf16>
    %c384 = arith.constant 384 : index
    %c0_76 = arith.constant 0 : index
    %82 = vector.load %arg8[%c384, %c0_76] : memref<1264x256xbf16, #tpu.memory_space<vmem>>, vector<32x128xbf16>
    tpu.vector_store %arg8[%c384, %c0_76], %81 {strides = array<i32>} : memref<1264x256xbf16, #tpu.memory_space<vmem>>, vector<32x128xbf16>,
    %c0_77 = arith.constant 0 : index
    %c0_78 = arith.constant 0 : index
    %c13 = arith.constant 13 : index
    %83 = vector.load %arg6[%c0_77, %c0_78, %c13] : memref<2x32x166xbf16, #tpu.memory_space<vmem>>, vector<1x32x128xbf16>
    %84 = vector.shape_cast %83 : vector<1x32x128xbf16> to vector<32x128xbf16>
    %c416 = arith.constant 416 : index
    %c0_79 = arith.constant 0 : index
    %85 = vector.load %arg8[%c416, %c0_79] : memref<1264x256xbf16, #tpu.memory_space<vmem>>, vector<32x128xbf16>
    tpu.vector_store %arg8[%c416, %c0_79], %84 {strides = array<i32>} : memref<1264x256xbf16, #tpu.memory_space<vmem>>, vector<32x128xbf16>,
    %c0_80 = arith.constant 0 : index
    %c0_81 = arith.constant 0 : index
    %c14 = arith.constant 14 : index
    %86 = vector.load %arg6[%c0_80, %c0_81, %c14] : memref<2x32x166xbf16, #tpu.memory_space<vmem>>, vector<1x32x128xbf16>
    %87 = vector.shape_cast %86 : vector<1x32x128xbf16> to vector<32x128xbf16>
    %c448 = arith.constant 448 : index
    %c0_82 = arith.constant 0 : index
    %88 = vector.load %arg8[%c448, %c0_82] : memref<1264x256xbf16, #tpu.memory_space<vmem>>, vector<32x128xbf16>
    tpu.vector_store %arg8[%c448, %c0_82], %87 {strides = array<i32>} : memref<1264x256xbf16, #tpu.memory_space<vmem>>, vector<32x128xbf16>,
    %c0_83 = arith.constant 0 : index
    %c0_84 = arith.constant 0 : index
    %c15 = arith.constant 15 : index
    %89 = vector.load %arg6[%c0_83, %c0_84, %c15] : memref<2x32x166xbf16, #tpu.memory_space<vmem>>, vector<1x32x128xbf16>
    %90 = vector.shape_cast %89 : vector<1x32x128xbf16> to vector<32x128xbf16>
    %c480 = arith.constant 480 : index
    %c0_85 = arith.constant 0 : index
    %91 = vector.load %arg8[%c480, %c0_85] : memref<1264x256xbf16, #tpu.memory_space<vmem>>, vector<32x128xbf16>
    tpu.vector_store %arg8[%c480, %c0_85], %90 {strides = array<i32>} : memref<1264x256xbf16, #tpu.memory_space<vmem>>, vector<32x128xbf16>,
    %c0_86 = arith.constant 0 : index
    %c0_87 = arith.constant 0 : index
    %c16 = arith.constant 16 : index
    %92 = vector.load %arg6[%c0_86, %c0_87, %c16] : memref<2x32x166xbf16, #tpu.memory_space<vmem>>, vector<1x32x128xbf16>
    %93 = vector.shape_cast %92 : vector<1x32x128xbf16> to vector<32x128xbf16>
    %c512 = arith.constant 512 : index
    %c0_88 = arith.constant 0 : index
    %94 = vector.load %arg8[%c512, %c0_88] : memref<1264x256xbf16, #tpu.memory_space<vmem>>, vector<32x128xbf16>
    tpu.vector_store %arg8[%c512, %c0_88], %93 {strides = array<i32>} : memref<1264x256xbf16, #tpu.memory_space<vmem>>, vector<32x128xbf16>,
    %c0_89 = arith.constant 0 : index
    %c0_90 = arith.constant 0 : index
    %c17 = arith.constant 17 : index
    %95 = vector.load %arg6[%c0_89, %c0_90, %c17] : memref<2x32x166xbf16, #tpu.memory_space<vmem>>, vector<1x32x128xbf16>
    %96 = vector.shape_cast %95 : vector<1x32x128xbf16> to vector<32x128xbf16>
    %c544 = arith.constant 544 : index
    %c0_91 = arith.constant 0 : index
    %97 = vector.load %arg8[%c544, %c0_91] : memref<1264x256xbf16, #tpu.memory_space<vmem>>, vector<32x128xbf16>
    tpu.vector_store %arg8[%c544, %c0_91], %96 {strides = array<i32>} : memref<1264x256xbf16, #tpu.memory_space<vmem>>, vector<32x128xbf16>,
    %c0_92 = arith.constant 0 : index
    %c0_93 = arith.constant 0 : index
    %c18 = arith.constant 18 : index
    %98 = vector.load %arg6[%c0_92, %c0_93, %c18] : memref<2x32x166xbf16, #tpu.memory_space<vmem>>, vector<1x32x128xbf16>
    %99 = vector.shape_cast %98 : vector<1x32x128xbf16> to vector<32x128xbf16>
    %c576 = arith.constant 576 : index
    %c0_94 = arith.constant 0 : index
    %100 = vector.load %arg8[%c576, %c0_94] : memref<1264x256xbf16, #tpu.memory_space<vmem>>, vector<32x128xbf16>
    tpu.vector_store %arg8[%c576, %c0_94], %99 {strides = array<i32>} : memref<1264x256xbf16, #tpu.memory_space<vmem>>, vector<32x128xbf16>,
    %c0_95 = arith.constant 0 : index
    %c0_96 = arith.constant 0 : index
    %c19_97 = arith.constant 19 : index
    %101 = vector.load %arg6[%c0_95, %c0_96, %c19_97] : memref<2x32x166xbf16, #tpu.memory_space<vmem>>, vector<1x32x128xbf16>
    %102 = vector.shape_cast %101 : vector<1x32x128xbf16> to vector<32x128xbf16>
    %c608 = arith.constant 608 : index
    %c0_98 = arith.constant 0 : index
    %103 = vector.load %arg8[%c608, %c0_98] : memref<1264x256xbf16, #tpu.memory_space<vmem>>, vector<32x128xbf16>
    tpu.vector_store %arg8[%c608, %c0_98], %102 {strides = array<i32>} : memref<1264x256xbf16, #tpu.memory_space<vmem>>, vector<32x128xbf16>,
    %c0_99 = arith.constant 0 : index
    %c0_100 = arith.constant 0 : index
    %c20 = arith.constant 20 : index
    %104 = vector.load %arg6[%c0_99, %c0_100, %c20] : memref<2x32x166xbf16, #tpu.memory_space<vmem>>, vector<1x32x128xbf16>
    %105 = vector.shape_cast %104 : vector<1x32x128xbf16> to vector<32x128xbf16>
    %c640 = arith.constant 640 : index
    %c0_101 = arith.constant 0 : index
    %106 = vector.load %arg8[%c640, %c0_101] : memref<1264x256xbf16, #tpu.memory_space<vmem>>, vector<32x128xbf16>
    tpu.vector_store %arg8[%c640, %c0_101], %105 {strides = array<i32>} : memref<1264x256xbf16, #tpu.memory_space<vmem>>, vector<32x128xbf16>,
    %c0_102 = arith.constant 0 : index
    %c0_103 = arith.constant 0 : index
    %c21 = arith.constant 21 : index
    %107 = vector.load %arg6[%c0_102, %c0_103, %c21] : memref<2x32x166xbf16, #tpu.memory_space<vmem>>, vector<1x32x128xbf16>
    %108 = vector.shape_cast %107 : vector<1x32x128xbf16> to vector<32x128xbf16>
    %c672 = arith.constant 672 : index
    %c0_104 = arith.constant 0 : index
    %109 = vector.load %arg8[%c672, %c0_104] : memref<1264x256xbf16, #tpu.memory_space<vmem>>, vector<32x128xbf16>
    tpu.vector_store %arg8[%c672, %c0_104], %108 {strides = array<i32>} : memref<1264x256xbf16, #tpu.memory_space<vmem>>, vector<32x128xbf16>,
    %c0_105 = arith.constant 0 : index
    %c0_106 = arith.constant 0 : index
    %c22 = arith.constant 22 : index
    %110 = vector.load %arg6[%c0_105, %c0_106, %c22] : memref<2x32x166xbf16, #tpu.memory_space<vmem>>, vector<1x32x128xbf16>
    %111 = vector.shape_cast %110 : vector<1x32x128xbf16> to vector<32x128xbf16>
    %c704 = arith.constant 704 : index
    %c0_107 = arith.constant 0 : index
    %112 = vector.load %arg8[%c704, %c0_107] : memref<1264x256xbf16, #tpu.memory_space<vmem>>, vector<32x128xbf16>
    tpu.vector_store %arg8[%c704, %c0_107], %111 {strides = array<i32>} : memref<1264x256xbf16, #tpu.memory_space<vmem>>, vector<32x128xbf16>,
    %c0_108 = arith.constant 0 : index
    %c0_109 = arith.constant 0 : index
    %c23 = arith.constant 23 : index
    %113 = vector.load %arg6[%c0_108, %c0_109, %c23] : memref<2x32x166xbf16, #tpu.memory_space<vmem>>, vector<1x32x128xbf16>
    %114 = vector.shape_cast %113 : vector<1x32x128xbf16> to vector<32x128xbf16>
    %c736 = arith.constant 736 : index
    %c0_110 = arith.constant 0 : index
    %115 = vector.load %arg8[%c736, %c0_110] : memref<1264x256xbf16, #tpu.memory_space<vmem>>, vector<32x128xbf16>
    tpu.vector_store %arg8[%c736, %c0_110], %114 {strides = array<i32>} : memref<1264x256xbf16, #tpu.memory_space<vmem>>, vector<32x128xbf16>,
    %c0_111 = arith.constant 0 : index
    %c0_112 = arith.constant 0 : index
    %c24 = arith.constant 24 : index
    %116 = vector.load %arg6[%c0_111, %c0_112, %c24] : memref<2x32x166xbf16, #tpu.memory_space<vmem>>, vector<1x32x128xbf16>
    %117 = vector.shape_cast %116 : vector<1x32x128xbf16> to vector<32x128xbf16>
    %c768 = arith.constant 768 : index
    %c0_113 = arith.constant 0 : index
    %118 = vector.load %arg8[%c768, %c0_113] : memref<1264x256xbf16, #tpu.memory_space<vmem>>, vector<32x128xbf16>
    tpu.vector_store %arg8[%c768, %c0_113], %117 {strides = array<i32>} : memref<1264x256xbf16, #tpu.memory_space<vmem>>, vector<32x128xbf16>,
    %c0_114 = arith.constant 0 : index
    %c0_115 = arith.constant 0 : index
    %c25 = arith.constant 25 : index
    %119 = vector.load %arg6[%c0_114, %c0_115, %c25] : memref<2x32x166xbf16, #tpu.memory_space<vmem>>, vector<1x32x128xbf16>
    %120 = vector.shape_cast %119 : vector<1x32x128xbf16> to vector<32x128xbf16>
    %c800 = arith.constant 800 : index
    %c0_116 = arith.constant 0 : index
    %121 = vector.load %arg8[%c800, %c0_116] : memref<1264x256xbf16, #tpu.memory_space<vmem>>, vector<32x128xbf16>
    tpu.vector_store %arg8[%c800, %c0_116], %120 {strides = array<i32>} : memref<1264x256xbf16, #tpu.memory_space<vmem>>, vector<32x128xbf16>,
    %c0_117 = arith.constant 0 : index
    %c0_118 = arith.constant 0 : index
    %c26 = arith.constant 26 : index
    %122 = vector.load %arg6[%c0_117, %c0_118, %c26] : memref<2x32x166xbf16, #tpu.memory_space<vmem>>, vector<1x32x128xbf16>
    %123 = vector.shape_cast %122 : vector<1x32x128xbf16> to vector<32x128xbf16>
    %c832 = arith.constant 832 : index
    %c0_119 = arith.constant 0 : index
    %124 = vector.load %arg8[%c832, %c0_119] : memref<1264x256xbf16, #tpu.memory_space<vmem>>, vector<32x128xbf16>
    tpu.vector_store %arg8[%c832, %c0_119], %123 {strides = array<i32>} : memref<1264x256xbf16, #tpu.memory_space<vmem>>, vector<32x128xbf16>,
    %c0_120 = arith.constant 0 : index
    %c0_121 = arith.constant 0 : index
    %c27 = arith.constant 27 : index
    %125 = vector.load %arg6[%c0_120, %c0_121, %c27] : memref<2x32x166xbf16, #tpu.memory_space<vmem>>, vector<1x32x128xbf16>
    %126 = vector.shape_cast %125 : vector<1x32x128xbf16> to vector<32x128xbf16>
    %c864 = arith.constant 864 : index
    %c0_122 = arith.constant 0 : index
    %127 = vector.load %arg8[%c864, %c0_122] : memref<1264x256xbf16, #tpu.memory_space<vmem>>, vector<32x128xbf16>
    tpu.vector_store %arg8[%c864, %c0_122], %126 {strides = array<i32>} : memref<1264x256xbf16, #tpu.memory_space<vmem>>, vector<32x128xbf16>,
    %c0_123 = arith.constant 0 : index
    %c0_124 = arith.constant 0 : index
    %c28 = arith.constant 28 : index
    %128 = vector.load %arg6[%c0_123, %c0_124, %c28] : memref<2x32x166xbf16, #tpu.memory_space<vmem>>, vector<1x32x128xbf16>
    %129 = vector.shape_cast %128 : vector<1x32x128xbf16> to vector<32x128xbf16>
    %c896 = arith.constant 896 : index
    %c0_125 = arith.constant 0 : index
    %130 = vector.load %arg8[%c896, %c0_125] : memref<1264x256xbf16, #tpu.memory_space<vmem>>, vector<32x128xbf16>
    tpu.vector_store %arg8[%c896, %c0_125], %129 {strides = array<i32>} : memref<1264x256xbf16, #tpu.memory_space<vmem>>, vector<32x128xbf16>,
    %c0_126 = arith.constant 0 : index
    %c0_127 = arith.constant 0 : index
    %c29 = arith.constant 29 : index
    %131 = vector.load %arg6[%c0_126, %c0_127, %c29] : memref<2x32x166xbf16, #tpu.memory_space<vmem>>, vector<1x32x128xbf16>
    %132 = vector.shape_cast %131 : vector<1x32x128xbf16> to vector<32x128xbf16>
    %c928 = arith.constant 928 : index
    %c0_128 = arith.constant 0 : index
    %133 = vector.load %arg8[%c928, %c0_128] : memref<1264x256xbf16, #tpu.memory_space<vmem>>, vector<32x128xbf16>
    tpu.vector_store %arg8[%c928, %c0_128], %132 {strides = array<i32>} : memref<1264x256xbf16, #tpu.memory_space<vmem>>, vector<32x128xbf16>,
    %c0_129 = arith.constant 0 : index
    %c0_130 = arith.constant 0 : index
    %c30 = arith.constant 30 : index
    %134 = vector.load %arg6[%c0_129, %c0_130, %c30] : memref<2x32x166xbf16, #tpu.memory_space<vmem>>, vector<1x32x128xbf16>
    %135 = vector.shape_cast %134 : vector<1x32x128xbf16> to vector<32x128xbf16>
    %c960 = arith.constant 960 : index
    %c0_131 = arith.constant 0 : index
    %136 = vector.load %arg8[%c960, %c0_131] : memref<1264x256xbf16, #tpu.memory_space<vmem>>, vector<32x128xbf16>
    tpu.vector_store %arg8[%c960, %c0_131], %135 {strides = array<i32>} : memref<1264x256xbf16, #tpu.memory_space<vmem>>, vector<32x128xbf16>,
    %c0_132 = arith.constant 0 : index
    %c0_133 = arith.constant 0 : index
    %c31 = arith.constant 31 : index
    %137 = vector.load %arg6[%c0_132, %c0_133, %c31] : memref<2x32x166xbf16, #tpu.memory_space<vmem>>, vector<1x32x128xbf16>
    %138 = vector.shape_cast %137 : vector<1x32x128xbf16> to vector<32x128xbf16>
    %c992 = arith.constant 992 : index
    %c0_134 = arith.constant 0 : index
    %139 = vector.load %arg8[%c992, %c0_134] : memref<1264x256xbf16, #tpu.memory_space<vmem>>, vector<32x128xbf16>
    tpu.vector_store %arg8[%c992, %c0_134], %138 {strides = array<i32>} : memref<1264x256xbf16, #tpu.memory_space<vmem>>, vector<32x128xbf16>,
    %c0_135 = arith.constant 0 : index
    %c0_136 = arith.constant 0 : index
    %c32_137 = arith.constant 32 : index
    %140 = vector.load %arg6[%c0_135, %c0_136, %c32_137] : memref<2x32x166xbf16, #tpu.memory_space<vmem>>, vector<1x32x128xbf16>
    %141 = vector.shape_cast %140 : vector<1x32x128xbf16> to vector<32x128xbf16>
    %c1024 = arith.constant 1024 : index
    %c0_138 = arith.constant 0 : index
    %142 = vector.load %arg8[%c1024, %c0_138] : memref<1264x256xbf16, #tpu.memory_space<vmem>>, vector<32x128xbf16>
    tpu.vector_store %arg8[%c1024, %c0_138], %141 {strides = array<i32>} : memref<1264x256xbf16, #tpu.memory_space<vmem>>, vector<32x128xbf16>,
    %c0_139 = arith.constant 0 : index
    %c0_140 = arith.constant 0 : index
    %c33 = arith.constant 33 : index
    %143 = vector.load %arg6[%c0_139, %c0_140, %c33] : memref<2x32x166xbf16, #tpu.memory_space<vmem>>, vector<1x32x128xbf16>
    %144 = vector.shape_cast %143 : vector<1x32x128xbf16> to vector<32x128xbf16>
    %c1056 = arith.constant 1056 : index
    %c0_141 = arith.constant 0 : index
    %145 = vector.load %arg8[%c1056, %c0_141] : memref<1264x256xbf16, #tpu.memory_space<vmem>>, vector<32x128xbf16>
    tpu.vector_store %arg8[%c1056, %c0_141], %144 {strides = array<i32>} : memref<1264x256xbf16, #tpu.memory_space<vmem>>, vector<32x128xbf16>,
    %c0_142 = arith.constant 0 : index
    %c0_143 = arith.constant 0 : index
    %c34 = arith.constant 34 : index
    %146 = vector.load %arg6[%c0_142, %c0_143, %c34] : memref<2x32x166xbf16, #tpu.memory_space<vmem>>, vector<1x32x128xbf16>
    %147 = vector.shape_cast %146 : vector<1x32x128xbf16> to vector<32x128xbf16>
    %c1088 = arith.constant 1088 : index
    %c0_144 = arith.constant 0 : index
    %148 = vector.load %arg8[%c1088, %c0_144] : memref<1264x256xbf16, #tpu.memory_space<vmem>>, vector<32x128xbf16>
    tpu.vector_store %arg8[%c1088, %c0_144], %147 {strides = array<i32>} : memref<1264x256xbf16, #tpu.memory_space<vmem>>, vector<32x128xbf16>,
    %c0_145 = arith.constant 0 : index
    %c0_146 = arith.constant 0 : index
    %c35 = arith.constant 35 : index
    %149 = vector.load %arg6[%c0_145, %c0_146, %c35] : memref<2x32x166xbf16, #tpu.memory_space<vmem>>, vector<1x32x128xbf16>
    %150 = vector.shape_cast %149 : vector<1x32x128xbf16> to vector<32x128xbf16>
    %c1120 = arith.constant 1120 : index
    %c0_147 = arith.constant 0 : index
    %151 = vector.load %arg8[%c1120, %c0_147] : memref<1264x256xbf16, #tpu.memory_space<vmem>>, vector<32x128xbf16>
    tpu.vector_store %arg8[%c1120, %c0_147], %150 {strides = array<i32>} : memref<1264x256xbf16, #tpu.memory_space<vmem>>, vector<32x128xbf16>,
    %c0_148 = arith.constant 0 : index
    %c0_149 = arith.constant 0 : index
    %c36 = arith.constant 36 : index
    %152 = vector.load %arg6[%c0_148, %c0_149, %c36] : memref<2x32x166xbf16, #tpu.memory_space<vmem>>, vector<1x32x128xbf16>
    %153 = vector.shape_cast %152 : vector<1x32x128xbf16> to vector<32x128xbf16>
    %c1152 = arith.constant 1152 : index
    %c0_150 = arith.constant 0 : index
    %154 = vector.load %arg8[%c1152, %c0_150] : memref<1264x256xbf16, #tpu.memory_space<vmem>>, vector<32x128xbf16>
    tpu.vector_store %arg8[%c1152, %c0_150], %153 {strides = array<i32>} : memref<1264x256xbf16, #tpu.memory_space<vmem>>, vector<32x128xbf16>,
    %c0_151 = arith.constant 0 : index
    %c0_152 = arith.constant 0 : index
    %c37 = arith.constant 37 : index
    %155 = vector.load %arg6[%c0_151, %c0_152, %c37] : memref<2x32x166xbf16, #tpu.memory_space<vmem>>, vector<1x32x128xbf16>
    %156 = vector.shape_cast %155 : vector<1x32x128xbf16> to vector<32x128xbf16>
    %c1184 = arith.constant 1184 : index
    %c0_153 = arith.constant 0 : index
    %157 = vector.load %arg8[%c1184, %c0_153] : memref<1264x256xbf16, #tpu.memory_space<vmem>>, vector<32x128xbf16>
    tpu.vector_store %arg8[%c1184, %c0_153], %156 {strides = array<i32>} : memref<1264x256xbf16, #tpu.memory_space<vmem>>, vector<32x128xbf16>,
    %c0_154 = arith.constant 0 : index
    %c0_155 = arith.constant 0 : index
    %c38 = arith.constant 38 : index
    %158 = vector.load %arg6[%c0_154, %c0_155, %c38] : memref<2x32x166xbf16, #tpu.memory_space<vmem>>, vector<1x32x128xbf16>
    %159 = vector.shape_cast %158 : vector<1x32x128xbf16> to vector<32x128xbf16>
    %c1216 = arith.constant 1216 : index
    %c0_156 = arith.constant 0 : index
    %160 = vector.load %arg8[%c1216, %c0_156] : memref<1264x256xbf16, #tpu.memory_space<vmem>>, vector<32x128xbf16>
    tpu.vector_store %arg8[%c1216, %c0_156], %159 {strides = array<i32>} : memref<1264x256xbf16, #tpu.memory_space<vmem>>, vector<32x128xbf16>,
    %161 = vector.extract_strided_slice %43 {offsets = [0, 0, 0], sizes = [1, 4, 128], strides = [1, 1, 1]} : vector<2x4x128xf32> to vector<1x4x128xf32>
    %162 = vector.shape_cast %161 : vector<1x4x128xf32> to vector<4x128xf32>
    %163 = arith.truncf %162 : vector<4x128xf32> to vector<4x128xbf16>
    %c1248 = arith.constant 1248 : index
    %c0_157 = arith.constant 0 : index
    %164 = vector.load %arg8[%c1248, %c0_157] : memref<1264x256xbf16, #tpu.memory_space<vmem>>, vector<4x128xbf16>
    tpu.vector_store %arg8[%c1248, %c0_157], %163 {strides = array<i32>} : memref<1264x256xbf16, #tpu.memory_space<vmem>>, vector<4x128xbf16>,
    %c1_158 = arith.constant 1 : index
    %c0_159 = arith.constant 0 : index
    %c0_160 = arith.constant 0 : index
    %165 = vector.load %arg6[%c1_158, %c0_159, %c0_160] : memref<2x32x166xbf16, #tpu.memory_space<vmem>>, vector<1x32x128xbf16>
    %166 = vector.shape_cast %165 : vector<1x32x128xbf16> to vector<32x128xbf16>
    %c0_161 = arith.constant 0 : index
    %c128_162 = arith.constant 128 : index
    %167 = vector.load %arg8[%c0_161, %c128_162] : memref<1264x256xbf16, #tpu.memory_space<vmem>>, vector<32x128xbf16>
    tpu.vector_store %arg8[%c0_161, %c128_162], %166 {strides = array<i32>} : memref<1264x256xbf16, #tpu.memory_space<vmem>>, vector<32x128xbf16>,
    %c1_163 = arith.constant 1 : index
    %c0_164 = arith.constant 0 : index
    %c1_165 = arith.constant 1 : index
    %168 = vector.load %arg6[%c1_163, %c0_164, %c1_165] : memref<2x32x166xbf16, #tpu.memory_space<vmem>>, vector<1x32x128xbf16>
    %169 = vector.shape_cast %168 : vector<1x32x128xbf16> to vector<32x128xbf16>
    %c32_166 = arith.constant 32 : index
    %c128_167 = arith.constant 128 : index
    %170 = vector.load %arg8[%c32_166, %c128_167] : memref<1264x256xbf16, #tpu.memory_space<vmem>>, vector<32x128xbf16>
    tpu.vector_store %arg8[%c32_166, %c128_167], %169 {strides = array<i32>} : memref<1264x256xbf16, #tpu.memory_space<vmem>>, vector<32x128xbf16>,
    %c1_168 = arith.constant 1 : index
    %c0_169 = arith.constant 0 : index
    %c2_170 = arith.constant 2 : index
    %171 = vector.load %arg6[%c1_168, %c0_169, %c2_170] : memref<2x32x166xbf16, #tpu.memory_space<vmem>>, vector<1x32x128xbf16>
    %172 = vector.shape_cast %171 : vector<1x32x128xbf16> to vector<32x128xbf16>
    %c64_171 = arith.constant 64 : index
    %c128_172 = arith.constant 128 : index
    %173 = vector.load %arg8[%c64_171, %c128_172] : memref<1264x256xbf16, #tpu.memory_space<vmem>>, vector<32x128xbf16>
    tpu.vector_store %arg8[%c64_171, %c128_172], %172 {strides = array<i32>} : memref<1264x256xbf16, #tpu.memory_space<vmem>>, vector<32x128xbf16>,
    %c1_173 = arith.constant 1 : index
    %c0_174 = arith.constant 0 : index
    %c3_175 = arith.constant 3 : index
    %174 = vector.load %arg6[%c1_173, %c0_174, %c3_175] : memref<2x32x166xbf16, #tpu.memory_space<vmem>>, vector<1x32x128xbf16>
    %175 = vector.shape_cast %174 : vector<1x32x128xbf16> to vector<32x128xbf16>
    %c96_176 = arith.constant 96 : index
    %c128_177 = arith.constant 128 : index
    %176 = vector.load %arg8[%c96_176, %c128_177] : memref<1264x256xbf16, #tpu.memory_space<vmem>>, vector<32x128xbf16>
    tpu.vector_store %arg8[%c96_176, %c128_177], %175 {strides = array<i32>} : memref<1264x256xbf16, #tpu.memory_space<vmem>>, vector<32x128xbf16>,
    %c1_178 = arith.constant 1 : index
    %c0_179 = arith.constant 0 : index
    %c4_180 = arith.constant 4 : index
    %177 = vector.load %arg6[%c1_178, %c0_179, %c4_180] : memref<2x32x166xbf16, #tpu.memory_space<vmem>>, vector<1x32x128xbf16>
    %178 = vector.shape_cast %177 : vector<1x32x128xbf16> to vector<32x128xbf16>
    %c128_181 = arith.constant 128 : index
    %c128_182 = arith.constant 128 : index
    %179 = vector.load %arg8[%c128_181, %c128_182] : memref<1264x256xbf16, #tpu.memory_space<vmem>>, vector<32x128xbf16>
    tpu.vector_store %arg8[%c128_181, %c128_182], %178 {strides = array<i32>} : memref<1264x256xbf16, #tpu.memory_space<vmem>>, vector<32x128xbf16>,
    %c1_183 = arith.constant 1 : index
    %c0_184 = arith.constant 0 : index
    %c5_185 = arith.constant 5 : index
    %180 = vector.load %arg6[%c1_183, %c0_184, %c5_185] : memref<2x32x166xbf16, #tpu.memory_space<vmem>>, vector<1x32x128xbf16>
    %181 = vector.shape_cast %180 : vector<1x32x128xbf16> to vector<32x128xbf16>
    %c160_186 = arith.constant 160 : index
    %c128_187 = arith.constant 128 : index
    %182 = vector.load %arg8[%c160_186, %c128_187] : memref<1264x256xbf16, #tpu.memory_space<vmem>>, vector<32x128xbf16>
    tpu.vector_store %arg8[%c160_186, %c128_187], %181 {strides = array<i32>} : memref<1264x256xbf16, #tpu.memory_space<vmem>>, vector<32x128xbf16>,
    %c1_188 = arith.constant 1 : index
    %c0_189 = arith.constant 0 : index
    %c6_190 = arith.constant 6 : index
    %183 = vector.load %arg6[%c1_188, %c0_189, %c6_190] : memref<2x32x166xbf16, #tpu.memory_space<vmem>>, vector<1x32x128xbf16>
    %184 = vector.shape_cast %183 : vector<1x32x128xbf16> to vector<32x128xbf16>
    %c192_191 = arith.constant 192 : index
    %c128_192 = arith.constant 128 : index
    %185 = vector.load %arg8[%c192_191, %c128_192] : memref<1264x256xbf16, #tpu.memory_space<vmem>>, vector<32x128xbf16>
    tpu.vector_store %arg8[%c192_191, %c128_192], %184 {strides = array<i32>} : memref<1264x256xbf16, #tpu.memory_space<vmem>>, vector<32x128xbf16>,
    %c1_193 = arith.constant 1 : index
    %c0_194 = arith.constant 0 : index
    %c7_195 = arith.constant 7 : index
    %186 = vector.load %arg6[%c1_193, %c0_194, %c7_195] : memref<2x32x166xbf16, #tpu.memory_space<vmem>>, vector<1x32x128xbf16>
    %187 = vector.shape_cast %186 : vector<1x32x128xbf16> to vector<32x128xbf16>
    %c224_196 = arith.constant 224 : index
    %c128_197 = arith.constant 128 : index
    %188 = vector.load %arg8[%c224_196, %c128_197] : memref<1264x256xbf16, #tpu.memory_space<vmem>>, vector<32x128xbf16>
    tpu.vector_store %arg8[%c224_196, %c128_197], %187 {strides = array<i32>} : memref<1264x256xbf16, #tpu.memory_space<vmem>>, vector<32x128xbf16>,
    %c1_198 = arith.constant 1 : index
    %c0_199 = arith.constant 0 : index
    %c8_200 = arith.constant 8 : index
    %189 = vector.load %arg6[%c1_198, %c0_199, %c8_200] : memref<2x32x166xbf16, #tpu.memory_space<vmem>>, vector<1x32x128xbf16>
    %190 = vector.shape_cast %189 : vector<1x32x128xbf16> to vector<32x128xbf16>
    %c256_201 = arith.constant 256 : index
    %c128_202 = arith.constant 128 : index
    %191 = vector.load %arg8[%c256_201, %c128_202] : memref<1264x256xbf16, #tpu.memory_space<vmem>>, vector<32x128xbf16>
    tpu.vector_store %arg8[%c256_201, %c128_202], %190 {strides = array<i32>} : memref<1264x256xbf16, #tpu.memory_space<vmem>>, vector<32x128xbf16>,
    %c1_203 = arith.constant 1 : index
    %c0_204 = arith.constant 0 : index
    %c9_205 = arith.constant 9 : index
    %192 = vector.load %arg6[%c1_203, %c0_204, %c9_205] : memref<2x32x166xbf16, #tpu.memory_space<vmem>>, vector<1x32x128xbf16>
    %193 = vector.shape_cast %192 : vector<1x32x128xbf16> to vector<32x128xbf16>
    %c288_206 = arith.constant 288 : index
    %c128_207 = arith.constant 128 : index
    %194 = vector.load %arg8[%c288_206, %c128_207] : memref<1264x256xbf16, #tpu.memory_space<vmem>>, vector<32x128xbf16>
    tpu.vector_store %arg8[%c288_206, %c128_207], %193 {strides = array<i32>} : memref<1264x256xbf16, #tpu.memory_space<vmem>>, vector<32x128xbf16>,
    %c1_208 = arith.constant 1 : index
    %c0_209 = arith.constant 0 : index
    %c10_210 = arith.constant 10 : index
    %195 = vector.load %arg6[%c1_208, %c0_209, %c10_210] : memref<2x32x166xbf16, #tpu.memory_space<vmem>>, vector<1x32x128xbf16>
    %196 = vector.shape_cast %195 : vector<1x32x128xbf16> to vector<32x128xbf16>
    %c320_211 = arith.constant 320 : index
    %c128_212 = arith.constant 128 : index
    %197 = vector.load %arg8[%c320_211, %c128_212] : memref<1264x256xbf16, #tpu.memory_space<vmem>>, vector<32x128xbf16>
    tpu.vector_store %arg8[%c320_211, %c128_212], %196 {strides = array<i32>} : memref<1264x256xbf16, #tpu.memory_space<vmem>>, vector<32x128xbf16>,
    %c1_213 = arith.constant 1 : index
    %c0_214 = arith.constant 0 : index
    %c11_215 = arith.constant 11 : index
    %198 = vector.load %arg6[%c1_213, %c0_214, %c11_215] : memref<2x32x166xbf16, #tpu.memory_space<vmem>>, vector<1x32x128xbf16>
    %199 = vector.shape_cast %198 : vector<1x32x128xbf16> to vector<32x128xbf16>
    %c352_216 = arith.constant 352 : index
    %c128_217 = arith.constant 128 : index
    %200 = vector.load %arg8[%c352_216, %c128_217] : memref<1264x256xbf16, #tpu.memory_space<vmem>>, vector<32x128xbf16>
    tpu.vector_store %arg8[%c352_216, %c128_217], %199 {strides = array<i32>} : memref<1264x256xbf16, #tpu.memory_space<vmem>>, vector<32x128xbf16>,
    %c1_218 = arith.constant 1 : index
    %c0_219 = arith.constant 0 : index
    %c12_220 = arith.constant 12 : index
    %201 = vector.load %arg6[%c1_218, %c0_219, %c12_220] : memref<2x32x166xbf16, #tpu.memory_space<vmem>>, vector<1x32x128xbf16>
    %202 = vector.shape_cast %201 : vector<1x32x128xbf16> to vector<32x128xbf16>
    %c384_221 = arith.constant 384 : index
    %c128_222 = arith.constant 128 : index
    %203 = vector.load %arg8[%c384_221, %c128_222] : memref<1264x256xbf16, #tpu.memory_space<vmem>>, vector<32x128xbf16>
    tpu.vector_store %arg8[%c384_221, %c128_222], %202 {strides = array<i32>} : memref<1264x256xbf16, #tpu.memory_space<vmem>>, vector<32x128xbf16>,
    %c1_223 = arith.constant 1 : index
    %c0_224 = arith.constant 0 : index
    %c13_225 = arith.constant 13 : index
    %204 = vector.load %arg6[%c1_223, %c0_224, %c13_225] : memref<2x32x166xbf16, #tpu.memory_space<vmem>>, vector<1x32x128xbf16>
    %205 = vector.shape_cast %204 : vector<1x32x128xbf16> to vector<32x128xbf16>
    %c416_226 = arith.constant 416 : index
    %c128_227 = arith.constant 128 : index
    %206 = vector.load %arg8[%c416_226, %c128_227] : memref<1264x256xbf16, #tpu.memory_space<vmem>>, vector<32x128xbf16>
    tpu.vector_store %arg8[%c416_226, %c128_227], %205 {strides = array<i32>} : memref<1264x256xbf16, #tpu.memory_space<vmem>>, vector<32x128xbf16>,
    %c1_228 = arith.constant 1 : index
    %c0_229 = arith.constant 0 : index
    %c14_230 = arith.constant 14 : index
    %207 = vector.load %arg6[%c1_228, %c0_229, %c14_230] : memref<2x32x166xbf16, #tpu.memory_space<vmem>>, vector<1x32x128xbf16>
    %208 = vector.shape_cast %207 : vector<1x32x128xbf16> to vector<32x128xbf16>
    %c448_231 = arith.constant 448 : index
    %c128_232 = arith.constant 128 : index
    %209 = vector.load %arg8[%c448_231, %c128_232] : memref<1264x256xbf16, #tpu.memory_space<vmem>>, vector<32x128xbf16>
    tpu.vector_store %arg8[%c448_231, %c128_232], %208 {strides = array<i32>} : memref<1264x256xbf16, #tpu.memory_space<vmem>>, vector<32x128xbf16>,
    %c1_233 = arith.constant 1 : index
    %c0_234 = arith.constant 0 : index
    %c15_235 = arith.constant 15 : index
    %210 = vector.load %arg6[%c1_233, %c0_234, %c15_235] : memref<2x32x166xbf16, #tpu.memory_space<vmem>>, vector<1x32x128xbf16>
    %211 = vector.shape_cast %210 : vector<1x32x128xbf16> to vector<32x128xbf16>
    %c480_236 = arith.constant 480 : index
    %c128_237 = arith.constant 128 : index
    %212 = vector.load %arg8[%c480_236, %c128_237] : memref<1264x256xbf16, #tpu.memory_space<vmem>>, vector<32x128xbf16>
    tpu.vector_store %arg8[%c480_236, %c128_237], %211 {strides = array<i32>} : memref<1264x256xbf16, #tpu.memory_space<vmem>>, vector<32x128xbf16>,
    %c1_238 = arith.constant 1 : index
    %c0_239 = arith.constant 0 : index
    %c16_240 = arith.constant 16 : index
    %213 = vector.load %arg6[%c1_238, %c0_239, %c16_240] : memref<2x32x166xbf16, #tpu.memory_space<vmem>>, vector<1x32x128xbf16>
    %214 = vector.shape_cast %213 : vector<1x32x128xbf16> to vector<32x128xbf16>
    %c512_241 = arith.constant 512 : index
    %c128_242 = arith.constant 128 : index
    %215 = vector.load %arg8[%c512_241, %c128_242] : memref<1264x256xbf16, #tpu.memory_space<vmem>>, vector<32x128xbf16>
    tpu.vector_store %arg8[%c512_241, %c128_242], %214 {strides = array<i32>} : memref<1264x256xbf16, #tpu.memory_space<vmem>>, vector<32x128xbf16>,
    %c1_243 = arith.constant 1 : index
    %c0_244 = arith.constant 0 : index
    %c17_245 = arith.constant 17 : index
    %216 = vector.load %arg6[%c1_243, %c0_244, %c17_245] : memref<2x32x166xbf16, #tpu.memory_space<vmem>>, vector<1x32x128xbf16>
    %217 = vector.shape_cast %216 : vector<1x32x128xbf16> to vector<32x128xbf16>
    %c544_246 = arith.constant 544 : index
    %c128_247 = arith.constant 128 : index
    %218 = vector.load %arg8[%c544_246, %c128_247] : memref<1264x256xbf16, #tpu.memory_space<vmem>>, vector<32x128xbf16>
    tpu.vector_store %arg8[%c544_246, %c128_247], %217 {strides = array<i32>} : memref<1264x256xbf16, #tpu.memory_space<vmem>>, vector<32x128xbf16>,
    %c1_248 = arith.constant 1 : index
    %c0_249 = arith.constant 0 : index
    %c18_250 = arith.constant 18 : index
    %219 = vector.load %arg6[%c1_248, %c0_249, %c18_250] : memref<2x32x166xbf16, #tpu.memory_space<vmem>>, vector<1x32x128xbf16>
    %220 = vector.shape_cast %219 : vector<1x32x128xbf16> to vector<32x128xbf16>
    %c576_251 = arith.constant 576 : index
    %c128_252 = arith.constant 128 : index
    %221 = vector.load %arg8[%c576_251, %c128_252] : memref<1264x256xbf16, #tpu.memory_space<vmem>>, vector<32x128xbf16>
    tpu.vector_store %arg8[%c576_251, %c128_252], %220 {strides = array<i32>} : memref<1264x256xbf16, #tpu.memory_space<vmem>>, vector<32x128xbf16>,
    %c1_253 = arith.constant 1 : index
    %c0_254 = arith.constant 0 : index
    %c19_255 = arith.constant 19 : index
    %222 = vector.load %arg6[%c1_253, %c0_254, %c19_255] : memref<2x32x166xbf16, #tpu.memory_space<vmem>>, vector<1x32x128xbf16>
    %223 = vector.shape_cast %222 : vector<1x32x128xbf16> to vector<32x128xbf16>
    %c608_256 = arith.constant 608 : index
    %c128_257 = arith.constant 128 : index
    %224 = vector.load %arg8[%c608_256, %c128_257] : memref<1264x256xbf16, #tpu.memory_space<vmem>>, vector<32x128xbf16>
    tpu.vector_store %arg8[%c608_256, %c128_257], %223 {strides = array<i32>} : memref<1264x256xbf16, #tpu.memory_space<vmem>>, vector<32x128xbf16>,
    %c1_258 = arith.constant 1 : index
    %c0_259 = arith.constant 0 : index
    %c20_260 = arith.constant 20 : index
    %225 = vector.load %arg6[%c1_258, %c0_259, %c20_260] : memref<2x32x166xbf16, #tpu.memory_space<vmem>>, vector<1x32x128xbf16>
    %226 = vector.shape_cast %225 : vector<1x32x128xbf16> to vector<32x128xbf16>
    %c640_261 = arith.constant 640 : index
    %c128_262 = arith.constant 128 : index
    %227 = vector.load %arg8[%c640_261, %c128_262] : memref<1264x256xbf16, #tpu.memory_space<vmem>>, vector<32x128xbf16>
    tpu.vector_store %arg8[%c640_261, %c128_262], %226 {strides = array<i32>} : memref<1264x256xbf16, #tpu.memory_space<vmem>>, vector<32x128xbf16>,
    %c1_263 = arith.constant 1 : index
    %c0_264 = arith.constant 0 : index
    %c21_265 = arith.constant 21 : index
    %228 = vector.load %arg6[%c1_263, %c0_264, %c21_265] : memref<2x32x166xbf16, #tpu.memory_space<vmem>>, vector<1x32x128xbf16>
    %229 = vector.shape_cast %228 : vector<1x32x128xbf16> to vector<32x128xbf16>
    %c672_266 = arith.constant 672 : index
    %c128_267 = arith.constant 128 : index
    %230 = vector.load %arg8[%c672_266, %c128_267] : memref<1264x256xbf16, #tpu.memory_space<vmem>>, vector<32x128xbf16>
    tpu.vector_store %arg8[%c672_266, %c128_267], %229 {strides = array<i32>} : memref<1264x256xbf16, #tpu.memory_space<vmem>>, vector<32x128xbf16>,
    %c1_268 = arith.constant 1 : index
    %c0_269 = arith.constant 0 : index
    %c22_270 = arith.constant 22 : index
    %231 = vector.load %arg6[%c1_268, %c0_269, %c22_270] : memref<2x32x166xbf16, #tpu.memory_space<vmem>>, vector<1x32x128xbf16>
    %232 = vector.shape_cast %231 : vector<1x32x128xbf16> to vector<32x128xbf16>
    %c704_271 = arith.constant 704 : index
    %c128_272 = arith.constant 128 : index
    %233 = vector.load %arg8[%c704_271, %c128_272] : memref<1264x256xbf16, #tpu.memory_space<vmem>>, vector<32x128xbf16>
    tpu.vector_store %arg8[%c704_271, %c128_272], %232 {strides = array<i32>} : memref<1264x256xbf16, #tpu.memory_space<vmem>>, vector<32x128xbf16>,
    %c1_273 = arith.constant 1 : index
    %c0_274 = arith.constant 0 : index
    %c23_275 = arith.constant 23 : index
    %234 = vector.load %arg6[%c1_273, %c0_274, %c23_275] : memref<2x32x166xbf16, #tpu.memory_space<vmem>>, vector<1x32x128xbf16>
    %235 = vector.shape_cast %234 : vector<1x32x128xbf16> to vector<32x128xbf16>
    %c736_276 = arith.constant 736 : index
    %c128_277 = arith.constant 128 : index
    %236 = vector.load %arg8[%c736_276, %c128_277] : memref<1264x256xbf16, #tpu.memory_space<vmem>>, vector<32x128xbf16>
    tpu.vector_store %arg8[%c736_276, %c128_277], %235 {strides = array<i32>} : memref<1264x256xbf16, #tpu.memory_space<vmem>>, vector<32x128xbf16>,
    %c1_278 = arith.constant 1 : index
    %c0_279 = arith.constant 0 : index
    %c24_280 = arith.constant 24 : index
    %237 = vector.load %arg6[%c1_278, %c0_279, %c24_280] : memref<2x32x166xbf16, #tpu.memory_space<vmem>>, vector<1x32x128xbf16>
    %238 = vector.shape_cast %237 : vector<1x32x128xbf16> to vector<32x128xbf16>
    %c768_281 = arith.constant 768 : index
    %c128_282 = arith.constant 128 : index
    %239 = vector.load %arg8[%c768_281, %c128_282] : memref<1264x256xbf16, #tpu.memory_space<vmem>>, vector<32x128xbf16>
    tpu.vector_store %arg8[%c768_281, %c128_282], %238 {strides = array<i32>} : memref<1264x256xbf16, #tpu.memory_space<vmem>>, vector<32x128xbf16>,
    %c1_283 = arith.constant 1 : index
    %c0_284 = arith.constant 0 : index
    %c25_285 = arith.constant 25 : index
    %240 = vector.load %arg6[%c1_283, %c0_284, %c25_285] : memref<2x32x166xbf16, #tpu.memory_space<vmem>>, vector<1x32x128xbf16>
    %241 = vector.shape_cast %240 : vector<1x32x128xbf16> to vector<32x128xbf16>
    %c800_286 = arith.constant 800 : index
    %c128_287 = arith.constant 128 : index
    %242 = vector.load %arg8[%c800_286, %c128_287] : memref<1264x256xbf16, #tpu.memory_space<vmem>>, vector<32x128xbf16>
    tpu.vector_store %arg8[%c800_286, %c128_287], %241 {strides = array<i32>} : memref<1264x256xbf16, #tpu.memory_space<vmem>>, vector<32x128xbf16>,
    %c1_288 = arith.constant 1 : index
    %c0_289 = arith.constant 0 : index
    %c26_290 = arith.constant 26 : index
    %243 = vector.load %arg6[%c1_288, %c0_289, %c26_290] : memref<2x32x166xbf16, #tpu.memory_space<vmem>>, vector<1x32x128xbf16>
    %244 = vector.shape_cast %243 : vector<1x32x128xbf16> to vector<32x128xbf16>
    %c832_291 = arith.constant 832 : index
    %c128_292 = arith.constant 128 : index
    %245 = vector.load %arg8[%c832_291, %c128_292] : memref<1264x256xbf16, #tpu.memory_space<vmem>>, vector<32x128xbf16>
    tpu.vector_store %arg8[%c832_291, %c128_292], %244 {strides = array<i32>} : memref<1264x256xbf16, #tpu.memory_space<vmem>>, vector<32x128xbf16>,
    %c1_293 = arith.constant 1 : index
    %c0_294 = arith.constant 0 : index
    %c27_295 = arith.constant 27 : index
    %246 = vector.load %arg6[%c1_293, %c0_294, %c27_295] : memref<2x32x166xbf16, #tpu.memory_space<vmem>>, vector<1x32x128xbf16>
    %247 = vector.shape_cast %246 : vector<1x32x128xbf16> to vector<32x128xbf16>
    %c864_296 = arith.constant 864 : index
    %c128_297 = arith.constant 128 : index
    %248 = vector.load %arg8[%c864_296, %c128_297] : memref<1264x256xbf16, #tpu.memory_space<vmem>>, vector<32x128xbf16>
    tpu.vector_store %arg8[%c864_296, %c128_297], %247 {strides = array<i32>} : memref<1264x256xbf16, #tpu.memory_space<vmem>>, vector<32x128xbf16>,
    %c1_298 = arith.constant 1 : index
    %c0_299 = arith.constant 0 : index
    %c28_300 = arith.constant 28 : index
    %249 = vector.load %arg6[%c1_298, %c0_299, %c28_300] : memref<2x32x166xbf16, #tpu.memory_space<vmem>>, vector<1x32x128xbf16>
    %250 = vector.shape_cast %249 : vector<1x32x128xbf16> to vector<32x128xbf16>
    %c896_301 = arith.constant 896 : index
    %c128_302 = arith.constant 128 : index
    %251 = vector.load %arg8[%c896_301, %c128_302] : memref<1264x256xbf16, #tpu.memory_space<vmem>>, vector<32x128xbf16>
    tpu.vector_store %arg8[%c896_301, %c128_302], %250 {strides = array<i32>} : memref<1264x256xbf16, #tpu.memory_space<vmem>>, vector<32x128xbf16>,
    %c1_303 = arith.constant 1 : index
    %c0_304 = arith.constant 0 : index
    %c29_305 = arith.constant 29 : index
    %252 = vector.load %arg6[%c1_303, %c0_304, %c29_305] : memref<2x32x166xbf16, #tpu.memory_space<vmem>>, vector<1x32x128xbf16>
    %253 = vector.shape_cast %252 : vector<1x32x128xbf16> to vector<32x128xbf16>
    %c928_306 = arith.constant 928 : index
    %c128_307 = arith.constant 128 : index
    %254 = vector.load %arg8[%c928_306, %c128_307] : memref<1264x256xbf16, #tpu.memory_space<vmem>>, vector<32x128xbf16>
    tpu.vector_store %arg8[%c928_306, %c128_307], %253 {strides = array<i32>} : memref<1264x256xbf16, #tpu.memory_space<vmem>>, vector<32x128xbf16>,
    %c1_308 = arith.constant 1 : index
    %c0_309 = arith.constant 0 : index
    %c30_310 = arith.constant 30 : index
    %255 = vector.load %arg6[%c1_308, %c0_309, %c30_310] : memref<2x32x166xbf16, #tpu.memory_space<vmem>>, vector<1x32x128xbf16>
    %256 = vector.shape_cast %255 : vector<1x32x128xbf16> to vector<32x128xbf16>
    %c960_311 = arith.constant 960 : index
    %c128_312 = arith.constant 128 : index
    %257 = vector.load %arg8[%c960_311, %c128_312] : memref<1264x256xbf16, #tpu.memory_space<vmem>>, vector<32x128xbf16>
    tpu.vector_store %arg8[%c960_311, %c128_312], %256 {strides = array<i32>} : memref<1264x256xbf16, #tpu.memory_space<vmem>>, vector<32x128xbf16>,
    %c1_313 = arith.constant 1 : index
    %c0_314 = arith.constant 0 : index
    %c31_315 = arith.constant 31 : index
    %258 = vector.load %arg6[%c1_313, %c0_314, %c31_315] : memref<2x32x166xbf16, #tpu.memory_space<vmem>>, vector<1x32x128xbf16>
    %259 = vector.shape_cast %258 : vector<1x32x128xbf16> to vector<32x128xbf16>
    %c992_316 = arith.constant 992 : index
    %c128_317 = arith.constant 128 : index
    %260 = vector.load %arg8[%c992_316, %c128_317] : memref<1264x256xbf16, #tpu.memory_space<vmem>>, vector<32x128xbf16>
    tpu.vector_store %arg8[%c992_316, %c128_317], %259 {strides = array<i32>} : memref<1264x256xbf16, #tpu.memory_space<vmem>>, vector<32x128xbf16>,
    %c1_318 = arith.constant 1 : index
    %c0_319 = arith.constant 0 : index
    %c32_320 = arith.constant 32 : index
    %261 = vector.load %arg6[%c1_318, %c0_319, %c32_320] : memref<2x32x166xbf16, #tpu.memory_space<vmem>>, vector<1x32x128xbf16>
    %262 = vector.shape_cast %261 : vector<1x32x128xbf16> to vector<32x128xbf16>
    %c1024_321 = arith.constant 1024 : index
    %c128_322 = arith.constant 128 : index
    %263 = vector.load %arg8[%c1024_321, %c128_322] : memref<1264x256xbf16, #tpu.memory_space<vmem>>, vector<32x128xbf16>
    tpu.vector_store %arg8[%c1024_321, %c128_322], %262 {strides = array<i32>} : memref<1264x256xbf16, #tpu.memory_space<vmem>>, vector<32x128xbf16>,
    %c1_323 = arith.constant 1 : index
    %c0_324 = arith.constant 0 : index
    %c33_325 = arith.constant 33 : index
    %264 = vector.load %arg6[%c1_323, %c0_324, %c33_325] : memref<2x32x166xbf16, #tpu.memory_space<vmem>>, vector<1x32x128xbf16>
    %265 = vector.shape_cast %264 : vector<1x32x128xbf16> to vector<32x128xbf16>
    %c1056_326 = arith.constant 1056 : index
    %c128_327 = arith.constant 128 : index
    %266 = vector.load %arg8[%c1056_326, %c128_327] : memref<1264x256xbf16, #tpu.memory_space<vmem>>, vector<32x128xbf16>
    tpu.vector_store %arg8[%c1056_326, %c128_327], %265 {strides = array<i32>} : memref<1264x256xbf16, #tpu.memory_space<vmem>>, vector<32x128xbf16>,
    %c1_328 = arith.constant 1 : index
    %c0_329 = arith.constant 0 : index
    %c34_330 = arith.constant 34 : index
    %267 = vector.load %arg6[%c1_328, %c0_329, %c34_330] : memref<2x32x166xbf16, #tpu.memory_space<vmem>>, vector<1x32x128xbf16>
    %268 = vector.shape_cast %267 : vector<1x32x128xbf16> to vector<32x128xbf16>
    %c1088_331 = arith.constant 1088 : index
    %c128_332 = arith.constant 128 : index
    %269 = vector.load %arg8[%c1088_331, %c128_332] : memref<1264x256xbf16, #tpu.memory_space<vmem>>, vector<32x128xbf16>
    tpu.vector_store %arg8[%c1088_331, %c128_332], %268 {strides = array<i32>} : memref<1264x256xbf16, #tpu.memory_space<vmem>>, vector<32x128xbf16>,
    %c1_333 = arith.constant 1 : index
    %c0_334 = arith.constant 0 : index
    %c35_335 = arith.constant 35 : index
    %270 = vector.load %arg6[%c1_333, %c0_334, %c35_335] : memref<2x32x166xbf16, #tpu.memory_space<vmem>>, vector<1x32x128xbf16>
    %271 = vector.shape_cast %270 : vector<1x32x128xbf16> to vector<32x128xbf16>
    %c1120_336 = arith.constant 1120 : index
    %c128_337 = arith.constant 128 : index
    %272 = vector.load %arg8[%c1120_336, %c128_337] : memref<1264x256xbf16, #tpu.memory_space<vmem>>, vector<32x128xbf16>
    tpu.vector_store %arg8[%c1120_336, %c128_337], %271 {strides = array<i32>} : memref<1264x256xbf16, #tpu.memory_space<vmem>>, vector<32x128xbf16>,
    %c1_338 = arith.constant 1 : index
    %c0_339 = arith.constant 0 : index
    %c36_340 = arith.constant 36 : index
    %273 = vector.load %arg6[%c1_338, %c0_339, %c36_340] : memref<2x32x166xbf16, #tpu.memory_space<vmem>>, vector<1x32x128xbf16>
    %274 = vector.shape_cast %273 : vector<1x32x128xbf16> to vector<32x128xbf16>
    %c1152_341 = arith.constant 1152 : index
    %c128_342 = arith.constant 128 : index
    %275 = vector.load %arg8[%c1152_341, %c128_342] : memref<1264x256xbf16, #tpu.memory_space<vmem>>, vector<32x128xbf16>
    tpu.vector_store %arg8[%c1152_341, %c128_342], %274 {strides = array<i32>} : memref<1264x256xbf16, #tpu.memory_space<vmem>>, vector<32x128xbf16>,
    %c1_343 = arith.constant 1 : index
    %c0_344 = arith.constant 0 : index
    %c37_345 = arith.constant 37 : index
    %276 = vector.load %arg6[%c1_343, %c0_344, %c37_345] : memref<2x32x166xbf16, #tpu.memory_space<vmem>>, vector<1x32x128xbf16>
    %277 = vector.shape_cast %276 : vector<1x32x128xbf16> to vector<32x128xbf16>
    %c1184_346 = arith.constant 1184 : index
    %c128_347 = arith.constant 128 : index
    %278 = vector.load %arg8[%c1184_346, %c128_347] : memref<1264x256xbf16, #tpu.memory_space<vmem>>, vector<32x128xbf16>
    tpu.vector_store %arg8[%c1184_346, %c128_347], %277 {strides = array<i32>} : memref<1264x256xbf16, #tpu.memory_space<vmem>>, vector<32x128xbf16>,
    %c1_348 = arith.constant 1 : index
    %c0_349 = arith.constant 0 : index
    %c38_350 = arith.constant 38 : index
    %279 = vector.load %arg6[%c1_348, %c0_349, %c38_350] : memref<2x32x166xbf16, #tpu.memory_space<vmem>>, vector<1x32x128xbf16>
    %280 = vector.shape_cast %279 : vector<1x32x128xbf16> to vector<32x128xbf16>
    %c1216_351 = arith.constant 1216 : index
    %c128_352 = arith.constant 128 : index
    %281 = vector.load %arg8[%c1216_351, %c128_352] : memref<1264x256xbf16, #tpu.memory_space<vmem>>, vector<32x128xbf16>
    tpu.vector_store %arg8[%c1216_351, %c128_352], %280 {strides = array<i32>} : memref<1264x256xbf16, #tpu.memory_space<vmem>>, vector<32x128xbf16>,
    %282 = vector.extract_strided_slice %43 {offsets = [1, 0, 0], sizes = [1, 4, 128], strides = [1, 1, 1]} : vector<2x4x128xf32> to vector<1x4x128xf32>
    %283 = vector.shape_cast %282 : vector<1x4x128xf32> to vector<4x128xf32>
    %284 = arith.truncf %283 : vector<4x128xf32> to vector<4x128xbf16>
    %c1248_353 = arith.constant 1248 : index
    %c128_354 = arith.constant 128 : index
    %285 = vector.load %arg8[%c1248_353, %c128_354] : memref<1264x256xbf16, #tpu.memory_space<vmem>>, vector<4x128xbf16>
    tpu.vector_store %arg8[%c1248_353, %c128_354], %284 {strides = array<i32>} : memref<1264x256xbf16, #tpu.memory_space<vmem>>, vector<4x128xbf16>,
    %cst_355 = arith.constant 0.000000e+00 : bf16
    %286 = vector.broadcast %cst_355 : bf16 to vector<12x256xbf16>
    %c1252 = arith.constant 1252 : index
    %c0_356 = arith.constant 0 : index
    %287 = vector.load %arg8[%c1252, %c0_356] : memref<1264x256xbf16, #tpu.memory_space<vmem>>, vector<12x256xbf16>
    tpu.vector_store %arg8[%c1252, %c0_356], %286 {strides = array<i32>} : memref<1264x256xbf16, #tpu.memory_space<vmem>>, vector<12x256xbf16>,
    %c0_357 = arith.constant 0 : index
    %c0_358 = arith.constant 0 : index
    %288 = vector.load %arg3[%c0_357, %c0_358] : memref<128x1264xbf16, #tpu.memory_space<vmem>>, vector<128x1264xbf16>
    %c0_359 = arith.constant 0 : index
    %c0_360 = arith.constant 0 : index
    %289 = vector.load %arg8[%c0_359, %c0_360] : memref<1264x256xbf16, #tpu.memory_space<vmem>>, vector<1264x256xbf16>
    %cst_361 = arith.constant dense<0.000000e+00> : vector<128x256xf32>
    %290 = tpu.matmul %288, %289, %cst_361 {dimension_numbers = #tpu.dot_dimension_numbers<[1], [0], [0], [1], [0, 0, 1, 1], [], []>} : vector<128x1264xbf16>, vector<1264x256xbf16>, vector<128x256xf32> -> vector<128x256xf32>
    %cst_362 = arith.constant dense<0.000000e+00> : vector<128xf32>
    %291 = vector.multi_reduction <add>, %290, %cst_362 [1] : vector<128x256xf32> to vector<128xf32>
    %292 = vector.shape_cast %291 : vector<128xf32> to vector<1x1x128xf32>
    %c0_363 = arith.constant 0 : index
    %c0_364 = arith.constant 0 : index
    %c0_365 = arith.constant 0 : index
    %293 = vector.load %arg5[%c0_363, %c0_364, %c0_365] : memref<1x2x128xf32, #tpu.memory_space<vmem>>, vector<1x1x128xf32>
    tpu.vector_store %arg5[%c0_363, %c0_364, %c0_365], %292 {strides = array<i32>} : memref<1x2x128xf32, #tpu.memory_space<vmem>>, vector<1x1x128xf32>,
    %294 = arith.mulf %290, %290 : vector<128x256xf32>
    %cst_366 = arith.constant dense<0.000000e+00> : vector<128xf32>
    %295 = vector.multi_reduction <add>, %294, %cst_366 [1] : vector<128x256xf32> to vector<128xf32>
    %296 = vector.shape_cast %295 : vector<128xf32> to vector<1x1x128xf32>
    %c0_367 = arith.constant 0 : index
    %c1_368 = arith.constant 1 : index
    %c0_369 = arith.constant 0 : index
    %297 = vector.load %arg5[%c0_367, %c1_368, %c0_369] : memref<1x2x128xf32, #tpu.memory_space<vmem>>, vector<1x1x128xf32>
    tpu.vector_store %arg5[%c0_367, %c1_368, %c0_369], %296 {strides = array<i32>} : memref<1x2x128xf32, #tpu.memory_space<vmem>>, vector<1x1x128xf32>,
    %298 = vector.extract_strided_slice %290 {offsets = [0, 0], sizes = [128, 128], strides = [1, 1]} : vector<128x256xf32> to vector<128x128xf32>
    %c0_370 = arith.constant 0 : index
    %c0_371 = arith.constant 0 : index
    %c0_372 = arith.constant 0 : index
    %299 = vector.load %arg4[%c0_370, %c0_371, %c0_372] : memref<2x128x128xf32, #tpu.memory_space<vmem>>, vector<1x128x128xf32>
    %300 = vector.shape_cast %299 : vector<1x128x128xf32> to vector<128x128xf32>
    %301 = vector.shape_cast %298 : vector<128x128xf32> to vector<1x128x128xf32>
    tpu.vector_store %arg4[%c0_370, %c0_371, %c0_372], %301 {strides = array<i32>} : memref<2x128x128xf32, #tpu.memory_space<vmem>>, vector<1x128x128xf32>,
    %302 = vector.extract_strided_slice %290 {offsets = [0, 128], sizes = [128, 128], strides = [1, 1]} : vector<128x256xf32> to vector<128x128xf32>
    %c1_373 = arith.constant 1 : index
    %c0_374 = arith.constant 0 : index
    %c0_375 = arith.constant 0 : index
    %303 = vector.load %arg4[%c1_373, %c0_374, %c0_375] : memref<2x128x128xf32, #tpu.memory_space<vmem>>, vector<1x128x128xf32>
    %304 = vector.shape_cast %303 : vector<1x128x128xf32> to vector<128x128xf32>
    %305 = vector.shape_cast %302 : vector<128x128xf32> to vector<1x128x128xf32>
    tpu.vector_store %arg4[%c1_373, %c0_374, %c0_375], %305 {strides = array<i32>} : memref<2x128x128xf32, #tpu.memory_space<vmem>>, vector<1x128x128xf32>,
    return
  }
  func.func @transform_0(%arg0: i32) -> (i32, i32, i32) {
    %c0_i32 = arith.constant 0 : i32
    %c0_i32_0 = arith.constant 0 : i32
    %c0_i32_1 = arith.constant 0 : i32
    return %arg0, %c0_i32, %c0_i32_0 : i32, i32, i32
  }
  func.func @transform_1(%arg0: i32) -> (i32, i32) {
    %c0_i32 = arith.constant 0 : i32
    %c0_i32_0 = arith.constant 0 : i32
    %c0_i32_1 = arith.constant 0 : i32
    return %c0_i32, %c0_i32_0 : i32, i32
  }
  func.func @transform_2(%arg0: i32) -> (i32, i32) {
    %c0_i32 = arith.constant 0 : i32
    %c0_i32_0 = arith.constant 0 : i32
    %c0_i32_1 = arith.constant 0 : i32
    return %c0_i32, %c0_i32_0 : i32, i32
  }
  func.func @transform_3(%arg0: i32) -> (i32, i32, i32) {
    %c0_i32 = arith.constant 0 : i32
    %c0_i32_0 = arith.constant 0 : i32
    %c0_i32_1 = arith.constant 0 : i32
    return %arg0, %c0_i32, %c0_i32_0 : i32, i32, i32
  }
  func.func @transform_4(%arg0: i32) -> (i32, i32, i32) {
    %c0_i32 = arith.constant 0 : i32
    %c0_i32_0 = arith.constant 0 : i32
    %c0_i32_1 = arith.constant 0 : i32
    return %arg0, %c0_i32, %c0_i32_0 : i32, i32, i32
  }
}

module attributes {stable_mosaic.version = 11 : i64} {
  func.func @_bn_relu_kernel(%arg0: i32, %arg1: memref<4x128x128xf32, #tpu.memory_space<vmem>>, %arg2: memref<128x1xf32, #tpu.memory_space<vmem>>, %arg3: memref<128x1xf32, #tpu.memory_space<vmem>>, %arg4: memref<4x128x128xf32, #tpu.memory_space<vmem>>) attributes {dimension_semantics = [#tpu.dimension_semantics<parallel>], iteration_bounds = array<i64: 1>, scalar_prefetch = 0 : i64, scratch_operands = 0 : i64, tpu.core_type = #tpu.core_type<tc>, window_params = [{transform_indices = @transform_0, window_bounds = array<i64: 4, 128, 128>}, {pipeline_mode = #tpu.pipeline_mode<synchronous>, transform_indices = @transform_1, window_bounds = array<i64: 128, 1>}, {pipeline_mode = #tpu.pipeline_mode<synchronous>, transform_indices = @transform_2, window_bounds = array<i64: 128, 1>}, {transform_indices = @transform_3, window_bounds = array<i64: 4, 128, 128>}]} {
    %c0 = arith.constant 0 : index
    %c0_0 = arith.constant 0 : index
    %c0_1 = arith.constant 0 : index
    %0 = vector.load %arg1[%c0, %c0_0, %c0_1] : memref<4x128x128xf32, #tpu.memory_space<vmem>>, vector<4x128x128xf32>
    %c0_2 = arith.constant 0 : index
    %c0_3 = arith.constant 0 : index
    %1 = vector.load %arg2[%c0_2, %c0_3] : memref<128x1xf32, #tpu.memory_space<vmem>>, vector<128x1xf32>
    %2 = vector.shape_cast %1 : vector<128x1xf32> to vector<1x128x1xf32>
    %3 = vector.broadcast %2 : vector<1x128x1xf32> to vector<4x128x128xf32>
    %4 = arith.mulf %0, %3 : vector<4x128x128xf32>
    %c0_4 = arith.constant 0 : index
    %c0_5 = arith.constant 0 : index
    %5 = vector.load %arg3[%c0_4, %c0_5] : memref<128x1xf32, #tpu.memory_space<vmem>>, vector<128x1xf32>
    %6 = vector.shape_cast %5 : vector<128x1xf32> to vector<1x128x1xf32>
    %7 = vector.broadcast %6 : vector<1x128x1xf32> to vector<4x128x128xf32>
    %8 = arith.addf %4, %7 : vector<4x128x128xf32>
    %cst = arith.constant 0.000000e+00 : f32
    %9 = vector.broadcast %cst : f32 to vector<4x128x128xf32>
    %10 = arith.maximumf %8, %9 : vector<4x128x128xf32>
    %c0_6 = arith.constant 0 : index
    %c0_7 = arith.constant 0 : index
    %c0_8 = arith.constant 0 : index
    %11 = vector.load %arg4[%c0_6, %c0_7, %c0_8] : memref<4x128x128xf32, #tpu.memory_space<vmem>>, vector<4x128x128xf32>
    tpu.vector_store %arg4[%c0_6, %c0_7, %c0_8], %10 {strides = array<i32>} : memref<4x128x128xf32, #tpu.memory_space<vmem>>, vector<4x128x128xf32>,
    return
  }
  func.func @transform_0(%arg0: i32) -> (i32, i32, i32) {
    %c0_i32 = arith.constant 0 : i32
    %c0_i32_0 = arith.constant 0 : i32
    %c0_i32_1 = arith.constant 0 : i32
    return %arg0, %c0_i32, %c0_i32_0 : i32, i32, i32
  }
  func.func @transform_1(%arg0: i32) -> (i32, i32) {
    %c0_i32 = arith.constant 0 : i32
    %c0_i32_0 = arith.constant 0 : i32
    %c0_i32_1 = arith.constant 0 : i32
    return %c0_i32, %c0_i32_0 : i32, i32
  }
  func.func @transform_2(%arg0: i32) -> (i32, i32) {
    %c0_i32 = arith.constant 0 : i32
    %c0_i32_0 = arith.constant 0 : i32
    %c0_i32_1 = arith.constant 0 : i32
    return %c0_i32, %c0_i32_0 : i32, i32
  }
  func.func @transform_3(%arg0: i32) -> (i32, i32, i32) {
    %c0_i32 = arith.constant 0 : i32
    %c0_i32_0 = arith.constant 0 : i32
    %c0_i32_1 = arith.constant 0 : i32
    return %arg0, %c0_i32, %c0_i32_0 : i32, i32, i32
  }
}

</mosaic_0001>

<llo_original>
// kernel: inception_module_forward.3
$region0: #{inception_module_forward.3}
  #allocation0 [shape = 'u32[]', space=smem, size = 0x4, offset = 0x4, fixed_abs, tag = 'smem constant byte address 0x4 - core index']
  #allocation1 [shape = 'u32[144,128]{1,0:T(1,128)}', space=vmem, size = 0x12000, scoped, tag = 'internal scratch']
  %s0 = inlined_call_operand.hbm [shape: f32[4,128,128], index: 0, kind: input, shape index: {}, may-alias: {0,3}]
  %s1 = inlined_call_operand.vmem [shape: f32[128,1], index: 1, kind: input, shape index: {}]
  %s2 = inlined_call_operand.vmem [shape: f32[128,1], index: 2, kind: input, shape index: {}]
  %s3 = inlined_call_operand.hbm [shape: f32[4,128,128], index: 3, kind: output, shape index: {}, may-alias: {0,3}]
  %s4 = sld [smem:[#allocation0]]
  $region26: #{inception_module_forward.3} parent=0
    _
  %s6 = ssub.s32 1, %s4
  %s7 = scalar_select 0, %s6, %s4
  $region1: #{inception_module_forward.3} parent=0
    #allocation2 [shape = 'u8[262144]{0}', space=vmem, size = 0x40000, scoped, tag = 'input window, operand 0, single buffered']
    #allocation3 [shape = 's32[1]{0}', space=sflag, size = 0x4, scoped, tag = 'scoped memory for inception_module_forward.3']
    #allocation4 [shape = 's32[1]{0}', space=sflag, size = 0x4, scoped, tag = 'scoped memory for inception_module_forward.3']
    #allocation5 [shape = 'u8[262144]{0}', space=vmem, size = 0x40000, scoped, tag = 'output window, operand 0, single buffered']
    %8 = vsyncpa [#allocation3], 0
    %9 = vsyncpa [#allocation4], 0
    // Predicated region
    $region2: #{inception_module_forward.3} parent=1 // pred_check
      _
    $region3: #{inception_module_forward.3} parent=1 // pred_check_branch
      %11 = sbr.rel (0) target = $region5
    $region4: #{inception_module_forward.3} parent=1 // pred_region
      %s13 = ssub.s32 8192, 8192
      %14 = vsyncadd [#allocation3], %s13
      %s15 = sshll.u32 [#allocation2], 4
      %s16 = int_to_ptr.vmem [resolvable:$true] %s15
      %21 = dma.hbm_to_vmem [thread:$0]  %s0, 8192, %s16, [#allocation3], 128, 128, 8
    $region5: #{inception_module_forward.3} parent=1 // pred_fallthru
      _
    // Predicated region
    $region6: #{inception_module_forward.3} parent=1 // pred_check
      _
    $region7: #{inception_module_forward.3} parent=1 // pred_check_branch
      %23 = sbr.rel (0) target = $region9
    $region8: #{inception_module_forward.3} parent=1 // pred_region
      _
    $region9: #{inception_module_forward.3} parent=1 // pred_fallthru
      _
    // Predicated region
    $region10: #{inception_module_forward.3} parent=1 // pred_check
      _
    $region11: #{inception_module_forward.3} parent=1 // pred_check_branch
      %25 = sbr.rel (0) target = $region13
    $region12: #{inception_module_forward.3} parent=1 // pred_region
      _
    $region13: #{inception_module_forward.3} parent=1 // pred_fallthru
      _
    // Predicated region
    $region14: #{inception_module_forward.3} parent=1 // pred_check
      _
    $region15: #{inception_module_forward.3} parent=1 // pred_check_branch
      %27 = sbr.rel (0) target = $region17
    $region16: #{inception_module_forward.3} parent=1 // pred_region
      %28 = dma.done [#allocation3], 8192
    $region17: #{inception_module_forward.3} parent=1 // pred_fallthru
      _
    %v29 = vld [vmem:[#allocation2] sm:$0xff]
    %v30 = vld [vmem:[#allocation2 + $0x8] sm:$0xff]
    %v31 = vld [vmem:[#allocation2 + $0x10] sm:$0xff]
    %v32 = vld [vmem:[#allocation2 + $0x18] sm:$0xff]
    %v33 = vld [vmem:[#allocation2 + $0x20] sm:$0xff]
    %v34 = vld [vmem:[#allocation2 + $0x28] sm:$0xff]
    %v35 = vld [vmem:[#allocation2 + $0x30] sm:$0xff]
    %v36 = vld [vmem:[#allocation2 + $0x38] sm:$0xff]
    %v37 = vld [vmem:[#allocation2 + $0x40] sm:$0xff]
    %v38 = vld [vmem:[#allocation2 + $0x48] sm:$0xff]
    %v39 = vld [vmem:[#allocation2 + $0x50] sm:$0xff]
    %v40 = vld [vmem:[#allocation2 + $0x58] sm:$0xff]
    %v41 = vld [vmem:[#allocation2 + $0x60] sm:$0xff]
    %v42 = vld [vmem:[#allocation2 + $0x68] sm:$0xff]
    %v43 = vld [vmem:[#allocation2 + $0x70] sm:$0xff]
    %v44 = vld [vmem:[#allocation2 + $0x78] sm:$0xff]
    %v45 = vld [vmem:[#allocation2 + $0x80] sm:$0xff]
    %v46 = vld [vmem:[#allocation2 + $0x88] sm:$0xff]
    %v47 = vld [vmem:[#allocation2 + $0x90] sm:$0xff]
    %v48 = vld [vmem:[#allocation2 + $0x98] sm:$0xff]
    %v49 = vld [vmem:[#allocation2 + $0xa0] sm:$0xff]
    %v50 = vld [vmem:[#allocation2 + $0xa8] sm:$0xff]
    %v51 = vld [vmem:[#allocation2 + $0xb0] sm:$0xff]
    %v52 = vld [vmem:[#allocation2 + $0xb8] sm:$0xff]
    %v53 = vld [vmem:[#allocation2 + $0xc0] sm:$0xff]
    %v54 = vld [vmem:[#allocation2 + $0xc8] sm:$0xff]
    %v55 = vld [vmem:[#allocation2 + $0xd0] sm:$0xff]
    %v56 = vld [vmem:[#allocation2 + $0xd8] sm:$0xff]
    %v57 = vld [vmem:[#allocation2 + $0xe0] sm:$0xff]
    %v58 = vld [vmem:[#allocation2 + $0xe8] sm:$0xff]
    %v59 = vld [vmem:[#allocation2 + $0xf0] sm:$0xff]
    %v60 = vld [vmem:[#allocation2 + $0xf8] sm:$0xff]
    %v61 = vld [vmem:[#allocation2 + $0x100] sm:$0xff]
    %v62 = vld [vmem:[#allocation2 + $0x108] sm:$0xff]
    %v63 = vld [vmem:[#allocation2 + $0x110] sm:$0xff]
    %v64 = vld [vmem:[#allocation2 + $0x118] sm:$0xff]
    %v65 = vld [vmem:[#allocation2 + $0x120] sm:$0xff]
    %v66 = vld [vmem:[#allocation2 + $0x128] sm:$0xff]
    %v67 = vld [vmem:[#allocation2 + $0x130] sm:$0xff]
    %v68 = vld [vmem:[#allocation2 + $0x138] sm:$0xff]
    %v69 = vld [vmem:[#allocation2 + $0x140] sm:$0xff]
    %v70 = vld [vmem:[#allocation2 + $0x148] sm:$0xff]
    %v71 = vld [vmem:[#allocation2 + $0x150] sm:$0xff]
    %v72 = vld [vmem:[#allocation2 + $0x158] sm:$0xff]
    %v73 = vld [vmem:[#allocation2 + $0x160] sm:$0xff]
    %v74 = vld [vmem:[#allocation2 + $0x168] sm:$0xff]
    %v75 = vld [vmem:[#allocation2 + $0x170] sm:$0xff]
    %v76 = vld [vmem:[#allocation2 + $0x178] sm:$0xff]
    %v77 = vld [vmem:[#allocation2 + $0x180] sm:$0xff]
    %v78 = vld [vmem:[#allocation2 + $0x188] sm:$0xff]
    %v79 = vld [vmem:[#allocation2 + $0x190] sm:$0xff]
    %v80 = vld [vmem:[#allocation2 + $0x198] sm:$0xff]
    %v81 = vld [vmem:[#allocation2 + $0x1a0] sm:$0xff]
    %v82 = vld [vmem:[#allocation2 + $0x1a8] sm:$0xff]
    %v83 = vld [vmem:[#allocation2 + $0x1b0] sm:$0xff]
    %v84 = vld [vmem:[#allocation2 + $0x1b8] sm:$0xff]
    %v85 = vld [vmem:[#allocation2 + $0x1c0] sm:$0xff]
    %v86 = vld [vmem:[#allocation2 + $0x1c8] sm:$0xff]
    %v87 = vld [vmem:[#allocation2 + $0x1d0] sm:$0xff]
    %v88 = vld [vmem:[#allocation2 + $0x1d8] sm:$0xff]
    %v89 = vld [vmem:[#allocation2 + $0x1e0] sm:$0xff]
    %v90 = vld [vmem:[#allocation2 + $0x1e8] sm:$0xff]
    %v91 = vld [vmem:[#allocation2 + $0x1f0] sm:$0xff]
    %v92 = vld [vmem:[#allocation2 + $0x1f8] sm:$0xff]
    %v93 = vld [vmem:[%s1] sm:$0xff]
    %v94 = vld [vmem:[%s1 + $0x8] sm:$0xff]
    %v95 = vld [vmem:[%s1 + $0x10] sm:$0xff]
    %v96 = vld [vmem:[%s1 + $0x18] sm:$0xff]
    %v97 = vld [vmem:[%s1 + $0x20] sm:$0xff]
    %v98 = vld [vmem:[%s1 + $0x28] sm:$0xff]
    %v99 = vld [vmem:[%s1 + $0x30] sm:$0xff]
    %v100 = vld [vmem:[%s1 + $0x38] sm:$0xff]
    %v101 = vld [vmem:[%s1 + $0x40] sm:$0xff]
    %v102 = vld [vmem:[%s1 + $0x48] sm:$0xff]
    %v103 = vld [vmem:[%s1 + $0x50] sm:$0xff]
    %v104 = vld [vmem:[%s1 + $0x58] sm:$0xff]
    %v105 = vld [vmem:[%s1 + $0x60] sm:$0xff]
    %v106 = vld [vmem:[%s1 + $0x68] sm:$0xff]
    %v107 = vld [vmem:[%s1 + $0x70] sm:$0xff]
    %v108 = vld [vmem:[%s1 + $0x78] sm:$0xff]
    %110 = vset.pattern.permute.xlu0 0
    %111 = vperm.xlu0 %110, %v93
    %v112 = vpop.permute.xlu0 %111
    %115 = vset.pattern.permute.xlu0 0
    %116 = vperm.xlu0 %115, %v94
    %v117 = vpop.permute.xlu0 %116
    %120 = vset.pattern.permute.xlu0 0
    %121 = vperm.xlu0 %120, %v95
    %v122 = vpop.permute.xlu0 %121
    %125 = vset.pattern.permute.xlu0 0
    %126 = vperm.xlu0 %125, %v96
    %v127 = vpop.permute.xlu0 %126
    %130 = vset.pattern.permute.xlu0 0
    %131 = vperm.xlu0 %130, %v97
    %v132 = vpop.permute.xlu0 %131
    %135 = vset.pattern.permute.xlu0 0
    %136 = vperm.xlu0 %135, %v98
    %v137 = vpop.permute.xlu0 %136
    %140 = vset.pattern.permute.xlu0 0
    %141 = vperm.xlu0 %140, %v99
    %v142 = vpop.permute.xlu0 %141
    %145 = vset.pattern.permute.xlu0 0
    %146 = vperm.xlu0 %145, %v100
    %v147 = vpop.permute.xlu0 %146
    %150 = vset.pattern.permute.xlu0 0
    %151 = vperm.xlu0 %150, %v101
    %v152 = vpop.permute.xlu0 %151
    %155 = vset.pattern.permute.xlu0 0
    %156 = vperm.xlu0 %155, %v102
    %v157 = vpop.permute.xlu0 %156
    %160 = vset.pattern.permute.xlu0 0
    %161 = vperm.xlu0 %160, %v103
    %v162 = vpop.permute.xlu0 %161
    %165 = vset.pattern.permute.xlu0 0
    %166 = vperm.xlu0 %165, %v104
    %v167 = vpop.permute.xlu0 %166
    %170 = vset.pattern.permute.xlu0 0
    %171 = vperm.xlu0 %170, %v105
    %v172 = vpop.permute.xlu0 %171
    %175 = vset.pattern.permute.xlu0 0
    %176 = vperm.xlu0 %175, %v106
    %v177 = vpop.permute.xlu0 %176
    %180 = vset.pattern.permute.xlu0 0
    %181 = vperm.xlu0 %180, %v107
    %v182 = vpop.permute.xlu0 %181
    %185 = vset.pattern.permute.xlu0 0
    %186 = vperm.xlu0 %185, %v108
    %v187 = vpop.permute.xlu0 %186
    %v189 = vmul.f32 %v29, %v112
    %v190 = vmul.f32 %v30, %v117
    %v191 = vmul.f32 %v31, %v122
    %v192 = vmul.f32 %v32, %v127
    %v193 = vmul.f32 %v33, %v132
    %v194 = vmul.f32 %v34, %v137
    %v195 = vmul.f32 %v35, %v142
    %v196 = vmul.f32 %v36, %v147
    %v197 = vmul.f32 %v37, %v152
    %v198 = vmul.f32 %v38, %v157
    %v199 = vmul.f32 %v39, %v162
    %v200 = vmul.f32 %v40, %v167
    %v201 = vmul.f32 %v41, %v172
    %v202 = vmul.f32 %v42, %v177
    %v203 = vmul.f32 %v43, %v182
    %v204 = vmul.f32 %v44, %v187
    %v205 = vmul.f32 %v45, %v112
    %v206 = vmul.f32 %v46, %v117
    %v207 = vmul.f32 %v47, %v122
    %v208 = vmul.f32 %v48, %v127
    %v209 = vmul.f32 %v49, %v132
    %v210 = vmul.f32 %v50, %v137
    %v211 = vmul.f32 %v51, %v142
    %v212 = vmul.f32 %v52, %v147
    %v213 = vmul.f32 %v53, %v152
    %v214 = vmul.f32 %v54, %v157
    %v215 = vmul.f32 %v55, %v162
    %v216 = vmul.f32 %v56, %v167
    %v217 = vmul.f32 %v57, %v172
    %v218 = vmul.f32 %v58, %v177
    %v219 = vmul.f32 %v59, %v182
    %v220 = vmul.f32 %v60, %v187
    %v221 = vmul.f32 %v61, %v112
    %v222 = vmul.f32 %v62, %v117
    %v223 = vmul.f32 %v63, %v122
    %v224 = vmul.f32 %v64, %v127
    %v225 = vmul.f32 %v65, %v132
    %v226 = vmul.f32 %v66, %v137
    %v227 = vmul.f32 %v67, %v142
    %v228 = vmul.f32 %v68, %v147
    %v229 = vmul.f32 %v69, %v152
    %v230 = vmul.f32 %v70, %v157
    %v231 = vmul.f32 %v71, %v162
    %v232 = vmul.f32 %v72, %v167
    %v233 = vmul.f32 %v73, %v172
    %v234 = vmul.f32 %v74, %v177
    %v235 = vmul.f32 %v75, %v182
    %v236 = vmul.f32 %v76, %v187
    %v237 = vmul.f32 %v77, %v112
    %v238 = vmul.f32 %v78, %v117
    %v239 = vmul.f32 %v79, %v122
    %v240 = vmul.f32 %v80, %v127
    %v241 = vmul.f32 %v81, %v132
    %v242 = vmul.f32 %v82, %v137
    %v243 = vmul.f32 %v83, %v142
    %v244 = vmul.f32 %v84, %v147
    %v245 = vmul.f32 %v85, %v152
    %v246 = vmul.f32 %v86, %v157
    %v247 = vmul.f32 %v87, %v162
    %v248 = vmul.f32 %v88, %v167
    %v249 = vmul.f32 %v89, %v172
    %v250 = vmul.f32 %v90, %v177
    %v251 = vmul.f32 %v91, %v182
    %v252 = vmul.f32 %v92, %v187
    %v253 = vld [vmem:[%s2] sm:$0xff]
    %v254 = vld [vmem:[%s2 + $0x8] sm:$0xff]
    %v255 = vld [vmem:[%s2 + $0x10] sm:$0xff]
    %v256 = vld [vmem:[%s2 + $0x18] sm:$0xff]
    %v257 = vld [vmem:[%s2 + $0x20] sm:$0xff]
    %v258 = vld [vmem:[%s2 + $0x28] sm:$0xff]
    %v259 = vld [vmem:[%s2 + $0x30] sm:$0xff]
    %v260 = vld [vmem:[%s2 + $0x38] sm:$0xff]
    %v261 = vld [vmem:[%s2 + $0x40] sm:$0xff]
    %v262 = vld [vmem:[%s2 + $0x48] sm:$0xff]
    %v263 = vld [vmem:[%s2 + $0x50] sm:$0xff]
    %v264 = vld [vmem:[%s2 + $0x58] sm:$0xff]
    %v265 = vld [vmem:[%s2 + $0x60] sm:$0xff]
    %v266 = vld [vmem:[%s2 + $0x68] sm:$0xff]
    %v267 = vld [vmem:[%s2 + $0x70] sm:$0xff]
    %v268 = vld [vmem:[%s2 + $0x78] sm:$0xff]
    %270 = vset.pattern.permute.xlu0 0
    %271 = vperm.xlu0 %270, %v253
    %v272 = vpop.permute.xlu0 %271
    %275 = vset.pattern.permute.xlu0 0
    %276 = vperm.xlu0 %275, %v254
    %v277 = vpop.permute.xlu0 %276
    %280 = vset.pattern.permute.xlu0 0
    %281 = vperm.xlu0 %280, %v255
    %v282 = vpop.permute.xlu0 %281
    %285 = vset.pattern.permute.xlu0 0
    %286 = vperm.xlu0 %285, %v256
    %v287 = vpop.permute.xlu0 %286
    %290 = vset.pattern.permute.xlu0 0
    %291 = vperm.xlu0 %290, %v257
    %v292 = vpop.permute.xlu0 %291
    %295 = vset.pattern.permute.xlu0 0
    %296 = vperm.xlu0 %295, %v258
    %v297 = vpop.permute.xlu0 %296
    %300 = vset.pattern.permute.xlu0 0
    %301 = vperm.xlu0 %300, %v259
    %v302 = vpop.permute.xlu0 %301
    %305 = vset.pattern.permute.xlu0 0
    %306 = vperm.xlu0 %305, %v260
    %v307 = vpop.permute.xlu0 %306
    %310 = vset.pattern.permute.xlu0 0
    %311 = vperm.xlu0 %310, %v261
    %v312 = vpop.permute.xlu0 %311
    %315 = vset.pattern.permute.xlu0 0
    %316 = vperm.xlu0 %315, %v262
    %v317 = vpop.permute.xlu0 %316
    %320 = vset.pattern.permute.xlu0 0
    %321 = vperm.xlu0 %320, %v263
    %v322 = vpop.permute.xlu0 %321
    %325 = vset.pattern.permute.xlu0 0
    %326 = vperm.xlu0 %325, %v264
    %v327 = vpop.permute.xlu0 %326
    %330 = vset.pattern.permute.xlu0 0
    %331 = vperm.xlu0 %330, %v265
    %v332 = vpop.permute.xlu0 %331
    %335 = vset.pattern.permute.xlu0 0
    %336 = vperm.xlu0 %335, %v266
    %v337 = vpop.permute.xlu0 %336
    %340 = vset.pattern.permute.xlu0 0
    %341 = vperm.xlu0 %340, %v267
    %v342 = vpop.permute.xlu0 %341
    %345 = vset.pattern.permute.xlu0 0
    %346 = vperm.xlu0 %345, %v268
    %v347 = vpop.permute.xlu0 %346
    %v349 = vadd.f32 %v189, %v272
    %v350 = vadd.f32 %v190, %v277
    %v351 = vadd.f32 %v191, %v282
    %v352 = vadd.f32 %v192, %v287
    %v353 = vadd.f32 %v193, %v292
    %v354 = vadd.f32 %v194, %v297
    %v355 = vadd.f32 %v195, %v302
    %v356 = vadd.f32 %v196, %v307
    %v357 = vadd.f32 %v197, %v312
    %v358 = vadd.f32 %v198, %v317
    %v359 = vadd.f32 %v199, %v322
    %v360 = vadd.f32 %v200, %v327
    %v361 = vadd.f32 %v201, %v332
    %v362 = vadd.f32 %v202, %v337
    %v363 = vadd.f32 %v203, %v342
    %v364 = vadd.f32 %v204, %v347
    %v365 = vadd.f32 %v205, %v272
    %v366 = vadd.f32 %v206, %v277
    %v367 = vadd.f32 %v207, %v282
    %v368 = vadd.f32 %v208, %v287
    %v369 = vadd.f32 %v209, %v292
    %v370 = vadd.f32 %v210, %v297
    %v371 = vadd.f32 %v211, %v302
    %v372 = vadd.f32 %v212, %v307
    %v373 = vadd.f32 %v213, %v312
    %v374 = vadd.f32 %v214, %v317
    %v375 = vadd.f32 %v215, %v322
    %v376 = vadd.f32 %v216, %v327
    %v377 = vadd.f32 %v217, %v332
    %v378 = vadd.f32 %v218, %v337
    %v379 = vadd.f32 %v219, %v342
    %v380 = vadd.f32 %v220, %v347
    %v381 = vadd.f32 %v221, %v272
    %v382 = vadd.f32 %v222, %v277
    %v383 = vadd.f32 %v223, %v282
    %v384 = vadd.f32 %v224, %v287
    %v385 = vadd.f32 %v225, %v292
    %v386 = vadd.f32 %v226, %v297
    %v387 = vadd.f32 %v227, %v302
    %v388 = vadd.f32 %v228, %v307
    %v389 = vadd.f32 %v229, %v312
    %v390 = vadd.f32 %v230, %v317
    %v391 = vadd.f32 %v231, %v322
    %v392 = vadd.f32 %v232, %v327
    %v393 = vadd.f32 %v233, %v332
    %v394 = vadd.f32 %v234, %v337
    %v395 = vadd.f32 %v235, %v342
    %v396 = vadd.f32 %v236, %v347
    %v397 = vadd.f32 %v237, %v272
    %v398 = vadd.f32 %v238, %v277
    %v399 = vadd.f32 %v239, %v282
    %v400 = vadd.f32 %v240, %v287
    %v401 = vadd.f32 %v241, %v292
    %v402 = vadd.f32 %v242, %v297
    %v403 = vadd.f32 %v243, %v302
    %v404 = vadd.f32 %v244, %v307
    %v405 = vadd.f32 %v245, %v312
    %v406 = vadd.f32 %v246, %v317
    %v407 = vadd.f32 %v247, %v322
    %v408 = vadd.f32 %v248, %v327
    %v409 = vadd.f32 %v249, %v332
    %v410 = vadd.f32 %v250, %v337
    %v411 = vadd.f32 %v251, %v342
    %v412 = vadd.f32 %v252, %v347
    %v413 = vmax.f32 %v349, 0.0
    %v414 = vmax.f32 %v350, 0.0
    %v415 = vmax.f32 %v351, 0.0
    %v416 = vmax.f32 %v352, 0.0
    %v417 = vmax.f32 %v353, 0.0
    %v418 = vmax.f32 %v354, 0.0
    %v419 = vmax.f32 %v355, 0.0
    %v420 = vmax.f32 %v356, 0.0
    %v421 = vmax.f32 %v357, 0.0
    %v422 = vmax.f32 %v358, 0.0
    %v423 = vmax.f32 %v359, 0.0
    %v424 = vmax.f32 %v360, 0.0
    %v425 = vmax.f32 %v361, 0.0
    %v426 = vmax.f32 %v362, 0.0
    %v427 = vmax.f32 %v363, 0.0
    %v428 = vmax.f32 %v364, 0.0
    %v429 = vmax.f32 %v365, 0.0
    %v430 = vmax.f32 %v366, 0.0
    %v431 = vmax.f32 %v367, 0.0
    %v432 = vmax.f32 %v368, 0.0
    %v433 = vmax.f32 %v369, 0.0
    %v434 = vmax.f32 %v370, 0.0
    %v435 = vmax.f32 %v371, 0.0
    %v436 = vmax.f32 %v372, 0.0
    %v437 = vmax.f32 %v373, 0.0
    %v438 = vmax.f32 %v374, 0.0
    %v439 = vmax.f32 %v375, 0.0
    %v440 = vmax.f32 %v376, 0.0
    %v441 = vmax.f32 %v377, 0.0
    %v442 = vmax.f32 %v378, 0.0
    %v443 = vmax.f32 %v379, 0.0
    %v444 = vmax.f32 %v380, 0.0
    %v445 = vmax.f32 %v381, 0.0
    %v446 = vmax.f32 %v382, 0.0
    %v447 = vmax.f32 %v383, 0.0
    %v448 = vmax.f32 %v384, 0.0
    %v449 = vmax.f32 %v385, 0.0
    %v450 = vmax.f32 %v386, 0.0
    %v451 = vmax.f32 %v387, 0.0
    %v452 = vmax.f32 %v388, 0.0
    %v453 = vmax.f32 %v389, 0.0
    %v454 = vmax.f32 %v390, 0.0
    %v455 = vmax.f32 %v391, 0.0
    %v456 = vmax.f32 %v392, 0.0
    %v457 = vmax.f32 %v393, 0.0
    %v458 = vmax.f32 %v394, 0.0
    %v459 = vmax.f32 %v395, 0.0
    %v460 = vmax.f32 %v396, 0.0
    %v461 = vmax.f32 %v397, 0.0
    %v462 = vmax.f32 %v398, 0.0
    %v463 = vmax.f32 %v399, 0.0
    %v464 = vmax.f32 %v400, 0.0
    %v465 = vmax.f32 %v401, 0.0
    %v466 = vmax.f32 %v402, 0.0
    %v467 = vmax.f32 %v403, 0.0
    %v468 = vmax.f32 %v404, 0.0
    %v469 = vmax.f32 %v405, 0.0
    %v470 = vmax.f32 %v406, 0.0
    %v471 = vmax.f32 %v407, 0.0
    %v472 = vmax.f32 %v408, 0.0
    %v473 = vmax.f32 %v409, 0.0
    %v474 = vmax.f32 %v410, 0.0
    %v475 = vmax.f32 %v411, 0.0
    %v476 = vmax.f32 %v412, 0.0
    %477 = vst [vmem:[#allocation5] sm:$0xff] %v413
    %478 = vst [vmem:[#allocation5 + $0x8] sm:$0xff] %v414
    %479 = vst [vmem:[#allocation5 + $0x10] sm:$0xff] %v415
    %480 = vst [vmem:[#allocation5 + $0x18] sm:$0xff] %v416
    %481 = vst [vmem:[#allocation5 + $0x20] sm:$0xff] %v417
    %482 = vst [vmem:[#allocation5 + $0x28] sm:$0xff] %v418
    %483 = vst [vmem:[#allocation5 + $0x30] sm:$0xff] %v419
    %484 = vst [vmem:[#allocation5 + $0x38] sm:$0xff] %v420
    %485 = vst [vmem:[#allocation5 + $0x40] sm:$0xff] %v421
    %486 = vst [vmem:[#allocation5 + $0x48] sm:$0xff] %v422
    %487 = vst [vmem:[#allocation5 + $0x50] sm:$0xff] %v423
    %488 = vst [vmem:[#allocation5 + $0x58] sm:$0xff] %v424
    %489 = vst [vmem:[#allocation5 + $0x60] sm:$0xff] %v425
    %490 = vst [vmem:[#allocation5 + $0x68] sm:$0xff] %v426
    %491 = vst [vmem:[#allocation5 + $0x70] sm:$0xff] %v427
    %492 = vst [vmem:[#allocation5 + $0x78] sm:$0xff] %v428
    %493 = vst [vmem:[#allocation5 + $0x80] sm:$0xff] %v429
    %494 = vst [vmem:[#allocation5 + $0x88] sm:$0xff] %v430
    %495 = vst [vmem:[#allocation5 + $0x90] sm:$0xff] %v431
    %496 = vst [vmem:[#allocation5 + $0x98] sm:$0xff] %v432
    %497 = vst [vmem:[#allocation5 + $0xa0] sm:$0xff] %v433
    %498 = vst [vmem:[#allocation5 + $0xa8] sm:$0xff] %v434
    %499 = vst [vmem:[#allocation5 + $0xb0] sm:$0xff] %v435
    %500 = vst [vmem:[#allocation5 + $0xb8] sm:$0xff] %v436
    %501 = vst [vmem:[#allocation5 + $0xc0] sm:$0xff] %v437
    %502 = vst [vmem:[#allocation5 + $0xc8] sm:$0xff] %v438
    %503 = vst [vmem:[#allocation5 + $0xd0] sm:$0xff] %v439
    %504 = vst [vmem:[#allocation5 + $0xd8] sm:$0xff] %v440
    %505 = vst [vmem:[#allocation5 + $0xe0] sm:$0xff] %v441
    %506 = vst [vmem:[#allocation5 + $0xe8] sm:$0xff] %v442
    %507 = vst [vmem:[#allocation5 + $0xf0] sm:$0xff] %v443
    %508 = vst [vmem:[#allocation5 + $0xf8] sm:$0xff] %v444
    %509 = vst [vmem:[#allocation5 + $0x100] sm:$0xff] %v445
    %510 = vst [vmem:[#allocation5 + $0x108] sm:$0xff] %v446
    %511 = vst [vmem:[#allocation5 + $0x110] sm:$0xff] %v447
    %512 = vst [vmem:[#allocation5 + $0x118] sm:$0xff] %v448
    %513 = vst [vmem:[#allocation5 + $0x120] sm:$0xff] %v449
    %514 = vst [vmem:[#allocation5 + $0x128] sm:$0xff] %v450
    %515 = vst [vmem:[#allocation5 + $0x130] sm:$0xff] %v451
    %516 = vst [vmem:[#allocation5 + $0x138] sm:$0xff] %v452
    %517 = vst [vmem:[#allocation5 + $0x140] sm:$0xff] %v453
    %518 = vst [vmem:[#allocation5 + $0x148] sm:$0xff] %v454
    %519 = vst [vmem:[#allocation5 + $0x150] sm:$0xff] %v455
    %520 = vst [vmem:[#allocation5 + $0x158] sm:$0xff] %v456
    %521 = vst [vmem:[#allocation5 + $0x160] sm:$0xff] %v457
    %522 = vst [vmem:[#allocation5 + $0x168] sm:$0xff] %v458
    %523 = vst [vmem:[#allocation5 + $0x170] sm:$0xff] %v459
    %524 = vst [vmem:[#allocation5 + $0x178] sm:$0xff] %v460
    %525 = vst [vmem:[#allocation5 + $0x180] sm:$0xff] %v461
    %526 = vst [vmem:[#allocation5 + $0x188] sm:$0xff] %v462
    %527 = vst [vmem:[#allocation5 + $0x190] sm:$0xff] %v463
    %528 = vst [vmem:[#allocation5 + $0x198] sm:$0xff] %v464
    %529 = vst [vmem:[#allocation5 + $0x1a0] sm:$0xff] %v465
    %530 = vst [vmem:[#allocation5 + $0x1a8] sm:$0xff] %v466
    %531 = vst [vmem:[#allocation5 + $0x1b0] sm:$0xff] %v467
    %532 = vst [vmem:[#allocation5 + $0x1b8] sm:$0xff] %v468
    %533 = vst [vmem:[#allocation5 + $0x1c0] sm:$0xff] %v469
    %534 = vst [vmem:[#allocation5 + $0x1c8] sm:$0xff] %v470
    %535 = vst [vmem:[#allocation5 + $0x1d0] sm:$0xff] %v471
    %536 = vst [vmem:[#allocation5 + $0x1d8] sm:$0xff] %v472
    %537 = vst [vmem:[#allocation5 + $0x1e0] sm:$0xff] %v473
    %538 = vst [vmem:[#allocation5 + $0x1e8] sm:$0xff] %v474
    %539 = vst [vmem:[#allocation5 + $0x1f0] sm:$0xff] %v475
    %540 = vst [vmem:[#allocation5 + $0x1f8] sm:$0xff] %v476
    // Predicated region
    $region18: #{inception_module_forward.3} parent=1 // pred_check
      _
    $region19: #{inception_module_forward.3} parent=1 // pred_check_branch
      %542 = sbr.rel (0) target = $region21
    $region20: #{inception_module_forward.3} parent=1 // pred_region
      %s544 = ssub.s32 8192, 8192
      %545 = vsyncadd [#allocation4], %s544
      %s546 = sshll.u32 [#allocation5], 4
      %s547 = int_to_ptr.vmem [resolvable:$true] %s546
      %552 = dma.vmem_to_hbm [thread:$0]  %s547, 8192, %s3, [#allocation4], 128, 128, 8
    $region21: #{inception_module_forward.3} parent=1 // pred_fallthru
      _
    // Predicated region
    $region22: #{inception_module_forward.3} parent=1 // pred_check
      _
    $region23: #{inception_module_forward.3} parent=1 // pred_check_branch
      %554 = sbr.rel (0) target = $region25
    $region24: #{inception_module_forward.3} parent=1 // pred_region
      %555 = dma.done [#allocation4], 8192
    $region25: #{inception_module_forward.3} parent=1 // pred_fallthru
      _
    %556 = vsyncpa [#allocation3], 1
    %557 = vsyncpa [#allocation4], 1

// kernel: inception_module_forward.2
$region0: #{inception_module_forward.2}
  #allocation0 [shape = 'u32[]', space=smem, size = 0x4, offset = 0x4, fixed_abs, tag = 'smem constant byte address 0x4 - core index']
  #allocation1 [shape = 'u32[144,128]{1,0:T(1,128)}', space=vmem, size = 0x12000, scoped, tag = 'internal scratch']
  #allocation2 [shape = 'bf16[2,32,166]{2,1,0:T(16,128)(2,1)}', space=vmem, size = 0x8000, scoped, tag = 'scratch operand']
  #allocation3 [shape = 'f32[2,4,130]{2,1,0:T(4,128)}', space=vmem, size = 0x2000, scoped, tag = 'scratch operand']
  #allocation4 [shape = 'bf16[1264,256]{1,0:T(16,128)(2,1)}', space=vmem, size = 0x9e000, scoped, tag = 'scratch operand']
  %s0 = inlined_call_operand.vmem [shape: f32[4,4,128], index: 0, kind: input, shape index: {}]
  %s1 = inlined_call_operand.vmem [shape: f32[32,4], index: 1, kind: input, shape index: {}]
  %s2 = inlined_call_operand.vmem [shape: bf16[128,1264], index: 2, kind: input, shape index: {}]
  %s3 = inlined_call_operand.hbm [shape: f32[4,128,128], index: 3, kind: output, shape index: {0}]
  %s4 = inlined_call_operand.vmem [shape: f32[2,2,128], index: 4, kind: output, shape index: {1}]
  %5 = xla_tuple %s3, %s4
  %s6 = sld [smem:[#allocation0]]
  $region53: #{inception_module_forward.2} parent=0
    _
  %s8 = ssub.s32 1, %s6
  %s9 = scalar_select 0, %s8, %s6
  $region1: #{inception_module_forward.2} parent=0
    #allocation5 [shape = 'u8[262144]{0}', space=vmem, size = 0x40000, scoped, tag = 'output window, operand 0']
    #allocation6 [shape = 's32[2]{0}', space=sflag, size = 0x8, scoped, tag = 'scoped memory for inception_module_forward.2']
    %10 = vsyncpa [#allocation6], 0
    %s11 = scalar_lea.sflag [#allocation6], 1
    %12 = vsyncpa %s11, 0
    loop: start=0, step=1, limit=4
    $region2: #{inception_module_forward.2} parent=1 // loop_pre_header
      _
    $region3: #{inception_module_forward.2} parent=1 // loop_header
      %s14 = sphi 0, %s18
      %p15 = scmp.ge.s32.totalorder %s14, 4
      %s24 = sphi 0, %s26
      %s27 = sphi 0, %s24
      %s28 = sphi 0, %s27
      %s44 = sphi 0, %s28
      %s48 = sphi 0, %s48
      %s50 = sphi 0, %s48
      %s51 = sphi 0, %s50
      %s65 = sphi 0, %s51
      %s69 = sphi 0, %s69
      %s71 = sphi 0, %s69
      %s72 = sphi 0, %s71
      %s86 = sphi 0, %s72
      %s92 = sphi 0, %s94
      %s95 = sphi 0, %s92
      %s96 = sphi 0, %s95
      %s112 = sphi 0, %s96
      %s118 = sphi 0, %s120
      %s121 = sphi 0, %s118
      %s122 = sphi 0, %s121
      %s138 = sphi 0, %s122
    $region4: #{inception_module_forward.2} parent=1 // loop_header_branch
      %17 = sbr.rel (%p15) target = $region8
    $region5: #{inception_module_forward.2} parent=1 // loop_body
      %s19 = ssub.s32 %s14, 1
      %s20 = ssub.s32 %s14, 2
      %s21 = sadd.s32 %s14, 1
      %s22 = ssub.s32 %s14, %s21
      %p23 = scmp.eq.s32.totalorder %s22, 0
      %s25 = sadd.s32 %s24, 1
      %s26 = scalar_select %p23, %s24, %s25
      %p29 = pneg %p23
      %p30 = scmp.eq.s32.totalorder %s14, 1
      %p31 = por %p29, %p30
      %p32 = scmp.ne.s32.totalorder %s24, %s27
      %p33 = scmp.eq.s32.totalorder %s14, 0
      %p34 = por %p32, %p33
      %p35 = scmp.ne.s32.totalorder %s24, %s27
      %p36 = scmp.eq.s32.totalorder %s19, 1
      %p37 = por %p35, %p36
      %p38 = scmp.ne.s32.totalorder %s27, %s28
      %p39 = scmp.eq.s32.totalorder %s19, 0
      %p40 = por %p38, %p39
      %p41 = scmp.ne.s32.totalorder %s27, %s28
      %p42 = scmp.eq.s32.totalorder %s20, 1
      %p43 = por %p41, %p42
      %p45 = scmp.ne.s32.totalorder %s28, %s44
      %p46 = scmp.eq.s32.totalorder %s20, 0
      %p47 = por %p45, %p46
      %s49 = sadd.s32 %s48, 1
      %p52 = scmp.eq.s32.totalorder %s14, 1
      %p53 = scmp.ne.s32.totalorder %s48, %s50
      %p54 = scmp.eq.s32.totalorder %s14, 0
      %p55 = por %p53, %p54
      %p56 = scmp.ne.s32.totalorder %s48, %s50
      %p57 = scmp.eq.s32.totalorder %s19, 1
      %p58 = por %p56, %p57
      %p59 = scmp.ne.s32.totalorder %s50, %s51
      %p60 = scmp.eq.s32.totalorder %s19, 0
      %p61 = por %p59, %p60
      %p62 = scmp.ne.s32.totalorder %s50, %s51
      %p63 = scmp.eq.s32.totalorder %s20, 1
      %p64 = por %p62, %p63
      %p66 = scmp.ne.s32.totalorder %s51, %s65
      %p67 = scmp.eq.s32.totalorder %s20, 0
      %p68 = por %p66, %p67
      %s70 = sadd.s32 %s69, 1
      %p73 = scmp.eq.s32.totalorder %s14, 1
      %p74 = scmp.ne.s32.totalorder %s69, %s71
      %p75 = scmp.eq.s32.totalorder %s14, 0
      %p76 = por %p74, %p75
      %p77 = scmp.ne.s32.totalorder %s69, %s71
      %p78 = scmp.eq.s32.totalorder %s19, 1
      %p79 = por %p77, %p78
      %p80 = scmp.ne.s32.totalorder %s71, %s72
      %p81 = scmp.eq.s32.totalorder %s19, 0
      %p82 = por %p80, %p81
      %p83 = scmp.ne.s32.totalorder %s71, %s72
      %p84 = scmp.eq.s32.totalorder %s20, 1
      %p85 = por %p83, %p84
      %p87 = scmp.ne.s32.totalorder %s72, %s86
      %p88 = scmp.eq.s32.totalorder %s20, 0
      %p89 = por %p87, %p88
      %s90 = ssub.s32 %s14, %s21
      %p91 = scmp.eq.s32.totalorder %s90, 0
      %s93 = sadd.s32 %s92, 1
      %s94 = scalar_select %p91, %s92, %s93
      %p97 = pneg %p91
      %p98 = scmp.eq.s32.totalorder %s14, 1
      %p99 = por %p97, %p98
      %p100 = scmp.ne.s32.totalorder %s92, %s95
      %p101 = scmp.eq.s32.totalorder %s14, 0
      %p102 = por %p100, %p101
      %p103 = scmp.ne.s32.totalorder %s92, %s95
      %p104 = scmp.eq.s32.totalorder %s19, 1
      %p105 = por %p103, %p104
      %p106 = scmp.ne.s32.totalorder %s95, %s96
      %p107 = scmp.eq.s32.totalorder %s19, 0
      %p108 = por %p106, %p107
      %p109 = scmp.ne.s32.totalorder %s95, %s96
      %p110 = scmp.eq.s32.totalorder %s20, 1
      %p111 = por %p109, %p110
      %p113 = scmp.ne.s32.totalorder %s96, %s112
      %p114 = scmp.eq.s32.totalorder %s20, 0
      %p115 = por %p113, %p114
      %s116 = ssub.s32 %s14, %s21
      %p117 = scmp.eq.s32.totalorder %s116, 0
      %s119 = sadd.s32 %s118, 1
      %s120 = scalar_select %p117, %s118, %s119
      %p123 = pneg %p117
      %p124 = scmp.eq.s32.totalorder %s14, 1
      %p125 = por %p123, %p124
      %p126 = scmp.ne.s32.totalorder %s118, %s121
      %p127 = scmp.eq.s32.totalorder %s14, 0
      %p128 = por %p126, %p127
      %p129 = scmp.ne.s32.totalorder %s118, %s121
      %p130 = scmp.eq.s32.totalorder %s19, 1
      %p131 = por %p129, %p130
      %p132 = scmp.ne.s32.totalorder %s121, %s122
      %p133 = scmp.eq.s32.totalorder %s19, 0
      %p134 = por %p132, %p133
      %p135 = scmp.ne.s32.totalorder %s121, %s122
      %p136 = scmp.eq.s32.totalorder %s20, 1
      %p137 = por %p135, %p136
      %p139 = scmp.ne.s32.totalorder %s122, %s138
      %p140 = scmp.eq.s32.totalorder %s20, 0
      %p141 = por %p139, %p140
      %p142 = scmp.le.s32.totalorder 1, %s14
      %p143 = scmp.lt.s32.totalorder %s14, 3
      %p144 = pnand %p142, %p143
      %p145 = pneg %p144
      // Predicated region
      $region9: #{inception_module_forward.2} parent=5 // pred_check
        _
      $region10: #{inception_module_forward.2} parent=5 // pred_check_branch
        %147 = sbr.rel (%p144) target = $region12
      $region11: #{inception_module_forward.2} parent=5 // pred_region
        %s148 = ssub.s32 %s14, 1
        // Predicated region
        $region13: #{inception_module_forward.2} parent=11 // pred_check
          %p149 = pneg %p61
        $region14: #{inception_module_forward.2} parent=11 // pred_check_branch
          %151 = sbr.rel (%p149) target = $region16
        $region15: #{inception_module_forward.2} parent=11 // pred_region
          _
        $region16: #{inception_module_forward.2} parent=11 // pred_fallthru
          _
        // Predicated region
        $region17: #{inception_module_forward.2} parent=11 // pred_check
          %p152 = pneg %p82
        $region18: #{inception_module_forward.2} parent=11 // pred_check_branch
          %154 = sbr.rel (%p152) target = $region20
        $region19: #{inception_module_forward.2} parent=11 // pred_region
          _
        $region20: #{inception_module_forward.2} parent=11 // pred_fallthru
          _
      $region12: #{inception_module_forward.2} parent=5 // pred_fallthru
        _
      %p155 = scmp.lt.s32.totalorder %s14, 2
      // Predicated region
      $region21: #{inception_module_forward.2} parent=5 // pred_check
        %p156 = pneg %p155
      $region22: #{inception_module_forward.2} parent=5 // pred_check_branch
        %158 = sbr.rel (%p156) target = $region24
      $region23: #{inception_module_forward.2} parent=5 // pred_region
        // Predicated region
        $region25: #{inception_module_forward.2} parent=23 // pred_check
          %p159 = pneg %p34
        $region26: #{inception_module_forward.2} parent=23 // pred_check_branch
          %161 = sbr.rel (%p159) target = $region28
        $region27: #{inception_module_forward.2} parent=23 // pred_region
          %s162 = smul.u32 2, %s14
          %p163 = scmp.lt.s32.totalorder %s162, 3
          %s164 = scalar_select %p163, %s162, 3
          %s165 = smul.addr %s164, 4
          %s166 = scalar_lea.vmem %s0, %s165
          %s167 = smul.u32 2, %s14
        $region28: #{inception_module_forward.2} parent=23 // pred_fallthru
          _
      $region24: #{inception_module_forward.2} parent=5 // pred_fallthru
        _
      %p168 = scmp.le.s32.totalorder 1, %s14
      %p169 = scmp.lt.s32.totalorder %s14, 3
      %p170 = pnand %p168, %p169
      %p171 = pneg %p170
      // Predicated region
      $region29: #{inception_module_forward.2} parent=5 // pred_check
        _
      $region30: #{inception_module_forward.2} parent=5 // pred_check_branch
        %173 = sbr.rel (%p170) target = $region32
      $region31: #{inception_module_forward.2} parent=5 // pred_region
        %s174 = ssub.s32 %s14, 1
        %s175 = smul.u32 2, %s19
        %p176 = scmp.lt.s32.totalorder %s175, 3
        %s177 = scalar_select %p176, %s175, 3
        %s178 = smul.addr %s177, 4
        %s179 = scalar_lea.vmem %s0, %s178
        %p180 = pneg %p40
        %p181 = pneg %p37
        %p182 = pneg %p61
        %p183 = pneg %p58
        %p184 = pneg %p82
        %p185 = pneg %p79
        %p186 = pneg %p108
        %p187 = pneg %p105
        %s188 = sand.u32 %s95, 1
        %s189 = scalar_lea.sflag [#allocation6], %s188
        %s190 = sand.u32 %s95, 1
        %s191 = smul.addr %s190, 256
        %s192 = scalar_lea.vmem [#allocation5], %s191
        %p193 = pneg %p134
        %p194 = pneg %p131
        %p195 = scmp.lt.s32.totalorder %s19, 1
        %s196 = scalar_select %p195, %s19, 1
        %s197 = smul.addr %s196, 2
        %s198 = scalar_lea.vmem %s4, %s197
        %s199 = smul.u32 2, %s19
        %p200 = scmp.lt.s32.totalorder %s199, 3
        %s201 = scalar_select %p200, %s199, 3
        %s202 = smul.addr %s201, 4
        %s203 = scalar_lea.vmem %s0, %s202
        %s204 = smul.u32 2, %s19
        %s205 = smul.u32 2, %s19
        %p206 = scmp.lt.s32.totalorder %s19, 1
        %s207 = scalar_select %p206, %s19, 1
        %s208 = smul.addr %s207, 2
        %s209 = scalar_lea.vmem %s4, %s208
        %v211 = vld [vmem:[%s203] sm:$0xf]
        %v212 = vld [vmem:[%s203 + $0x4] sm:$0xf]
        %v213 = vld [vmem:[%s1] sm:$0xff]
        %v214 = vld [vmem:[%s1 + $0x8] sm:$0xff]
        %v215 = vld [vmem:[%s1 + $0x10] sm:$0xff]
        %v216 = vld [vmem:[%s1 + $0x18] sm:$0xff]
        %218 = vset.pattern.permute.xlu0 0
        %219 = vperm.xlu0 %218, %v213
        %v220 = vpop.permute.xlu0 %219
        %223 = vset.pattern.permute.xlu0 0
        %224 = vperm.xlu0 %223, %v214
        %v225 = vpop.permute.xlu0 %224
        %228 = vset.pattern.permute.xlu0 0
        %229 = vperm.xlu0 %228, %v215
        %v230 = vpop.permute.xlu0 %229
        %233 = vset.pattern.permute.xlu0 0
        %234 = vperm.xlu0 %233, %v216
        %v235 = vpop.permute.xlu0 %234
        %v237 = vlaneseq
        %v238 = vshrl.u32 %v237, 7
        %v239 = vsub.s32 0, %v238
        %v240 = vrot.slane %v211, %v239
        %v241 = vlaneseq
        %v242 = vshrl.u32 %v241, 7
        %v243 = vsub.s32 0, %v242
        %v244 = vrot.slane %v212, %v243
        %v245 = vmul.f32 %v220, %v240
        %v246 = vmul.f32 %v225, %v240
        %v247 = vmul.f32 %v230, %v240
        %v248 = vmul.f32 %v235, %v240
        %v249 = vmul.f32 %v220, %v244
        %v250 = vmul.f32 %v225, %v244
        %v251 = vmul.f32 %v230, %v244
        %v252 = vmul.f32 %v235, %v244
        %v253 = vadd.f32 %v245, 0.0
        %v254 = vadd.f32 %v246, 0.0
        %v255 = vadd.f32 %v247, 0.0
        %v256 = vadd.f32 %v248, 0.0
        %v257 = vadd.f32 %v249, 0.0
        %v258 = vadd.f32 %v250, 0.0
        %v259 = vadd.f32 %v251, 0.0
        %v260 = vadd.f32 %v252, 0.0
        %261 = vset.pattern.permute.xlu0 1
        %262 = vperm.xlu0 %261, %v213
        %v263 = vpop.permute.xlu0 %262
        %265 = vset.pattern.permute.xlu0 1
        %266 = vperm.xlu0 %265, %v214
        %v267 = vpop.permute.xlu0 %266
        %269 = vset.pattern.permute.xlu0 1
        %270 = vperm.xlu0 %269, %v215
        %v271 = vpop.permute.xlu0 %270
        %273 = vset.pattern.permute.xlu0 1
        %274 = vperm.xlu0 %273, %v216
        %v275 = vpop.permute.xlu0 %274
        %v277 = vlaneseq
        %v278 = vshrl.u32 %v277, 7
        %v279 = vsub.s32 1, %v278
        %v280 = vrot.slane %v211, %v279
        %v281 = vlaneseq
        %v282 = vshrl.u32 %v281, 7
        %v283 = vsub.s32 1, %v282
        %v284 = vrot.slane %v212, %v283
        %v285 = vmul.f32 %v263, %v280
        %v286 = vmul.f32 %v267, %v280
        %v287 = vmul.f32 %v271, %v280
        %v288 = vmul.f32 %v275, %v280
        %v289 = vmul.f32 %v263, %v284
        %v290 = vmul.f32 %v267, %v284
        %v291 = vmul.f32 %v271, %v284
        %v292 = vmul.f32 %v275, %v284
        %v293 = vadd.f32 %v253, %v285
        %v294 = vadd.f32 %v254, %v286
        %v295 = vadd.f32 %v255, %v287
        %v296 = vadd.f32 %v256, %v288
        %v297 = vadd.f32 %v257, %v289
        %v298 = vadd.f32 %v258, %v290
        %v299 = vadd.f32 %v259, %v291
        %v300 = vadd.f32 %v260, %v292
        %301 = vset.pattern.permute.xlu0 2
        %302 = vperm.xlu0 %301, %v213
        %v303 = vpop.permute.xlu0 %302
        %305 = vset.pattern.permute.xlu0 2
        %306 = vperm.xlu0 %305, %v214
        %v307 = vpop.permute.xlu0 %306
        %309 = vset.pattern.permute.xlu0 2
        %310 = vperm.xlu0 %309, %v215
        %v311 = vpop.permute.xlu0 %310
        %313 = vset.pattern.permute.xlu0 2
        %314 = vperm.xlu0 %313, %v216
        %v315 = vpop.permute.xlu0 %314
        %v317 = vlaneseq
        %v318 = vshrl.u32 %v317, 7
        %v319 = vsub.s32 2, %v318
        %v320 = vrot.slane %v211, %v319
        %v321 = vlaneseq
        %v322 = vshrl.u32 %v321, 7
        %v323 = vsub.s32 2, %v322
        %v324 = vrot.slane %v212, %v323
        %v325 = vmul.f32 %v303, %v320
        %v326 = vmul.f32 %v307, %v320
        %v327 = vmul.f32 %v311, %v320
        %v328 = vmul.f32 %v315, %v320
        %v329 = vmul.f32 %v303, %v324
        %v330 = vmul.f32 %v307, %v324
        %v331 = vmul.f32 %v311, %v324
        %v332 = vmul.f32 %v315, %v324
        %v333 = vadd.f32 %v293, %v325
        %v334 = vadd.f32 %v294, %v326
        %v335 = vadd.f32 %v295, %v327
        %v336 = vadd.f32 %v296, %v328
        %v337 = vadd.f32 %v297, %v329
        %v338 = vadd.f32 %v298, %v330
        %v339 = vadd.f32 %v299, %v331
        %v340 = vadd.f32 %v300, %v332
        %341 = vset.pattern.permute.xlu0 3
        %342 = vperm.xlu0 %341, %v213
        %v343 = vpop.permute.xlu0 %342
        %345 = vset.pattern.permute.xlu0 3
        %346 = vperm.xlu0 %345, %v214
        %v347 = vpop.permute.xlu0 %346
        %349 = vset.pattern.permute.xlu0 3
        %350 = vperm.xlu0 %349, %v215
        %v351 = vpop.permute.xlu0 %350
        %353 = vset.pattern.permute.xlu0 3
        %354 = vperm.xlu0 %353, %v216
        %v355 = vpop.permute.xlu0 %354
        %v357 = vlaneseq
        %v358 = vshrl.u32 %v357, 7
        %v359 = vsub.s32 3, %v358
        %v360 = vrot.slane %v211, %v359
        %v361 = vlaneseq
        %v362 = vshrl.u32 %v361, 7
        %v363 = vsub.s32 3, %v362
        %v364 = vrot.slane %v212, %v363
        %v365 = vmul.f32 %v343, %v360
        %v366 = vmul.f32 %v347, %v360
        %v367 = vmul.f32 %v351, %v360
        %v368 = vmul.f32 %v355, %v360
        %v369 = vmul.f32 %v343, %v364
        %v370 = vmul.f32 %v347, %v364
        %v371 = vmul.f32 %v351, %v364
        %v372 = vmul.f32 %v355, %v364
        %v373 = vadd.f32 %v333, %v365
        %v374 = vadd.f32 %v334, %v366
        %v375 = vadd.f32 %v335, %v367
        %v376 = vadd.f32 %v336, %v368
        %v377 = vadd.f32 %v337, %v369
        %v378 = vadd.f32 %v338, %v370
        %v379 = vadd.f32 %v339, %v371
        %v380 = vadd.f32 %v340, %v372
        %vm381 = vcmask 154624
        %382 = vst.msk [vmem:[#allocation2] sm:$0xff] %vm381, 0
        %383 = vst.msk [vmem:[#allocation2 + $0x10] sm:$0xff] %vm381, 0
        %384 = vst.msk [vmem:[#allocation2 + $0x20] sm:$0xff] %vm381, 0
        %385 = vst.msk [vmem:[#allocation2 + $0x30] sm:$0xff] %vm381, 0
        %vm386 = vcmask 310424
        %387 = vst.msk [vmem:[#allocation2 + $0x8] sm:$0xff] %vm386, 0
        %388 = vst.msk [vmem:[#allocation2 + $0x18] sm:$0xff] %vm386, 0
        %389 = vst.msk [vmem:[#allocation2 + $0x28] sm:$0xff] %vm386, 0
        %390 = vst.msk [vmem:[#allocation2 + $0x38] sm:$0xff] %vm386, 0
        %v391 = vpack.c.bf16 %v374, %v373
        %v392 = vpack.c.bf16 %v376, %v375
        %v393 = vpack.c.bf16 %v378, %v377
        %v394 = vpack.c.bf16 %v380, %v379
        %399 = vrot.lane.b32.xlu0 %v391, 19
        %v400 = vpop.permute.xlu0 %399
        %401 = vrot.lane.b32.xlu0 %v392, 19
        %v402 = vpop.permute.xlu0 %401
        %403 = vrot.lane.b32.xlu0 %v393, 19
        %v404 = vpop.permute.xlu0 %403
        %405 = vrot.lane.b32.xlu0 %v394, 19
        %v406 = vpop.permute.xlu0 %405
        %vm411 = vcmask 1047704
        %412 = vst.msk [vmem:[#allocation2] sm:$0xff] %vm411, %v400
        %413 = vst.msk [vmem:[#allocation2 + $0x8] sm:$0xff] %vm381, %v400
        %414 = vst.msk [vmem:[#allocation2 + $0x10] sm:$0xff] %vm411, %v402
        %415 = vst.msk [vmem:[#allocation2 + $0x18] sm:$0xff] %vm381, %v402
        %416 = vst.msk [vmem:[#allocation2 + $0x20] sm:$0xff] %vm411, %v404
        %417 = vst.msk [vmem:[#allocation2 + $0x28] sm:$0xff] %vm381, %v404
        %418 = vst.msk [vmem:[#allocation2 + $0x30] sm:$0xff] %vm411, %v406
        %419 = vst.msk [vmem:[#allocation2 + $0x38] sm:$0xff] %vm381, %v406
        %vm420 = vcmask 3072
        %421 = vst.msk [vmem:[#allocation3] sm:$0xf] %vm420, -inf
        %422 = vst.msk [vmem:[#allocation3 + $0x8] sm:$0xf] %vm420, -inf
        %vm423 = vcmask 11272
        %424 = vst.msk [vmem:[#allocation3 + $0x4] sm:$0xf] %vm423, -inf
        %425 = vst.msk [vmem:[#allocation3 + $0xc] sm:$0xf] %vm423, -inf
        %428 = vrot.lane.b32.xlu0 %v211, 1
        %v429 = vpop.permute.xlu0 %428
        %430 = vrot.lane.b32.xlu0 %v212, 1
        %v431 = vpop.permute.xlu0 %430
        %v432 = vrot.slane %v429, 4
        %v433 = vrot.slane %v431, 4
        %vm434 = vcmask 7168
        %v435 = vsel %vm434, %v432, %v429
        %v436 = vsel %vm434, %v433, %v431
        %vm439 = vcmask 1043464
        %vm440 = vcmask 7172
        %vm441 = vmor %vm440, %vm439
        %442 = vst.msk [vmem:[#allocation3] sm:$0xff] %vm441, %v435
        %443 = vst.msk [vmem:[#allocation3 + $0x8] sm:$0xff] %vm441, %v436
        %v444 = vld [vmem:[#allocation3] sm:$0xf]
        %v445 = vld [vmem:[#allocation3 + $0x8] sm:$0xf]
        %v446 = vld [vmem:[#allocation3] sm:$0xff]
        %v447 = vld [vmem:[#allocation3 + $0x8] sm:$0xff]
        %450 = vrot.lane.b32.xlu0 %v446, 127
        %v451 = vpop.permute.xlu0 %450
        %452 = vrot.lane.b32.xlu0 %v447, 127
        %v453 = vpop.permute.xlu0 %452
        %v454 = vrot.slane %v451, 4
        %v455 = vrot.slane %v453, 4
        %vm456 = vcmask 1039360
        %v457 = vsel %vm456, %v451, %v454
        %v458 = vsel %vm456, %v453, %v455
        %v461 = vmax.f32 %v444, %v457
        %v462 = vmax.f32 %v445, %v458
        %463 = vrot.lane.b32.xlu0 %v446, 126
        %v464 = vpop.permute.xlu0 %463
        %465 = vrot.lane.b32.xlu0 %v447, 126
        %v466 = vpop.permute.xlu0 %465
        %v467 = vrot.slane %v464, 4
        %v468 = vrot.slane %v466, 4
        %vm469 = vcmask 1031168
        %v470 = vsel %vm469, %v464, %v467
        %v471 = vsel %vm469, %v466, %v468
        %v474 = vmax.f32 %v461, %v470
        %v475 = vmax.f32 %v462, %v471
        %v476 = vld [vmem:[#allocation2] sm:$0xff]
        %v477 = vld [vmem:[#allocation2 + $0x10] sm:$0xff]
        %478 = vst [vmem:[#allocation4] sm:$0xff] %v476
        %479 = vst [vmem:[#allocation4 + $0x10] sm:$0xff] %v477
        %v480 = vld [vmem:[#allocation2] sm:$0xff]
        %v481 = vld [vmem:[#allocation2 + $0x8] sm:$0xff]
        %v482 = vld [vmem:[#allocation2 + $0x10] sm:$0xff]
        %v483 = vld [vmem:[#allocation2 + $0x18] sm:$0xff]
        %488 = vrot.lane.b32.xlu0 %v480, 127
        %v489 = vpop.permute.xlu0 %488
        %490 = vrot.lane.b32.xlu0 %v481, 127
        %v491 = vpop.permute.xlu0 %490
        %492 = vrot.lane.b32.xlu0 %v482, 127
        %v493 = vpop.permute.xlu0 %492
        %494 = vrot.lane.b32.xlu0 %v483, 127
        %v495 = vpop.permute.xlu0 %494
        %vm496 = vcmask 1039360
        %v497 = vsel %vm496, %v489, %v491
        %v498 = vsel %vm496, %v493, %v495
        %501 = vst [vmem:[#allocation4 + $0x20] sm:$0xff] %v497
        %502 = vst [vmem:[#allocation4 + $0x30] sm:$0xff] %v498
        %v503 = vld [vmem:[#allocation2] sm:$0xff]
        %v504 = vld [vmem:[#allocation2 + $0x8] sm:$0xff]
        %v505 = vld [vmem:[#allocation2 + $0x10] sm:$0xff]
        %v506 = vld [vmem:[#allocation2 + $0x18] sm:$0xff]
        %511 = vrot.lane.b32.xlu0 %v503, 126
        %v512 = vpop.permute.xlu0 %511
        %513 = vrot.lane.b32.xlu0 %v504, 126
        %v514 = vpop.permute.xlu0 %513
        %515 = vrot.lane.b32.xlu0 %v505, 126
        %v516 = vpop.permute.xlu0 %515
        %517 = vrot.lane.b32.xlu0 %v506, 126
        %v518 = vpop.permute.xlu0 %517
        %vm519 = vcmask 1031168
        %v520 = vsel %vm519, %v512, %v514
        %v521 = vsel %vm519, %v516, %v518
        %524 = vst [vmem:[#allocation4 + $0x40] sm:$0xff] %v520
        %525 = vst [vmem:[#allocation4 + $0x50] sm:$0xff] %v521
        %v526 = vld [vmem:[#allocation2] sm:$0xff]
        %v527 = vld [vmem:[#allocation2 + $0x8] sm:$0xff]
        %v528 = vld [vmem:[#allocation2 + $0x10] sm:$0xff]
        %v529 = vld [vmem:[#allocation2 + $0x18] sm:$0xff]
        %534 = vrot.lane.b32.xlu0 %v526, 125
        %v535 = vpop.permute.xlu0 %534
        %536 = vrot.lane.b32.xlu0 %v527, 125
        %v537 = vpop.permute.xlu0 %536
        %538 = vrot.lane.b32.xlu0 %v528, 125
        %v539 = vpop.permute.xlu0 %538
        %540 = vrot.lane.b32.xlu0 %v529, 125
        %v541 = vpop.permute.xlu0 %540
        %vm542 = vcmask 1022976
        %v543 = vsel %vm542, %v535, %v537
        %v544 = vsel %vm542, %v539, %v541
        %547 = vst [vmem:[#allocation4 + $0x60] sm:$0xff] %v543
        %548 = vst [vmem:[#allocation4 + $0x70] sm:$0xff] %v544
        %v549 = vld [vmem:[#allocation2] sm:$0xff]
        %v550 = vld [vmem:[#allocation2 + $0x8] sm:$0xff]
        %v551 = vld [vmem:[#allocation2 + $0x10] sm:$0xff]
        %v552 = vld [vmem:[#allocation2 + $0x18] sm:$0xff]
        %557 = vrot.lane.b32.xlu0 %v549, 124
        %v558 = vpop.permute.xlu0 %557
        %559 = vrot.lane.b32.xlu0 %v550, 124
        %v560 = vpop.permute.xlu0 %559
        %561 = vrot.lane.b32.xlu0 %v551, 124
        %v562 = vpop.permute.xlu0 %561
        %563 = vrot.lane.b32.xlu0 %v552, 124
        %v564 = vpop.permute.xlu0 %563
        %vm565 = vcmask 1014784
        %v566 = vsel %vm565, %v558, %v560
        %v567 = vsel %vm565, %v562, %v564
        %570 = vst [vmem:[#allocation4 + $0x80] sm:$0xff] %v566
        %571 = vst [vmem:[#allocation4 + $0x90] sm:$0xff] %v567
        %v572 = vld [vmem:[#allocation2] sm:$0xff]
        %v573 = vld [vmem:[#allocation2 + $0x8] sm:$0xff]
        %v574 = vld [vmem:[#allocation2 + $0x10] sm:$0xff]
        %v575 = vld [vmem:[#allocation2 + $0x18] sm:$0xff]
        %580 = vrot.lane.b32.xlu0 %v572, 123
        %v581 = vpop.permute.xlu0 %580
        %582 = vrot.lane.b32.xlu0 %v573, 123
        %v583 = vpop.permute.xlu0 %582
        %584 = vrot.lane.b32.xlu0 %v574, 123
        %v585 = vpop.permute.xlu0 %584
        %586 = vrot.lane.b32.xlu0 %v575, 123
        %v587 = vpop.permute.xlu0 %586
        %vm588 = vcmask 1006592
        %v589 = vsel %vm588, %v581, %v583
        %v590 = vsel %vm588, %v585, %v587
        %593 = vst [vmem:[#allocation4 + $0xa0] sm:$0xff] %v589
        %594 = vst [vmem:[#allocation4 + $0xb0] sm:$0xff] %v590
        %v595 = vld [vmem:[#allocation2] sm:$0xff]
        %v596 = vld [vmem:[#allocation2 + $0x8] sm:$0xff]
        %v597 = vld [vmem:[#allocation2 + $0x10] sm:$0xff]
        %v598 = vld [vmem:[#allocation2 + $0x18] sm:$0xff]
        %603 = vrot.lane.b32.xlu0 %v595, 122
        %v604 = vpop.permute.xlu0 %603
        %605 = vrot.lane.b32.xlu0 %v596, 122
        %v606 = vpop.permute.xlu0 %605
        %607 = vrot.lane.b32.xlu0 %v597, 122
        %v608 = vpop.permute.xlu0 %607
        %609 = vrot.lane.b32.xlu0 %v598, 122
        %v610 = vpop.permute.xlu0 %609
        %vm611 = vcmask 998400
        %v612 = vsel %vm611, %v604, %v606
        %v613 = vsel %vm611, %v608, %v610
        %616 = vst [vmem:[#allocation4 + $0xc0] sm:$0xff] %v612
        %617 = vst [vmem:[#allocation4 + $0xd0] sm:$0xff] %v613
        %v618 = vld [vmem:[#allocation2] sm:$0xff]
        %v619 = vld [vmem:[#allocation2 + $0x8] sm:$0xff]
        %v620 = vld [vmem:[#allocation2 + $0x10] sm:$0xff]
        %v621 = vld [vmem:[#allocation2 + $0x18] sm:$0xff]
        %626 = vrot.lane.b32.xlu0 %v618, 121
        %v627 = vpop.permute.xlu0 %626
        %628 = vrot.lane.b32.xlu0 %v619, 121
        %v629 = vpop.permute.xlu0 %628
        %630 = vrot.lane.b32.xlu0 %v620, 121
        %v631 = vpop.permute.xlu0 %630
        %632 = vrot.lane.b32.xlu0 %v621, 121
        %v633 = vpop.permute.xlu0 %632
        %vm634 = vcmask 990208
        %v635 = vsel %vm634, %v627, %v629
        %v636 = vsel %vm634, %v631, %v633
        %639 = vst [vmem:[#allocation4 + $0xe0] sm:$0xff] %v635
        %640 = vst [vmem:[#allocation4 + $0xf0] sm:$0xff] %v636
        %v641 = vld [vmem:[#allocation2] sm:$0xff]
        %v642 = vld [vmem:[#allocation2 + $0x8] sm:$0xff]
        %v643 = vld [vmem:[#allocation2 + $0x10] sm:$0xff]
        %v644 = vld [vmem:[#allocation2 + $0x18] sm:$0xff]
        %649 = vrot.lane.b32.xlu0 %v641, 120
        %v650 = vpop.permute.xlu0 %649
        %651 = vrot.lane.b32.xlu0 %v642, 120
        %v652 = vpop.permute.xlu0 %651
        %653 = vrot.lane.b32.xlu0 %v643, 120
        %v654 = vpop.permute.xlu0 %653
        %655 = vrot.lane.b32.xlu0 %v644, 120
        %v656 = vpop.permute.xlu0 %655
        %vm657 = vcmask 982016
        %v658 = vsel %vm657, %v650, %v652
        %v659 = vsel %vm657, %v654, %v656
        %662 = vst [vmem:[#allocation4 + $0x100] sm:$0xff] %v658
        %663 = vst [vmem:[#allocation4 + $0x110] sm:$0xff] %v659
        %v664 = vld [vmem:[#allocation2] sm:$0xff]
        %v665 = vld [vmem:[#allocation2 + $0x8] sm:$0xff]
        %v666 = vld [vmem:[#allocation2 + $0x10] sm:$0xff]
        %v667 = vld [vmem:[#allocation2 + $0x18] sm:$0xff]
        %672 = vrot.lane.b32.xlu0 %v664, 119
        %v673 = vpop.permute.xlu0 %672
        %674 = vrot.lane.b32.xlu0 %v665, 119
        %v675 = vpop.permute.xlu0 %674
        %676 = vrot.lane.b32.xlu0 %v666, 119
        %v677 = vpop.permute.xlu0 %676
        %678 = vrot.lane.b32.xlu0 %v667, 119
        %v679 = vpop.permute.xlu0 %678
        %vm680 = vcmask 973824
        %v681 = vsel %vm680, %v673, %v675
        %v682 = vsel %vm680, %v677, %v679
        %685 = vst [vmem:[#allocation4 + $0x120] sm:$0xff] %v681
        %686 = vst [vmem:[#allocation4 + $0x130] sm:$0xff] %v682
        %v687 = vld [vmem:[#allocation2] sm:$0xff]
        %v688 = vld [vmem:[#allocation2 + $0x8] sm:$0xff]
        %v689 = vld [vmem:[#allocation2 + $0x10] sm:$0xff]
        %v690 = vld [vmem:[#allocation2 + $0x18] sm:$0xff]
        %695 = vrot.lane.b32.xlu0 %v687, 118
        %v696 = vpop.permute.xlu0 %695
        %697 = vrot.lane.b32.xlu0 %v688, 118
        %v698 = vpop.permute.xlu0 %697
        %699 = vrot.lane.b32.xlu0 %v689, 118
        %v700 = vpop.permute.xlu0 %699
        %701 = vrot.lane.b32.xlu0 %v690, 118
        %v702 = vpop.permute.xlu0 %701
        %vm703 = vcmask 965632
        %v704 = vsel %vm703, %v696, %v698
        %v705 = vsel %vm703, %v700, %v702
        %708 = vst [vmem:[#allocation4 + $0x140] sm:$0xff] %v704
        %709 = vst [vmem:[#allocation4 + $0x150] sm:$0xff] %v705
        %v710 = vld [vmem:[#allocation2] sm:$0xff]
        %v711 = vld [vmem:[#allocation2 + $0x8] sm:$0xff]
        %v712 = vld [vmem:[#allocation2 + $0x10] sm:$0xff]
        %v713 = vld [vmem:[#allocation2 + $0x18] sm:$0xff]
        %718 = vrot.lane.b32.xlu0 %v710, 117
        %v719 = vpop.permute.xlu0 %718
        %720 = vrot.lane.b32.xlu0 %v711, 117
        %v721 = vpop.permute.xlu0 %720
        %722 = vrot.lane.b32.xlu0 %v712, 117
        %v723 = vpop.permute.xlu0 %722
        %724 = vrot.lane.b32.xlu0 %v713, 117
        %v725 = vpop.permute.xlu0 %724
        %vm726 = vcmask 957440
        %v727 = vsel %vm726, %v719, %v721
        %v728 = vsel %vm726, %v723, %v725
        %731 = vst [vmem:[#allocation4 + $0x160] sm:$0xff] %v727
        %732 = vst [vmem:[#allocation4 + $0x170] sm:$0xff] %v728
        %v733 = vld [vmem:[#allocation2] sm:$0xff]
        %v734 = vld [vmem:[#allocation2 + $0x8] sm:$0xff]
        %v735 = vld [vmem:[#allocation2 + $0x10] sm:$0xff]
        %v736 = vld [vmem:[#allocation2 + $0x18] sm:$0xff]
        %741 = vrot.lane.b32.xlu0 %v733, 116
        %v742 = vpop.permute.xlu0 %741
        %743 = vrot.lane.b32.xlu0 %v734, 116
        %v744 = vpop.permute.xlu0 %743
        %745 = vrot.lane.b32.xlu0 %v735, 116
        %v746 = vpop.permute.xlu0 %745
        %747 = vrot.lane.b32.xlu0 %v736, 116
        %v748 = vpop.permute.xlu0 %747
        %vm749 = vcmask 949248
        %v750 = vsel %vm749, %v742, %v744
        %v751 = vsel %vm749, %v746, %v748
        %754 = vst [vmem:[#allocation4 + $0x180] sm:$0xff] %v750
        %755 = vst [vmem:[#allocation4 + $0x190] sm:$0xff] %v751
        %v756 = vld [vmem:[#allocation2] sm:$0xff]
        %v757 = vld [vmem:[#allocation2 + $0x8] sm:$0xff]
        %v758 = vld [vmem:[#allocation2 + $0x10] sm:$0xff]
        %v759 = vld [vmem:[#allocation2 + $0x18] sm:$0xff]
        %764 = vrot.lane.b32.xlu0 %v756, 115
        %v765 = vpop.permute.xlu0 %764
        %766 = vrot.lane.b32.xlu0 %v757, 115
        %v767 = vpop.permute.xlu0 %766
        %768 = vrot.lane.b32.xlu0 %v758, 115
        %v769 = vpop.permute.xlu0 %768
        %770 = vrot.lane.b32.xlu0 %v759, 115
        %v771 = vpop.permute.xlu0 %770
        %vm772 = vcmask 941056
        %v773 = vsel %vm772, %v765, %v767
        %v774 = vsel %vm772, %v769, %v771
        %777 = vst [vmem:[#allocation4 + $0x1a0] sm:$0xff] %v773
        %778 = vst [vmem:[#allocation4 + $0x1b0] sm:$0xff] %v774
        %v779 = vld [vmem:[#allocation2] sm:$0xff]
        %v780 = vld [vmem:[#allocation2 + $0x8] sm:$0xff]
        %v781 = vld [vmem:[#allocation2 + $0x10] sm:$0xff]
        %v782 = vld [vmem:[#allocation2 + $0x18] sm:$0xff]
        %787 = vrot.lane.b32.xlu0 %v779, 114
        %v788 = vpop.permute.xlu0 %787
        %789 = vrot.lane.b32.xlu0 %v780, 114
        %v790 = vpop.permute.xlu0 %789
        %791 = vrot.lane.b32.xlu0 %v781, 114
        %v792 = vpop.permute.xlu0 %791
        %793 = vrot.lane.b32.xlu0 %v782, 114
        %v794 = vpop.permute.xlu0 %793
        %vm795 = vcmask 932864
        %v796 = vsel %vm795, %v788, %v790
        %v797 = vsel %vm795, %v792, %v794
        %800 = vst [vmem:[#allocation4 + $0x1c0] sm:$0xff] %v796
        %801 = vst [vmem:[#allocation4 + $0x1d0] sm:$0xff] %v797
        %v802 = vld [vmem:[#allocation2] sm:$0xff]
        %v803 = vld [vmem:[#allocation2 + $0x8] sm:$0xff]
        %v804 = vld [vmem:[#allocation2 + $0x10] sm:$0xff]
        %v805 = vld [vmem:[#allocation2 + $0x18] sm:$0xff]
        %810 = vrot.lane.b32.xlu0 %v802, 113
        %v811 = vpop.permute.xlu0 %810
        %812 = vrot.lane.b32.xlu0 %v803, 113
        %v813 = vpop.permute.xlu0 %812
        %814 = vrot.lane.b32.xlu0 %v804, 113
        %v815 = vpop.permute.xlu0 %814
        %816 = vrot.lane.b32.xlu0 %v805, 113
        %v817 = vpop.permute.xlu0 %816
        %vm818 = vcmask 924672
        %v819 = vsel %vm818, %v811, %v813
        %v820 = vsel %vm818, %v815, %v817
        %823 = vst [vmem:[#allocation4 + $0x1e0] sm:$0xff] %v819
        %824 = vst [vmem:[#allocation4 + $0x1f0] sm:$0xff] %v820
        %v825 = vld [vmem:[#allocation2] sm:$0xff]
        %v826 = vld [vmem:[#allocation2 + $0x8] sm:$0xff]
        %v827 = vld [vmem:[#allocation2 + $0x10] sm:$0xff]
        %v828 = vld [vmem:[#allocation2 + $0x18] sm:$0xff]
        %833 = vrot.lane.b32.xlu0 %v825, 112
        %v834 = vpop.permute.xlu0 %833
        %835 = vrot.lane.b32.xlu0 %v826, 112
        %v836 = vpop.permute.xlu0 %835
        %837 = vrot.lane.b32.xlu0 %v827, 112
        %v838 = vpop.permute.xlu0 %837
        %839 = vrot.lane.b32.xlu0 %v828, 112
        %v840 = vpop.permute.xlu0 %839
        %vm841 = vcmask 916480
        %v842 = vsel %vm841, %v834, %v836
        %v843 = vsel %vm841, %v838, %v840
        %846 = vst [vmem:[#allocation4 + $0x200] sm:$0xff] %v842
        %847 = vst [vmem:[#allocation4 + $0x210] sm:$0xff] %v843
        %v848 = vld [vmem:[#allocation2] sm:$0xff]
        %v849 = vld [vmem:[#allocation2 + $0x8] sm:$0xff]
        %v850 = vld [vmem:[#allocation2 + $0x10] sm:$0xff]
        %v851 = vld [vmem:[#allocation2 + $0x18] sm:$0xff]
        %856 = vrot.lane.b32.xlu0 %v848, 111
        %v857 = vpop.permute.xlu0 %856
        %858 = vrot.lane.b32.xlu0 %v849, 111
        %v859 = vpop.permute.xlu0 %858
        %860 = vrot.lane.b32.xlu0 %v850, 111
        %v861 = vpop.permute.xlu0 %860
        %862 = vrot.lane.b32.xlu0 %v851, 111
        %v863 = vpop.permute.xlu0 %862
        %vm864 = vcmask 908288
        %v865 = vsel %vm864, %v857, %v859
        %v866 = vsel %vm864, %v861, %v863
        %869 = vst [vmem:[#allocation4 + $0x220] sm:$0xff] %v865
        %870 = vst [vmem:[#allocation4 + $0x230] sm:$0xff] %v866
        %v871 = vld [vmem:[#allocation2] sm:$0xff]
        %v872 = vld [vmem:[#allocation2 + $0x8] sm:$0xff]
        %v873 = vld [vmem:[#allocation2 + $0x10] sm:$0xff]
        %v874 = vld [vmem:[#allocation2 + $0x18] sm:$0xff]
        %879 = vrot.lane.b32.xlu0 %v871, 110
        %v880 = vpop.permute.xlu0 %879
        %881 = vrot.lane.b32.xlu0 %v872, 110
        %v882 = vpop.permute.xlu0 %881
        %883 = vrot.lane.b32.xlu0 %v873, 110
        %v884 = vpop.permute.xlu0 %883
        %885 = vrot.lane.b32.xlu0 %v874, 110
        %v886 = vpop.permute.xlu0 %885
        %vm887 = vcmask 900096
        %v888 = vsel %vm887, %v880, %v882
        %v889 = vsel %vm887, %v884, %v886
        %892 = vst [vmem:[#allocation4 + $0x240] sm:$0xff] %v888
        %893 = vst [vmem:[#allocation4 + $0x250] sm:$0xff] %v889
        %v894 = vld [vmem:[#allocation2] sm:$0xff]
        %v895 = vld [vmem:[#allocation2 + $0x8] sm:$0xff]
        %v896 = vld [vmem:[#allocation2 + $0x10] sm:$0xff]
        %v897 = vld [vmem:[#allocation2 + $0x18] sm:$0xff]
        %902 = vrot.lane.b32.xlu0 %v894, 109
        %v903 = vpop.permute.xlu0 %902
        %904 = vrot.lane.b32.xlu0 %v895, 109
        %v905 = vpop.permute.xlu0 %904
        %906 = vrot.lane.b32.xlu0 %v896, 109
        %v907 = vpop.permute.xlu0 %906
        %908 = vrot.lane.b32.xlu0 %v897, 109
        %v909 = vpop.permute.xlu0 %908
        %vm910 = vcmask 891904
        %v911 = vsel %vm910, %v903, %v905
        %v912 = vsel %vm910, %v907, %v909
        %915 = vst [vmem:[#allocation4 + $0x260] sm:$0xff] %v911
        %916 = vst [vmem:[#allocation4 + $0x270] sm:$0xff] %v912
        %v917 = vld [vmem:[#allocation2] sm:$0xff]
        %v918 = vld [vmem:[#allocation2 + $0x8] sm:$0xff]
        %v919 = vld [vmem:[#allocation2 + $0x10] sm:$0xff]
        %v920 = vld [vmem:[#allocation2 + $0x18] sm:$0xff]
        %925 = vrot.lane.b32.xlu0 %v917, 108
        %v926 = vpop.permute.xlu0 %925
        %927 = vrot.lane.b32.xlu0 %v918, 108
        %v928 = vpop.permute.xlu0 %927
        %929 = vrot.lane.b32.xlu0 %v919, 108
        %v930 = vpop.permute.xlu0 %929
        %931 = vrot.lane.b32.xlu0 %v920, 108
        %v932 = vpop.permute.xlu0 %931
        %vm933 = vcmask 883712
        %v934 = vsel %vm933, %v926, %v928
        %v935 = vsel %vm933, %v930, %v932
        %938 = vst [vmem:[#allocation4 + $0x280] sm:$0xff] %v934
        %939 = vst [vmem:[#allocation4 + $0x290] sm:$0xff] %v935
        %v940 = vld [vmem:[#allocation2] sm:$0xff]
        %v941 = vld [vmem:[#allocation2 + $0x8] sm:$0xff]
        %v942 = vld [vmem:[#allocation2 + $0x10] sm:$0xff]
        %v943 = vld [vmem:[#allocation2 + $0x18] sm:$0xff]
        %948 = vrot.lane.b32.xlu0 %v940, 107
        %v949 = vpop.permute.xlu0 %948
        %950 = vrot.lane.b32.xlu0 %v941, 107
        %v951 = vpop.permute.xlu0 %950
        %952 = vrot.lane.b32.xlu0 %v942, 107
        %v953 = vpop.permute.xlu0 %952
        %954 = vrot.lane.b32.xlu0 %v943, 107
        %v955 = vpop.permute.xlu0 %954
        %vm956 = vcmask 875520
        %v957 = vsel %vm956, %v949, %v951
        %v958 = vsel %vm956, %v953, %v955
        %961 = vst [vmem:[#allocation4 + $0x2a0] sm:$0xff] %v957
        %962 = vst [vmem:[#allocation4 + $0x2b0] sm:$0xff] %v958
        %v963 = vld [vmem:[#allocation2] sm:$0xff]
        %v964 = vld [vmem:[#allocation2 + $0x8] sm:$0xff]
        %v965 = vld [vmem:[#allocation2 + $0x10] sm:$0xff]
        %v966 = vld [vmem:[#allocation2 + $0x18] sm:$0xff]
        %971 = vrot.lane.b32.xlu0 %v963, 106
        %v972 = vpop.permute.xlu0 %971
        %973 = vrot.lane.b32.xlu0 %v964, 106
        %v974 = vpop.permute.xlu0 %973
        %975 = vrot.lane.b32.xlu0 %v965, 106
        %v976 = vpop.permute.xlu0 %975
        %977 = vrot.lane.b32.xlu0 %v966, 106
        %v978 = vpop.permute.xlu0 %977
        %vm979 = vcmask 867328
        %v980 = vsel %vm979, %v972, %v974
        %v981 = vsel %vm979, %v976, %v978
        %984 = vst [vmem:[#allocation4 + $0x2c0] sm:$0xff] %v980
        %985 = vst [vmem:[#allocation4 + $0x2d0] sm:$0xff] %v981
        %v986 = vld [vmem:[#allocation2] sm:$0xff]
        %v987 = vld [vmem:[#allocation2 + $0x8] sm:$0xff]
        %v988 = vld [vmem:[#allocation2 + $0x10] sm:$0xff]
        %v989 = vld [vmem:[#allocation2 + $0x18] sm:$0xff]
        %994 = vrot.lane.b32.xlu0 %v986, 105
        %v995 = vpop.permute.xlu0 %994
        %996 = vrot.lane.b32.xlu0 %v987, 105
        %v997 = vpop.permute.xlu0 %996
        %998 = vrot.lane.b32.xlu0 %v988, 105
        %v999 = vpop.permute.xlu0 %998
        %1000 = vrot.lane.b32.xlu0 %v989, 105
        %v1001 = vpop.permute.xlu0 %1000
        %vm1002 = vcmask 859136
        %v1003 = vsel %vm1002, %v995, %v997
        %v1004 = vsel %vm1002, %v999, %v1001
        %1007 = vst [vmem:[#allocation4 + $0x2e0] sm:$0xff] %v1003
        %1008 = vst [vmem:[#allocation4 + $0x2f0] sm:$0xff] %v1004
        %v1009 = vld [vmem:[#allocation2] sm:$0xff]
        %v1010 = vld [vmem:[#allocation2 + $0x8] sm:$0xff]
        %v1011 = vld [vmem:[#allocation2 + $0x10] sm:$0xff]
        %v1012 = vld [vmem:[#allocation2 + $0x18] sm:$0xff]
        %1017 = vrot.lane.b32.xlu0 %v1009, 104
        %v1018 = vpop.permute.xlu0 %1017
        %1019 = vrot.lane.b32.xlu0 %v1010, 104
        %v1020 = vpop.permute.xlu0 %1019
        %1021 = vrot.lane.b32.xlu0 %v1011, 104
        %v1022 = vpop.permute.xlu0 %1021
        %1023 = vrot.lane.b32.xlu0 %v1012, 104
        %v1024 = vpop.permute.xlu0 %1023
        %vm1025 = vcmask 850944
        %v1026 = vsel %vm1025, %v1018, %v1020
        %v1027 = vsel %vm1025, %v1022, %v1024
        %1030 = vst [vmem:[#allocation4 + $0x300] sm:$0xff] %v1026
        %1031 = vst [vmem:[#allocation4 + $0x310] sm:$0xff] %v1027
        %v1032 = vld [vmem:[#allocation2] sm:$0xff]
        %v1033 = vld [vmem:[#allocation2 + $0x8] sm:$0xff]
        %v1034 = vld [vmem:[#allocation2 + $0x10] sm:$0xff]
        %v1035 = vld [vmem:[#allocation2 + $0x18] sm:$0xff]
        %1040 = vrot.lane.b32.xlu0 %v1032, 103
        %v1041 = vpop.permute.xlu0 %1040
        %1042 = vrot.lane.b32.xlu0 %v1033, 103
        %v1043 = vpop.permute.xlu0 %1042
        %1044 = vrot.lane.b32.xlu0 %v1034, 103
        %v1045 = vpop.permute.xlu0 %1044
        %1046 = vrot.lane.b32.xlu0 %v1035, 103
        %v1047 = vpop.permute.xlu0 %1046
        %vm1048 = vcmask 842752
        %v1049 = vsel %vm1048, %v1041, %v1043
        %v1050 = vsel %vm1048, %v1045, %v1047
        %1053 = vst [vmem:[#allocation4 + $0x320] sm:$0xff] %v1049
        %1054 = vst [vmem:[#allocation4 + $0x330] sm:$0xff] %v1050
        %v1055 = vld [vmem:[#allocation2] sm:$0xff]
        %v1056 = vld [vmem:[#allocation2 + $0x8] sm:$0xff]
        %v1057 = vld [vmem:[#allocation2 + $0x10] sm:$0xff]
        %v1058 = vld [vmem:[#allocation2 + $0x18] sm:$0xff]
        %1063 = vrot.lane.b32.xlu0 %v1055, 102
        %v1064 = vpop.permute.xlu0 %1063
        %1065 = vrot.lane.b32.xlu0 %v1056, 102
        %v1066 = vpop.permute.xlu0 %1065
        %1067 = vrot.lane.b32.xlu0 %v1057, 102
        %v1068 = vpop.permute.xlu0 %1067
        %1069 = vrot.lane.b32.xlu0 %v1058, 102
        %v1070 = vpop.permute.xlu0 %1069
        %vm1071 = vcmask 834560
        %v1072 = vsel %vm1071, %v1064, %v1066
        %v1073 = vsel %vm1071, %v1068, %v1070
        %1076 = vst [vmem:[#allocation4 + $0x340] sm:$0xff] %v1072
        %1077 = vst [vmem:[#allocation4 + $0x350] sm:$0xff] %v1073
        %v1078 = vld [vmem:[#allocation2] sm:$0xff]
        %v1079 = vld [vmem:[#allocation2 + $0x8] sm:$0xff]
        %v1080 = vld [vmem:[#allocation2 + $0x10] sm:$0xff]
        %v1081 = vld [vmem:[#allocation2 + $0x18] sm:$0xff]
        %1086 = vrot.lane.b32.xlu0 %v1078, 101
        %v1087 = vpop.permute.xlu0 %1086
        %1088 = vrot.lane.b32.xlu0 %v1079, 101
        %v1089 = vpop.permute.xlu0 %1088
        %1090 = vrot.lane.b32.xlu0 %v1080, 101
        %v1091 = vpop.permute.xlu0 %1090
        %1092 = vrot.lane.b32.xlu0 %v1081, 101
        %v1093 = vpop.permute.xlu0 %1092
        %vm1094 = vcmask 826368
        %v1095 = vsel %vm1094, %v1087, %v1089
        %v1096 = vsel %vm1094, %v1091, %v1093
        %1099 = vst [vmem:[#allocation4 + $0x360] sm:$0xff] %v1095
        %1100 = vst [vmem:[#allocation4 + $0x370] sm:$0xff] %v1096
        %v1101 = vld [vmem:[#allocation2] sm:$0xff]
        %v1102 = vld [vmem:[#allocation2 + $0x8] sm:$0xff]
        %v1103 = vld [vmem:[#allocation2 + $0x10] sm:$0xff]
        %v1104 = vld [vmem:[#allocation2 + $0x18] sm:$0xff]
        %1109 = vrot.lane.b32.xlu0 %v1101, 100
        %v1110 = vpop.permute.xlu0 %1109
        %1111 = vrot.lane.b32.xlu0 %v1102, 100
        %v1112 = vpop.permute.xlu0 %1111
        %1113 = vrot.lane.b32.xlu0 %v1103, 100
        %v1114 = vpop.permute.xlu0 %1113
        %1115 = vrot.lane.b32.xlu0 %v1104, 100
        %v1116 = vpop.permute.xlu0 %1115
        %vm1117 = vcmask 818176
        %v1118 = vsel %vm1117, %v1110, %v1112
        %v1119 = vsel %vm1117, %v1114, %v1116
        %1122 = vst [vmem:[#allocation4 + $0x380] sm:$0xff] %v1118
        %1123 = vst [vmem:[#allocation4 + $0x390] sm:$0xff] %v1119
        %v1124 = vld [vmem:[#allocation2] sm:$0xff]
        %v1125 = vld [vmem:[#allocation2 + $0x8] sm:$0xff]
        %v1126 = vld [vmem:[#allocation2 + $0x10] sm:$0xff]
        %v1127 = vld [vmem:[#allocation2 + $0x18] sm:$0xff]
        %1132 = vrot.lane.b32.xlu0 %v1124, 99
        %v1133 = vpop.permute.xlu0 %1132
        %1134 = vrot.lane.b32.xlu0 %v1125, 99
        %v1135 = vpop.permute.xlu0 %1134
        %1136 = vrot.lane.b32.xlu0 %v1126, 99
        %v1137 = vpop.permute.xlu0 %1136
        %1138 = vrot.lane.b32.xlu0 %v1127, 99
        %v1139 = vpop.permute.xlu0 %1138
        %vm1140 = vcmask 809984
        %v1141 = vsel %vm1140, %v1133, %v1135
        %v1142 = vsel %vm1140, %v1137, %v1139
        %1145 = vst [vmem:[#allocation4 + $0x3a0] sm:$0xff] %v1141
        %1146 = vst [vmem:[#allocation4 + $0x3b0] sm:$0xff] %v1142
        %v1147 = vld [vmem:[#allocation2] sm:$0xff]
        %v1148 = vld [vmem:[#allocation2 + $0x8] sm:$0xff]
        %v1149 = vld [vmem:[#allocation2 + $0x10] sm:$0xff]
        %v1150 = vld [vmem:[#allocation2 + $0x18] sm:$0xff]
        %1155 = vrot.lane.b32.xlu0 %v1147, 98
        %v1156 = vpop.permute.xlu0 %1155
        %1157 = vrot.lane.b32.xlu0 %v1148, 98
        %v1158 = vpop.permute.xlu0 %1157
        %1159 = vrot.lane.b32.xlu0 %v1149, 98
        %v1160 = vpop.permute.xlu0 %1159
        %1161 = vrot.lane.b32.xlu0 %v1150, 98
        %v1162 = vpop.permute.xlu0 %1161
        %vm1163 = vcmask 801792
        %v1164 = vsel %vm1163, %v1156, %v1158
        %v1165 = vsel %vm1163, %v1160, %v1162
        %1168 = vst [vmem:[#allocation4 + $0x3c0] sm:$0xff] %v1164
        %1169 = vst [vmem:[#allocation4 + $0x3d0] sm:$0xff] %v1165
        %v1170 = vld [vmem:[#allocation2] sm:$0xff]
        %v1171 = vld [vmem:[#allocation2 + $0x8] sm:$0xff]
        %v1172 = vld [vmem:[#allocation2 + $0x10] sm:$0xff]
        %v1173 = vld [vmem:[#allocation2 + $0x18] sm:$0xff]
        %1178 = vrot.lane.b32.xlu0 %v1170, 97
        %v1179 = vpop.permute.xlu0 %1178
        %1180 = vrot.lane.b32.xlu0 %v1171, 97
        %v1181 = vpop.permute.xlu0 %1180
        %1182 = vrot.lane.b32.xlu0 %v1172, 97
        %v1183 = vpop.permute.xlu0 %1182
        %1184 = vrot.lane.b32.xlu0 %v1173, 97
        %v1185 = vpop.permute.xlu0 %1184
        %vm1186 = vcmask 793600
        %v1187 = vsel %vm1186, %v1179, %v1181
        %v1188 = vsel %vm1186, %v1183, %v1185
        %1191 = vst [vmem:[#allocation4 + $0x3e0] sm:$0xff] %v1187
        %1192 = vst [vmem:[#allocation4 + $0x3f0] sm:$0xff] %v1188
        %v1193 = vld [vmem:[#allocation2] sm:$0xff]
        %v1194 = vld [vmem:[#allocation2 + $0x8] sm:$0xff]
        %v1195 = vld [vmem:[#allocation2 + $0x10] sm:$0xff]
        %v1196 = vld [vmem:[#allocation2 + $0x18] sm:$0xff]
        %1201 = vrot.lane.b32.xlu0 %v1193, 96
        %v1202 = vpop.permute.xlu0 %1201
        %1203 = vrot.lane.b32.xlu0 %v1194, 96
        %v1204 = vpop.permute.xlu0 %1203
        %1205 = vrot.lane.b32.xlu0 %v1195, 96
        %v1206 = vpop.permute.xlu0 %1205
        %1207 = vrot.lane.b32.xlu0 %v1196, 96
        %v1208 = vpop.permute.xlu0 %1207
        %vm1209 = vcmask 785408
        %v1210 = vsel %vm1209, %v1202, %v1204
        %v1211 = vsel %vm1209, %v1206, %v1208
        %1214 = vst [vmem:[#allocation4 + $0x400] sm:$0xff] %v1210
        %1215 = vst [vmem:[#allocation4 + $0x410] sm:$0xff] %v1211
        %v1216 = vld [vmem:[#allocation2] sm:$0xff]
        %v1217 = vld [vmem:[#allocation2 + $0x8] sm:$0xff]
        %v1218 = vld [vmem:[#allocation2 + $0x10] sm:$0xff]
        %v1219 = vld [vmem:[#allocation2 + $0x18] sm:$0xff]
        %1224 = vrot.lane.b32.xlu0 %v1216, 95
        %v1225 = vpop.permute.xlu0 %1224
        %1226 = vrot.lane.b32.xlu0 %v1217, 95
        %v1227 = vpop.permute.xlu0 %1226
        %1228 = vrot.lane.b32.xlu0 %v1218, 95
        %v1229 = vpop.permute.xlu0 %1228
        %1230 = vrot.lane.b32.xlu0 %v1219, 95
        %v1231 = vpop.permute.xlu0 %1230
        %vm1232 = vcmask 777216
        %v1233 = vsel %vm1232, %v1225, %v1227
        %v1234 = vsel %vm1232, %v1229, %v1231
        %1237 = vst [vmem:[#allocation4 + $0x420] sm:$0xff] %v1233
        %1238 = vst [vmem:[#allocation4 + $0x430] sm:$0xff] %v1234
        %v1239 = vld [vmem:[#allocation2] sm:$0xff]
        %v1240 = vld [vmem:[#allocation2 + $0x8] sm:$0xff]
        %v1241 = vld [vmem:[#allocation2 + $0x10] sm:$0xff]
        %v1242 = vld [vmem:[#allocation2 + $0x18] sm:$0xff]
        %1247 = vrot.lane.b32.xlu0 %v1239, 94
        %v1248 = vpop.permute.xlu0 %1247
        %1249 = vrot.lane.b32.xlu0 %v1240, 94
        %v1250 = vpop.permute.xlu0 %1249
        %1251 = vrot.lane.b32.xlu0 %v1241, 94
        %v1252 = vpop.permute.xlu0 %1251
        %1253 = vrot.lane.b32.xlu0 %v1242, 94
        %v1254 = vpop.permute.xlu0 %1253
        %vm1255 = vcmask 769024
        %v1256 = vsel %vm1255, %v1248, %v1250
        %v1257 = vsel %vm1255, %v1252, %v1254
        %1260 = vst [vmem:[#allocation4 + $0x440] sm:$0xff] %v1256
        %1261 = vst [vmem:[#allocation4 + $0x450] sm:$0xff] %v1257
        %v1262 = vld [vmem:[#allocation2] sm:$0xff]
        %v1263 = vld [vmem:[#allocation2 + $0x8] sm:$0xff]
        %v1264 = vld [vmem:[#allocation2 + $0x10] sm:$0xff]
        %v1265 = vld [vmem:[#allocation2 + $0x18] sm:$0xff]
        %1270 = vrot.lane.b32.xlu0 %v1262, 93
        %v1271 = vpop.permute.xlu0 %1270
        %1272 = vrot.lane.b32.xlu0 %v1263, 93
        %v1273 = vpop.permute.xlu0 %1272
        %1274 = vrot.lane.b32.xlu0 %v1264, 93
        %v1275 = vpop.permute.xlu0 %1274
        %1276 = vrot.lane.b32.xlu0 %v1265, 93
        %v1277 = vpop.permute.xlu0 %1276
        %vm1278 = vcmask 760832
        %v1279 = vsel %vm1278, %v1271, %v1273
        %v1280 = vsel %vm1278, %v1275, %v1277
        %1283 = vst [vmem:[#allocation4 + $0x460] sm:$0xff] %v1279
        %1284 = vst [vmem:[#allocation4 + $0x470] sm:$0xff] %v1280
        %v1285 = vld [vmem:[#allocation2] sm:$0xff]
        %v1286 = vld [vmem:[#allocation2 + $0x8] sm:$0xff]
        %v1287 = vld [vmem:[#allocation2 + $0x10] sm:$0xff]
        %v1288 = vld [vmem:[#allocation2 + $0x18] sm:$0xff]
        %1293 = vrot.lane.b32.xlu0 %v1285, 92
        %v1294 = vpop.permute.xlu0 %1293
        %1295 = vrot.lane.b32.xlu0 %v1286, 92
        %v1296 = vpop.permute.xlu0 %1295
        %1297 = vrot.lane.b32.xlu0 %v1287, 92
        %v1298 = vpop.permute.xlu0 %1297
        %1299 = vrot.lane.b32.xlu0 %v1288, 92
        %v1300 = vpop.permute.xlu0 %1299
        %vm1301 = vcmask 752640
        %v1302 = vsel %vm1301, %v1294, %v1296
        %v1303 = vsel %vm1301, %v1298, %v1300
        %1306 = vst [vmem:[#allocation4 + $0x480] sm:$0xff] %v1302
        %1307 = vst [vmem:[#allocation4 + $0x490] sm:$0xff] %v1303
        %v1308 = vld [vmem:[#allocation2] sm:$0xff]
        %v1309 = vld [vmem:[#allocation2 + $0x8] sm:$0xff]
        %v1310 = vld [vmem:[#allocation2 + $0x10] sm:$0xff]
        %v1311 = vld [vmem:[#allocation2 + $0x18] sm:$0xff]
        %1316 = vrot.lane.b32.xlu0 %v1308, 91
        %v1317 = vpop.permute.xlu0 %1316
        %1318 = vrot.lane.b32.xlu0 %v1309, 91
        %v1319 = vpop.permute.xlu0 %1318
        %1320 = vrot.lane.b32.xlu0 %v1310, 91
        %v1321 = vpop.permute.xlu0 %1320
        %1322 = vrot.lane.b32.xlu0 %v1311, 91
        %v1323 = vpop.permute.xlu0 %1322
        %vm1324 = vcmask 744448
        %v1325 = vsel %vm1324, %v1317, %v1319
        %v1326 = vsel %vm1324, %v1321, %v1323
        %1329 = vst [vmem:[#allocation4 + $0x4a0] sm:$0xff] %v1325
        %1330 = vst [vmem:[#allocation4 + $0x4b0] sm:$0xff] %v1326
        %v1331 = vld [vmem:[#allocation2] sm:$0xff]
        %v1332 = vld [vmem:[#allocation2 + $0x8] sm:$0xff]
        %v1333 = vld [vmem:[#allocation2 + $0x10] sm:$0xff]
        %v1334 = vld [vmem:[#allocation2 + $0x18] sm:$0xff]
        %1339 = vrot.lane.b32.xlu0 %v1331, 90
        %v1340 = vpop.permute.xlu0 %1339
        %1341 = vrot.lane.b32.xlu0 %v1332, 90
        %v1342 = vpop.permute.xlu0 %1341
        %1343 = vrot.lane.b32.xlu0 %v1333, 90
        %v1344 = vpop.permute.xlu0 %1343
        %1345 = vrot.lane.b32.xlu0 %v1334, 90
        %v1346 = vpop.permute.xlu0 %1345
        %vm1347 = vcmask 736256
        %v1348 = vsel %vm1347, %v1340, %v1342
        %v1349 = vsel %vm1347, %v1344, %v1346
        %1352 = vst [vmem:[#allocation4 + $0x4c0] sm:$0xff] %v1348
        %1353 = vst [vmem:[#allocation4 + $0x4d0] sm:$0xff] %v1349
        %v1354 = vpack.c.bf16 %v474, %v474
        %1355 = vst [vmem:[#allocation4 + $0x4e0] sm:$0x3] %v1354
        %s1356 = scalar_lea.vmem [#allocation2], 32
        %v1357 = vld [vmem:[%s1356] sm:$0xff]
        %v1358 = vld [vmem:[%s1356 + $0x10] sm:$0xff]
        %1359 = vst [vmem:[#allocation4 + $0x8] sm:$0xff] %v1357
        %1360 = vst [vmem:[#allocation4 + $0x18] sm:$0xff] %v1358
        %v1361 = vld [vmem:[%s1356] sm:$0xff]
        %v1362 = vld [vmem:[%s1356 + $0x8] sm:$0xff]
        %v1363 = vld [vmem:[%s1356 + $0x10] sm:$0xff]
        %v1364 = vld [vmem:[%s1356 + $0x18] sm:$0xff]
        %1369 = vrot.lane.b32.xlu0 %v1361, 127
        %v1370 = vpop.permute.xlu0 %1369
        %1371 = vrot.lane.b32.xlu0 %v1362, 127
        %v1372 = vpop.permute.xlu0 %1371
        %1373 = vrot.lane.b32.xlu0 %v1363, 127
        %v1374 = vpop.permute.xlu0 %1373
        %1375 = vrot.lane.b32.xlu0 %v1364, 127
        %v1376 = vpop.permute.xlu0 %1375
        %v1377 = vsel %vm496, %v1370, %v1372
        %v1378 = vsel %vm496, %v1374, %v1376
        %1381 = vst [vmem:[#allocation4 + $0x28] sm:$0xff] %v1377
        %1382 = vst [vmem:[#allocation4 + $0x38] sm:$0xff] %v1378
        %v1383 = vld [vmem:[%s1356] sm:$0xff]
        %v1384 = vld [vmem:[%s1356 + $0x8] sm:$0xff]
        %v1385 = vld [vmem:[%s1356 + $0x10] sm:$0xff]
        %v1386 = vld [vmem:[%s1356 + $0x18] sm:$0xff]
        %1391 = vrot.lane.b32.xlu0 %v1383, 126
        %v1392 = vpop.permute.xlu0 %1391
        %1393 = vrot.lane.b32.xlu0 %v1384, 126
        %v1394 = vpop.permute.xlu0 %1393
        %1395 = vrot.lane.b32.xlu0 %v1385, 126
        %v1396 = vpop.permute.xlu0 %1395
        %1397 = vrot.lane.b32.xlu0 %v1386, 126
        %v1398 = vpop.permute.xlu0 %1397
        %v1399 = vsel %vm519, %v1392, %v1394
        %v1400 = vsel %vm519, %v1396, %v1398
        %1403 = vst [vmem:[#allocation4 + $0x48] sm:$0xff] %v1399
        %1404 = vst [vmem:[#allocation4 + $0x58] sm:$0xff] %v1400
        %v1405 = vld [vmem:[%s1356] sm:$0xff]
        %v1406 = vld [vmem:[%s1356 + $0x8] sm:$0xff]
        %v1407 = vld [vmem:[%s1356 + $0x10] sm:$0xff]
        %v1408 = vld [vmem:[%s1356 + $0x18] sm:$0xff]
        %1413 = vrot.lane.b32.xlu0 %v1405, 125
        %v1414 = vpop.permute.xlu0 %1413
        %1415 = vrot.lane.b32.xlu0 %v1406, 125
        %v1416 = vpop.permute.xlu0 %1415
        %1417 = vrot.lane.b32.xlu0 %v1407, 125
        %v1418 = vpop.permute.xlu0 %1417
        %1419 = vrot.lane.b32.xlu0 %v1408, 125
        %v1420 = vpop.permute.xlu0 %1419
        %v1421 = vsel %vm542, %v1414, %v1416
        %v1422 = vsel %vm542, %v1418, %v1420
        %1425 = vst [vmem:[#allocation4 + $0x68] sm:$0xff] %v1421
        %1426 = vst [vmem:[#allocation4 + $0x78] sm:$0xff] %v1422
        %v1427 = vld [vmem:[%s1356] sm:$0xff]
        %v1428 = vld [vmem:[%s1356 + $0x8] sm:$0xff]
        %v1429 = vld [vmem:[%s1356 + $0x10] sm:$0xff]
        %v1430 = vld [vmem:[%s1356 + $0x18] sm:$0xff]
        %1435 = vrot.lane.b32.xlu0 %v1427, 124
        %v1436 = vpop.permute.xlu0 %1435
        %1437 = vrot.lane.b32.xlu0 %v1428, 124
        %v1438 = vpop.permute.xlu0 %1437
        %1439 = vrot.lane.b32.xlu0 %v1429, 124
        %v1440 = vpop.permute.xlu0 %1439
        %1441 = vrot.lane.b32.xlu0 %v1430, 124
        %v1442 = vpop.permute.xlu0 %1441
        %v1443 = vsel %vm565, %v1436, %v1438
        %v1444 = vsel %vm565, %v1440, %v1442
        %1447 = vst [vmem:[#allocation4 + $0x88] sm:$0xff] %v1443
        %1448 = vst [vmem:[#allocation4 + $0x98] sm:$0xff] %v1444
        %v1449 = vld [vmem:[%s1356] sm:$0xff]
        %v1450 = vld [vmem:[%s1356 + $0x8] sm:$0xff]
        %v1451 = vld [vmem:[%s1356 + $0x10] sm:$0xff]
        %v1452 = vld [vmem:[%s1356 + $0x18] sm:$0xff]
        %1457 = vrot.lane.b32.xlu0 %v1449, 123
        %v1458 = vpop.permute.xlu0 %1457
        %1459 = vrot.lane.b32.xlu0 %v1450, 123
        %v1460 = vpop.permute.xlu0 %1459
        %1461 = vrot.lane.b32.xlu0 %v1451, 123
        %v1462 = vpop.permute.xlu0 %1461
        %1463 = vrot.lane.b32.xlu0 %v1452, 123
        %v1464 = vpop.permute.xlu0 %1463
        %v1465 = vsel %vm588, %v1458, %v1460
        %v1466 = vsel %vm588, %v1462, %v1464
        %1469 = vst [vmem:[#allocation4 + $0xa8] sm:$0xff] %v1465
        %1470 = vst [vmem:[#allocation4 + $0xb8] sm:$0xff] %v1466
        %v1471 = vld [vmem:[%s1356] sm:$0xff]
        %v1472 = vld [vmem:[%s1356 + $0x8] sm:$0xff]
        %v1473 = vld [vmem:[%s1356 + $0x10] sm:$0xff]
        %v1474 = vld [vmem:[%s1356 + $0x18] sm:$0xff]
        %1479 = vrot.lane.b32.xlu0 %v1471, 122
        %v1480 = vpop.permute.xlu0 %1479
        %1481 = vrot.lane.b32.xlu0 %v1472, 122
        %v1482 = vpop.permute.xlu0 %1481
        %1483 = vrot.lane.b32.xlu0 %v1473, 122
        %v1484 = vpop.permute.xlu0 %1483
        %1485 = vrot.lane.b32.xlu0 %v1474, 122
        %v1486 = vpop.permute.xlu0 %1485
        %v1487 = vsel %vm611, %v1480, %v1482
        %v1488 = vsel %vm611, %v1484, %v1486
        %1491 = vst [vmem:[#allocation4 + $0xc8] sm:$0xff] %v1487
        %1492 = vst [vmem:[#allocation4 + $0xd8] sm:$0xff] %v1488
        %v1493 = vld [vmem:[%s1356] sm:$0xff]
        %v1494 = vld [vmem:[%s1356 + $0x8] sm:$0xff]
        %v1495 = vld [vmem:[%s1356 + $0x10] sm:$0xff]
        %v1496 = vld [vmem:[%s1356 + $0x18] sm:$0xff]
        %1501 = vrot.lane.b32.xlu0 %v1493, 121
        %v1502 = vpop.permute.xlu0 %1501
        %1503 = vrot.lane.b32.xlu0 %v1494, 121
        %v1504 = vpop.permute.xlu0 %1503
        %1505 = vrot.lane.b32.xlu0 %v1495, 121
        %v1506 = vpop.permute.xlu0 %1505
        %1507 = vrot.lane.b32.xlu0 %v1496, 121
        %v1508 = vpop.permute.xlu0 %1507
        %v1509 = vsel %vm634, %v1502, %v1504
        %v1510 = vsel %vm634, %v1506, %v1508
        %1513 = vst [vmem:[#allocation4 + $0xe8] sm:$0xff] %v1509
        %1514 = vst [vmem:[#allocation4 + $0xf8] sm:$0xff] %v1510
        %v1515 = vld [vmem:[%s1356] sm:$0xff]
        %v1516 = vld [vmem:[%s1356 + $0x8] sm:$0xff]
        %v1517 = vld [vmem:[%s1356 + $0x10] sm:$0xff]
        %v1518 = vld [vmem:[%s1356 + $0x18] sm:$0xff]
        %1523 = vrot.lane.b32.xlu0 %v1515, 120
        %v1524 = vpop.permute.xlu0 %1523
        %1525 = vrot.lane.b32.xlu0 %v1516, 120
        %v1526 = vpop.permute.xlu0 %1525
        %1527 = vrot.lane.b32.xlu0 %v1517, 120
        %v1528 = vpop.permute.xlu0 %1527
        %1529 = vrot.lane.b32.xlu0 %v1518, 120
        %v1530 = vpop.permute.xlu0 %1529
        %v1531 = vsel %vm657, %v1524, %v1526
        %v1532 = vsel %vm657, %v1528, %v1530
        %1535 = vst [vmem:[#allocation4 + $0x108] sm:$0xff] %v1531
        %1536 = vst [vmem:[#allocation4 + $0x118] sm:$0xff] %v1532
        %v1537 = vld [vmem:[%s1356] sm:$0xff]
        %v1538 = vld [vmem:[%s1356 + $0x8] sm:$0xff]
        %v1539 = vld [vmem:[%s1356 + $0x10] sm:$0xff]
        %v1540 = vld [vmem:[%s1356 + $0x18] sm:$0xff]
        %1545 = vrot.lane.b32.xlu0 %v1537, 119
        %v1546 = vpop.permute.xlu0 %1545
        %1547 = vrot.lane.b32.xlu0 %v1538, 119
        %v1548 = vpop.permute.xlu0 %1547
        %1549 = vrot.lane.b32.xlu0 %v1539, 119
        %v1550 = vpop.permute.xlu0 %1549
        %1551 = vrot.lane.b32.xlu0 %v1540, 119
        %v1552 = vpop.permute.xlu0 %1551
        %v1553 = vsel %vm680, %v1546, %v1548
        %v1554 = vsel %vm680, %v1550, %v1552
        %1557 = vst [vmem:[#allocation4 + $0x128] sm:$0xff] %v1553
        %1558 = vst [vmem:[#allocation4 + $0x138] sm:$0xff] %v1554
        %v1559 = vld [vmem:[%s1356] sm:$0xff]
        %v1560 = vld [vmem:[%s1356 + $0x8] sm:$0xff]
        %v1561 = vld [vmem:[%s1356 + $0x10] sm:$0xff]
        %v1562 = vld [vmem:[%s1356 + $0x18] sm:$0xff]
        %1567 = vrot.lane.b32.xlu0 %v1559, 118
        %v1568 = vpop.permute.xlu0 %1567
        %1569 = vrot.lane.b32.xlu0 %v1560, 118
        %v1570 = vpop.permute.xlu0 %1569
        %1571 = vrot.lane.b32.xlu0 %v1561, 118
        %v1572 = vpop.permute.xlu0 %1571
        %1573 = vrot.lane.b32.xlu0 %v1562, 118
        %v1574 = vpop.permute.xlu0 %1573
        %v1575 = vsel %vm703, %v1568, %v1570
        %v1576 = vsel %vm703, %v1572, %v1574
        %1579 = vst [vmem:[#allocation4 + $0x148] sm:$0xff] %v1575
        %1580 = vst [vmem:[#allocation4 + $0x158] sm:$0xff] %v1576
        %v1581 = vld [vmem:[%s1356] sm:$0xff]
        %v1582 = vld [vmem:[%s1356 + $0x8] sm:$0xff]
        %v1583 = vld [vmem:[%s1356 + $0x10] sm:$0xff]
        %v1584 = vld [vmem:[%s1356 + $0x18] sm:$0xff]
        %1589 = vrot.lane.b32.xlu0 %v1581, 117
        %v1590 = vpop.permute.xlu0 %1589
        %1591 = vrot.lane.b32.xlu0 %v1582, 117
        %v1592 = vpop.permute.xlu0 %1591
        %1593 = vrot.lane.b32.xlu0 %v1583, 117
        %v1594 = vpop.permute.xlu0 %1593
        %1595 = vrot.lane.b32.xlu0 %v1584, 117
        %v1596 = vpop.permute.xlu0 %1595
        %v1597 = vsel %vm726, %v1590, %v1592
        %v1598 = vsel %vm726, %v1594, %v1596
        %1601 = vst [vmem:[#allocation4 + $0x168] sm:$0xff] %v1597
        %1602 = vst [vmem:[#allocation4 + $0x178] sm:$0xff] %v1598
        %v1603 = vld [vmem:[%s1356] sm:$0xff]
        %v1604 = vld [vmem:[%s1356 + $0x8] sm:$0xff]
        %v1605 = vld [vmem:[%s1356 + $0x10] sm:$0xff]
        %v1606 = vld [vmem:[%s1356 + $0x18] sm:$0xff]
        %1611 = vrot.lane.b32.xlu0 %v1603, 116
        %v1612 = vpop.permute.xlu0 %1611
        %1613 = vrot.lane.b32.xlu0 %v1604, 116
        %v1614 = vpop.permute.xlu0 %1613
        %1615 = vrot.lane.b32.xlu0 %v1605, 116
        %v1616 = vpop.permute.xlu0 %1615
        %1617 = vrot.lane.b32.xlu0 %v1606, 116
        %v1618 = vpop.permute.xlu0 %1617
        %v1619 = vsel %vm749, %v1612, %v1614
        %v1620 = vsel %vm749, %v1616, %v1618
        %1623 = vst [vmem:[#allocation4 + $0x188] sm:$0xff] %v1619
        %1624 = vst [vmem:[#allocation4 + $0x198] sm:$0xff] %v1620
        %v1625 = vld [vmem:[%s1356] sm:$0xff]
        %v1626 = vld [vmem:[%s1356 + $0x8] sm:$0xff]
        %v1627 = vld [vmem:[%s1356 + $0x10] sm:$0xff]
        %v1628 = vld [vmem:[%s1356 + $0x18] sm:$0xff]
        %1633 = vrot.lane.b32.xlu0 %v1625, 115
        %v1634 = vpop.permute.xlu0 %1633
        %1635 = vrot.lane.b32.xlu0 %v1626, 115
        %v1636 = vpop.permute.xlu0 %1635
        %1637 = vrot.lane.b32.xlu0 %v1627, 115
        %v1638 = vpop.permute.xlu0 %1637
        %1639 = vrot.lane.b32.xlu0 %v1628, 115
        %v1640 = vpop.permute.xlu0 %1639
        %v1641 = vsel %vm772, %v1634, %v1636
        %v1642 = vsel %vm772, %v1638, %v1640
        %1645 = vst [vmem:[#allocation4 + $0x1a8] sm:$0xff] %v1641
        %1646 = vst [vmem:[#allocation4 + $0x1b8] sm:$0xff] %v1642
        %v1647 = vld [vmem:[%s1356] sm:$0xff]
        %v1648 = vld [vmem:[%s1356 + $0x8] sm:$0xff]
        %v1649 = vld [vmem:[%s1356 + $0x10] sm:$0xff]
        %v1650 = vld [vmem:[%s1356 + $0x18] sm:$0xff]
        %1655 = vrot.lane.b32.xlu0 %v1647, 114
        %v1656 = vpop.permute.xlu0 %1655
        %1657 = vrot.lane.b32.xlu0 %v1648, 114
        %v1658 = vpop.permute.xlu0 %1657
        %1659 = vrot.lane.b32.xlu0 %v1649, 114
        %v1660 = vpop.permute.xlu0 %1659
        %1661 = vrot.lane.b32.xlu0 %v1650, 114
        %v1662 = vpop.permute.xlu0 %1661
        %v1663 = vsel %vm795, %v1656, %v1658
        %v1664 = vsel %vm795, %v1660, %v1662
        %1667 = vst [vmem:[#allocation4 + $0x1c8] sm:$0xff] %v1663
        %1668 = vst [vmem:[#allocation4 + $0x1d8] sm:$0xff] %v1664
        %v1669 = vld [vmem:[%s1356] sm:$0xff]
        %v1670 = vld [vmem:[%s1356 + $0x8] sm:$0xff]
        %v1671 = vld [vmem:[%s1356 + $0x10] sm:$0xff]
        %v1672 = vld [vmem:[%s1356 + $0x18] sm:$0xff]
        %1677 = vrot.lane.b32.xlu0 %v1669, 113
        %v1678 = vpop.permute.xlu0 %1677
        %1679 = vrot.lane.b32.xlu0 %v1670, 113
        %v1680 = vpop.permute.xlu0 %1679
        %1681 = vrot.lane.b32.xlu0 %v1671, 113
        %v1682 = vpop.permute.xlu0 %1681
        %1683 = vrot.lane.b32.xlu0 %v1672, 113
        %v1684 = vpop.permute.xlu0 %1683
        %v1685 = vsel %vm818, %v1678, %v1680
        %v1686 = vsel %vm818, %v1682, %v1684
        %1689 = vst [vmem:[#allocation4 + $0x1e8] sm:$0xff] %v1685
        %1690 = vst [vmem:[#allocation4 + $0x1f8] sm:$0xff] %v1686
        %v1691 = vld [vmem:[%s1356] sm:$0xff]
        %v1692 = vld [vmem:[%s1356 + $0x8] sm:$0xff]
        %v1693 = vld [vmem:[%s1356 + $0x10] sm:$0xff]
        %v1694 = vld [vmem:[%s1356 + $0x18] sm:$0xff]
        %1699 = vrot.lane.b32.xlu0 %v1691, 112
        %v1700 = vpop.permute.xlu0 %1699
        %1701 = vrot.lane.b32.xlu0 %v1692, 112
        %v1702 = vpop.permute.xlu0 %1701
        %1703 = vrot.lane.b32.xlu0 %v1693, 112
        %v1704 = vpop.permute.xlu0 %1703
        %1705 = vrot.lane.b32.xlu0 %v1694, 112
        %v1706 = vpop.permute.xlu0 %1705
        %v1707 = vsel %vm841, %v1700, %v1702
        %v1708 = vsel %vm841, %v1704, %v1706
        %1711 = vst [vmem:[#allocation4 + $0x208] sm:$0xff] %v1707
        %1712 = vst [vmem:[#allocation4 + $0x218] sm:$0xff] %v1708
        %v1713 = vld [vmem:[%s1356] sm:$0xff]
        %v1714 = vld [vmem:[%s1356 + $0x8] sm:$0xff]
        %v1715 = vld [vmem:[%s1356 + $0x10] sm:$0xff]
        %v1716 = vld [vmem:[%s1356 + $0x18] sm:$0xff]
        %1721 = vrot.lane.b32.xlu0 %v1713, 111
        %v1722 = vpop.permute.xlu0 %1721
        %1723 = vrot.lane.b32.xlu0 %v1714, 111
        %v1724 = vpop.permute.xlu0 %1723
        %1725 = vrot.lane.b32.xlu0 %v1715, 111
        %v1726 = vpop.permute.xlu0 %1725
        %1727 = vrot.lane.b32.xlu0 %v1716, 111
        %v1728 = vpop.permute.xlu0 %1727
        %v1729 = vsel %vm864, %v1722, %v1724
        %v1730 = vsel %vm864, %v1726, %v1728
        %1733 = vst [vmem:[#allocation4 + $0x228] sm:$0xff] %v1729
        %1734 = vst [vmem:[#allocation4 + $0x238] sm:$0xff] %v1730
        %v1735 = vld [vmem:[%s1356] sm:$0xff]
        %v1736 = vld [vmem:[%s1356 + $0x8] sm:$0xff]
        %v1737 = vld [vmem:[%s1356 + $0x10] sm:$0xff]
        %v1738 = vld [vmem:[%s1356 + $0x18] sm:$0xff]
        %1743 = vrot.lane.b32.xlu0 %v1735, 110
        %v1744 = vpop.permute.xlu0 %1743
        %1745 = vrot.lane.b32.xlu0 %v1736, 110
        %v1746 = vpop.permute.xlu0 %1745
        %1747 = vrot.lane.b32.xlu0 %v1737, 110
        %v1748 = vpop.permute.xlu0 %1747
        %1749 = vrot.lane.b32.xlu0 %v1738, 110
        %v1750 = vpop.permute.xlu0 %1749
        %v1751 = vsel %vm887, %v1744, %v1746
        %v1752 = vsel %vm887, %v1748, %v1750
        %1755 = vst [vmem:[#allocation4 + $0x248] sm:$0xff] %v1751
        %1756 = vst [vmem:[#allocation4 + $0x258] sm:$0xff] %v1752
        %v1757 = vld [vmem:[%s1356] sm:$0xff]
        %v1758 = vld [vmem:[%s1356 + $0x8] sm:$0xff]
        %v1759 = vld [vmem:[%s1356 + $0x10] sm:$0xff]
        %v1760 = vld [vmem:[%s1356 + $0x18] sm:$0xff]
        %1765 = vrot.lane.b32.xlu0 %v1757, 109
        %v1766 = vpop.permute.xlu0 %1765
        %1767 = vrot.lane.b32.xlu0 %v1758, 109
        %v1768 = vpop.permute.xlu0 %1767
        %1769 = vrot.lane.b32.xlu0 %v1759, 109
        %v1770 = vpop.permute.xlu0 %1769
        %1771 = vrot.lane.b32.xlu0 %v1760, 109
        %v1772 = vpop.permute.xlu0 %1771
        %v1773 = vsel %vm910, %v1766, %v1768
        %v1774 = vsel %vm910, %v1770, %v1772
        %1777 = vst [vmem:[#allocation4 + $0x268] sm:$0xff] %v1773
        %1778 = vst [vmem:[#allocation4 + $0x278] sm:$0xff] %v1774
        %v1779 = vld [vmem:[%s1356] sm:$0xff]
        %v1780 = vld [vmem:[%s1356 + $0x8] sm:$0xff]
        %v1781 = vld [vmem:[%s1356 + $0x10] sm:$0xff]
        %v1782 = vld [vmem:[%s1356 + $0x18] sm:$0xff]
        %1787 = vrot.lane.b32.xlu0 %v1779, 108
        %v1788 = vpop.permute.xlu0 %1787
        %1789 = vrot.lane.b32.xlu0 %v1780, 108
        %v1790 = vpop.permute.xlu0 %1789
        %1791 = vrot.lane.b32.xlu0 %v1781, 108
        %v1792 = vpop.permute.xlu0 %1791
        %1793 = vrot.lane.b32.xlu0 %v1782, 108
        %v1794 = vpop.permute.xlu0 %1793
        %v1795 = vsel %vm933, %v1788, %v1790
        %v1796 = vsel %vm933, %v1792, %v1794
        %1799 = vst [vmem:[#allocation4 + $0x288] sm:$0xff] %v1795
        %1800 = vst [vmem:[#allocation4 + $0x298] sm:$0xff] %v1796
        %v1801 = vld [vmem:[%s1356] sm:$0xff]
        %v1802 = vld [vmem:[%s1356 + $0x8] sm:$0xff]
        %v1803 = vld [vmem:[%s1356 + $0x10] sm:$0xff]
        %v1804 = vld [vmem:[%s1356 + $0x18] sm:$0xff]
        %1809 = vrot.lane.b32.xlu0 %v1801, 107
        %v1810 = vpop.permute.xlu0 %1809
        %1811 = vrot.lane.b32.xlu0 %v1802, 107
        %v1812 = vpop.permute.xlu0 %1811
        %1813 = vrot.lane.b32.xlu0 %v1803, 107
        %v1814 = vpop.permute.xlu0 %1813
        %1815 = vrot.lane.b32.xlu0 %v1804, 107
        %v1816 = vpop.permute.xlu0 %1815
        %v1817 = vsel %vm956, %v1810, %v1812
        %v1818 = vsel %vm956, %v1814, %v1816
        %1821 = vst [vmem:[#allocation4 + $0x2a8] sm:$0xff] %v1817
        %1822 = vst [vmem:[#allocation4 + $0x2b8] sm:$0xff] %v1818
        %v1823 = vld [vmem:[%s1356] sm:$0xff]
        %v1824 = vld [vmem:[%s1356 + $0x8] sm:$0xff]
        %v1825 = vld [vmem:[%s1356 + $0x10] sm:$0xff]
        %v1826 = vld [vmem:[%s1356 + $0x18] sm:$0xff]
        %1831 = vrot.lane.b32.xlu0 %v1823, 106
        %v1832 = vpop.permute.xlu0 %1831
        %1833 = vrot.lane.b32.xlu0 %v1824, 106
        %v1834 = vpop.permute.xlu0 %1833
        %1835 = vrot.lane.b32.xlu0 %v1825, 106
        %v1836 = vpop.permute.xlu0 %1835
        %1837 = vrot.lane.b32.xlu0 %v1826, 106
        %v1838 = vpop.permute.xlu0 %1837
        %v1839 = vsel %vm979, %v1832, %v1834
        %v1840 = vsel %vm979, %v1836, %v1838
        %1843 = vst [vmem:[#allocation4 + $0x2c8] sm:$0xff] %v1839
        %1844 = vst [vmem:[#allocation4 + $0x2d8] sm:$0xff] %v1840
        %v1845 = vld [vmem:[%s1356] sm:$0xff]
        %v1846 = vld [vmem:[%s1356 + $0x8] sm:$0xff]
        %v1847 = vld [vmem:[%s1356 + $0x10] sm:$0xff]
        %v1848 = vld [vmem:[%s1356 + $0x18] sm:$0xff]
        %1853 = vrot.lane.b32.xlu0 %v1845, 105
        %v1854 = vpop.permute.xlu0 %1853
        %1855 = vrot.lane.b32.xlu0 %v1846, 105
        %v1856 = vpop.permute.xlu0 %1855
        %1857 = vrot.lane.b32.xlu0 %v1847, 105
        %v1858 = vpop.permute.xlu0 %1857
        %1859 = vrot.lane.b32.xlu0 %v1848, 105
        %v1860 = vpop.permute.xlu0 %1859
        %v1861 = vsel %vm1002, %v1854, %v1856
        %v1862 = vsel %vm1002, %v1858, %v1860
        %1865 = vst [vmem:[#allocation4 + $0x2e8] sm:$0xff] %v1861
        %1866 = vst [vmem:[#allocation4 + $0x2f8] sm:$0xff] %v1862
        %v1867 = vld [vmem:[%s1356] sm:$0xff]
        %v1868 = vld [vmem:[%s1356 + $0x8] sm:$0xff]
        %v1869 = vld [vmem:[%s1356 + $0x10] sm:$0xff]
        %v1870 = vld [vmem:[%s1356 + $0x18] sm:$0xff]
        %1875 = vrot.lane.b32.xlu0 %v1867, 104
        %v1876 = vpop.permute.xlu0 %1875
        %1877 = vrot.lane.b32.xlu0 %v1868, 104
        %v1878 = vpop.permute.xlu0 %1877
        %1879 = vrot.lane.b32.xlu0 %v1869, 104
        %v1880 = vpop.permute.xlu0 %1879
        %1881 = vrot.lane.b32.xlu0 %v1870, 104
        %v1882 = vpop.permute.xlu0 %1881
        %v1883 = vsel %vm1025, %v1876, %v1878
        %v1884 = vsel %vm1025, %v1880, %v1882
        %1887 = vst [vmem:[#allocation4 + $0x308] sm:$0xff] %v1883
        %1888 = vst [vmem:[#allocation4 + $0x318] sm:$0xff] %v1884
        %v1889 = vld [vmem:[%s1356] sm:$0xff]
        %v1890 = vld [vmem:[%s1356 + $0x8] sm:$0xff]
        %v1891 = vld [vmem:[%s1356 + $0x10] sm:$0xff]
        %v1892 = vld [vmem:[%s1356 + $0x18] sm:$0xff]
        %1897 = vrot.lane.b32.xlu0 %v1889, 103
        %v1898 = vpop.permute.xlu0 %1897
        %1899 = vrot.lane.b32.xlu0 %v1890, 103
        %v1900 = vpop.permute.xlu0 %1899
        %1901 = vrot.lane.b32.xlu0 %v1891, 103
        %v1902 = vpop.permute.xlu0 %1901
        %1903 = vrot.lane.b32.xlu0 %v1892, 103
        %v1904 = vpop.permute.xlu0 %1903
        %v1905 = vsel %vm1048, %v1898, %v1900
        %v1906 = vsel %vm1048, %v1902, %v1904
        %1909 = vst [vmem:[#allocation4 + $0x328] sm:$0xff] %v1905
        %1910 = vst [vmem:[#allocation4 + $0x338] sm:$0xff] %v1906
        %v1911 = vld [vmem:[%s1356] sm:$0xff]
        %v1912 = vld [vmem:[%s1356 + $0x8] sm:$0xff]
        %v1913 = vld [vmem:[%s1356 + $0x10] sm:$0xff]
        %v1914 = vld [vmem:[%s1356 + $0x18] sm:$0xff]
        %1919 = vrot.lane.b32.xlu0 %v1911, 102
        %v1920 = vpop.permute.xlu0 %1919
        %1921 = vrot.lane.b32.xlu0 %v1912, 102
        %v1922 = vpop.permute.xlu0 %1921
        %1923 = vrot.lane.b32.xlu0 %v1913, 102
        %v1924 = vpop.permute.xlu0 %1923
        %1925 = vrot.lane.b32.xlu0 %v1914, 102
        %v1926 = vpop.permute.xlu0 %1925
        %v1927 = vsel %vm1071, %v1920, %v1922
        %v1928 = vsel %vm1071, %v1924, %v1926
        %1931 = vst [vmem:[#allocation4 + $0x348] sm:$0xff] %v1927
        %1932 = vst [vmem:[#allocation4 + $0x358] sm:$0xff] %v1928
        %v1933 = vld [vmem:[%s1356] sm:$0xff]
        %v1934 = vld [vmem:[%s1356 + $0x8] sm:$0xff]
        %v1935 = vld [vmem:[%s1356 + $0x10] sm:$0xff]
        %v1936 = vld [vmem:[%s1356 + $0x18] sm:$0xff]
        %1941 = vrot.lane.b32.xlu0 %v1933, 101
        %v1942 = vpop.permute.xlu0 %1941
        %1943 = vrot.lane.b32.xlu0 %v1934, 101
        %v1944 = vpop.permute.xlu0 %1943
        %1945 = vrot.lane.b32.xlu0 %v1935, 101
        %v1946 = vpop.permute.xlu0 %1945
        %1947 = vrot.lane.b32.xlu0 %v1936, 101
        %v1948 = vpop.permute.xlu0 %1947
        %v1949 = vsel %vm1094, %v1942, %v1944
        %v1950 = vsel %vm1094, %v1946, %v1948
        %1953 = vst [vmem:[#allocation4 + $0x368] sm:$0xff] %v1949
        %1954 = vst [vmem:[#allocation4 + $0x378] sm:$0xff] %v1950
        %v1955 = vld [vmem:[%s1356] sm:$0xff]
        %v1956 = vld [vmem:[%s1356 + $0x8] sm:$0xff]
        %v1957 = vld [vmem:[%s1356 + $0x10] sm:$0xff]
        %v1958 = vld [vmem:[%s1356 + $0x18] sm:$0xff]
        %1963 = vrot.lane.b32.xlu0 %v1955, 100
        %v1964 = vpop.permute.xlu0 %1963
        %1965 = vrot.lane.b32.xlu0 %v1956, 100
        %v1966 = vpop.permute.xlu0 %1965
        %1967 = vrot.lane.b32.xlu0 %v1957, 100
        %v1968 = vpop.permute.xlu0 %1967
        %1969 = vrot.lane.b32.xlu0 %v1958, 100
        %v1970 = vpop.permute.xlu0 %1969
        %v1971 = vsel %vm1117, %v1964, %v1966
        %v1972 = vsel %vm1117, %v1968, %v1970
        %1975 = vst [vmem:[#allocation4 + $0x388] sm:$0xff] %v1971
        %1976 = vst [vmem:[#allocation4 + $0x398] sm:$0xff] %v1972
        %v1977 = vld [vmem:[%s1356] sm:$0xff]
        %v1978 = vld [vmem:[%s1356 + $0x8] sm:$0xff]
        %v1979 = vld [vmem:[%s1356 + $0x10] sm:$0xff]
        %v1980 = vld [vmem:[%s1356 + $0x18] sm:$0xff]
        %1985 = vrot.lane.b32.xlu0 %v1977, 99
        %v1986 = vpop.permute.xlu0 %1985
        %1987 = vrot.lane.b32.xlu0 %v1978, 99
        %v1988 = vpop.permute.xlu0 %1987
        %1989 = vrot.lane.b32.xlu0 %v1979, 99
        %v1990 = vpop.permute.xlu0 %1989
        %1991 = vrot.lane.b32.xlu0 %v1980, 99
        %v1992 = vpop.permute.xlu0 %1991
        %v1993 = vsel %vm1140, %v1986, %v1988
        %v1994 = vsel %vm1140, %v1990, %v1992
        %1997 = vst [vmem:[#allocation4 + $0x3a8] sm:$0xff] %v1993
        %1998 = vst [vmem:[#allocation4 + $0x3b8] sm:$0xff] %v1994
        %v1999 = vld [vmem:[%s1356] sm:$0xff]
        %v2000 = vld [vmem:[%s1356 + $0x8] sm:$0xff]
        %v2001 = vld [vmem:[%s1356 + $0x10] sm:$0xff]
        %v2002 = vld [vmem:[%s1356 + $0x18] sm:$0xff]
        %2007 = vrot.lane.b32.xlu0 %v1999, 98
        %v2008 = vpop.permute.xlu0 %2007
        %2009 = vrot.lane.b32.xlu0 %v2000, 98
        %v2010 = vpop.permute.xlu0 %2009
        %2011 = vrot.lane.b32.xlu0 %v2001, 98
        %v2012 = vpop.permute.xlu0 %2011
        %2013 = vrot.lane.b32.xlu0 %v2002, 98
        %v2014 = vpop.permute.xlu0 %2013
        %v2015 = vsel %vm1163, %v2008, %v2010
        %v2016 = vsel %vm1163, %v2012, %v2014
        %2019 = vst [vmem:[#allocation4 + $0x3c8] sm:$0xff] %v2015
        %2020 = vst [vmem:[#allocation4 + $0x3d8] sm:$0xff] %v2016
        %v2021 = vld [vmem:[%s1356] sm:$0xff]
        %v2022 = vld [vmem:[%s1356 + $0x8] sm:$0xff]
        %v2023 = vld [vmem:[%s1356 + $0x10] sm:$0xff]
        %v2024 = vld [vmem:[%s1356 + $0x18] sm:$0xff]
        %2029 = vrot.lane.b32.xlu0 %v2021, 97
        %v2030 = vpop.permute.xlu0 %2029
        %2031 = vrot.lane.b32.xlu0 %v2022, 97
        %v2032 = vpop.permute.xlu0 %2031
        %2033 = vrot.lane.b32.xlu0 %v2023, 97
        %v2034 = vpop.permute.xlu0 %2033
        %2035 = vrot.lane.b32.xlu0 %v2024, 97
        %v2036 = vpop.permute.xlu0 %2035
        %v2037 = vsel %vm1186, %v2030, %v2032
        %v2038 = vsel %vm1186, %v2034, %v2036
        %2041 = vst [vmem:[#allocation4 + $0x3e8] sm:$0xff] %v2037
        %2042 = vst [vmem:[#allocation4 + $0x3f8] sm:$0xff] %v2038
        %v2043 = vld [vmem:[%s1356] sm:$0xff]
        %v2044 = vld [vmem:[%s1356 + $0x8] sm:$0xff]
        %v2045 = vld [vmem:[%s1356 + $0x10] sm:$0xff]
        %v2046 = vld [vmem:[%s1356 + $0x18] sm:$0xff]
        %2051 = vrot.lane.b32.xlu0 %v2043, 96
        %v2052 = vpop.permute.xlu0 %2051
        %2053 = vrot.lane.b32.xlu0 %v2044, 96
        %v2054 = vpop.permute.xlu0 %2053
        %2055 = vrot.lane.b32.xlu0 %v2045, 96
        %v2056 = vpop.permute.xlu0 %2055
        %2057 = vrot.lane.b32.xlu0 %v2046, 96
        %v2058 = vpop.permute.xlu0 %2057
        %v2059 = vsel %vm1209, %v2052, %v2054
        %v2060 = vsel %vm1209, %v2056, %v2058
        %2063 = vst [vmem:[#allocation4 + $0x408] sm:$0xff] %v2059
        %2064 = vst [vmem:[#allocation4 + $0x418] sm:$0xff] %v2060
        %v2065 = vld [vmem:[%s1356] sm:$0xff]
        %v2066 = vld [vmem:[%s1356 + $0x8] sm:$0xff]
        %v2067 = vld [vmem:[%s1356 + $0x10] sm:$0xff]
        %v2068 = vld [vmem:[%s1356 + $0x18] sm:$0xff]
        %2073 = vrot.lane.b32.xlu0 %v2065, 95
        %v2074 = vpop.permute.xlu0 %2073
        %2075 = vrot.lane.b32.xlu0 %v2066, 95
        %v2076 = vpop.permute.xlu0 %2075
        %2077 = vrot.lane.b32.xlu0 %v2067, 95
        %v2078 = vpop.permute.xlu0 %2077
        %2079 = vrot.lane.b32.xlu0 %v2068, 95
        %v2080 = vpop.permute.xlu0 %2079
        %v2081 = vsel %vm1232, %v2074, %v2076
        %v2082 = vsel %vm1232, %v2078, %v2080
        %2085 = vst [vmem:[#allocation4 + $0x428] sm:$0xff] %v2081
        %2086 = vst [vmem:[#allocation4 + $0x438] sm:$0xff] %v2082
        %v2087 = vld [vmem:[%s1356] sm:$0xff]
        %v2088 = vld [vmem:[%s1356 + $0x8] sm:$0xff]
        %v2089 = vld [vmem:[%s1356 + $0x10] sm:$0xff]
        %v2090 = vld [vmem:[%s1356 + $0x18] sm:$0xff]
        %2095 = vrot.lane.b32.xlu0 %v2087, 94
        %v2096 = vpop.permute.xlu0 %2095
        %2097 = vrot.lane.b32.xlu0 %v2088, 94
        %v2098 = vpop.permute.xlu0 %2097
        %2099 = vrot.lane.b32.xlu0 %v2089, 94
        %v2100 = vpop.permute.xlu0 %2099
        %2101 = vrot.lane.b32.xlu0 %v2090, 94
        %v2102 = vpop.permute.xlu0 %2101
        %v2103 = vsel %vm1255, %v2096, %v2098
        %v2104 = vsel %vm1255, %v2100, %v2102
        %2107 = vst [vmem:[#allocation4 + $0x448] sm:$0xff] %v2103
        %2108 = vst [vmem:[#allocation4 + $0x458] sm:$0xff] %v2104
        %v2109 = vld [vmem:[%s1356] sm:$0xff]
        %v2110 = vld [vmem:[%s1356 + $0x8] sm:$0xff]
        %v2111 = vld [vmem:[%s1356 + $0x10] sm:$0xff]
        %v2112 = vld [vmem:[%s1356 + $0x18] sm:$0xff]
        %2117 = vrot.lane.b32.xlu0 %v2109, 93
        %v2118 = vpop.permute.xlu0 %2117
        %2119 = vrot.lane.b32.xlu0 %v2110, 93
        %v2120 = vpop.permute.xlu0 %2119
        %2121 = vrot.lane.b32.xlu0 %v2111, 93
        %v2122 = vpop.permute.xlu0 %2121
        %2123 = vrot.lane.b32.xlu0 %v2112, 93
        %v2124 = vpop.permute.xlu0 %2123
        %v2125 = vsel %vm1278, %v2118, %v2120
        %v2126 = vsel %vm1278, %v2122, %v2124
        %2129 = vst [vmem:[#allocation4 + $0x468] sm:$0xff] %v2125
        %2130 = vst [vmem:[#allocation4 + $0x478] sm:$0xff] %v2126
        %v2131 = vld [vmem:[%s1356] sm:$0xff]
        %v2132 = vld [vmem:[%s1356 + $0x8] sm:$0xff]
        %v2133 = vld [vmem:[%s1356 + $0x10] sm:$0xff]
        %v2134 = vld [vmem:[%s1356 + $0x18] sm:$0xff]
        %2139 = vrot.lane.b32.xlu0 %v2131, 92
        %v2140 = vpop.permute.xlu0 %2139
        %2141 = vrot.lane.b32.xlu0 %v2132, 92
        %v2142 = vpop.permute.xlu0 %2141
        %2143 = vrot.lane.b32.xlu0 %v2133, 92
        %v2144 = vpop.permute.xlu0 %2143
        %2145 = vrot.lane.b32.xlu0 %v2134, 92
        %v2146 = vpop.permute.xlu0 %2145
        %v2147 = vsel %vm1301, %v2140, %v2142
        %v2148 = vsel %vm1301, %v2144, %v2146
        %2151 = vst [vmem:[#allocation4 + $0x488] sm:$0xff] %v2147
        %2152 = vst [vmem:[#allocation4 + $0x498] sm:$0xff] %v2148
        %v2153 = vld [vmem:[%s1356] sm:$0xff]
        %v2154 = vld [vmem:[%s1356 + $0x8] sm:$0xff]
        %v2155 = vld [vmem:[%s1356 + $0x10] sm:$0xff]
        %v2156 = vld [vmem:[%s1356 + $0x18] sm:$0xff]
        %2161 = vrot.lane.b32.xlu0 %v2153, 91
        %v2162 = vpop.permute.xlu0 %2161
        %2163 = vrot.lane.b32.xlu0 %v2154, 91
        %v2164 = vpop.permute.xlu0 %2163
        %2165 = vrot.lane.b32.xlu0 %v2155, 91
        %v2166 = vpop.permute.xlu0 %2165
        %2167 = vrot.lane.b32.xlu0 %v2156, 91
        %v2168 = vpop.permute.xlu0 %2167
        %v2169 = vsel %vm1324, %v2162, %v2164
        %v2170 = vsel %vm1324, %v2166, %v2168
        %2173 = vst [vmem:[#allocation4 + $0x4a8] sm:$0xff] %v2169
        %2174 = vst [vmem:[#allocation4 + $0x4b8] sm:$0xff] %v2170
        %v2175 = vld [vmem:[%s1356] sm:$0xff]
        %v2176 = vld [vmem:[%s1356 + $0x8] sm:$0xff]
        %v2177 = vld [vmem:[%s1356 + $0x10] sm:$0xff]
        %v2178 = vld [vmem:[%s1356 + $0x18] sm:$0xff]
        %2183 = vrot.lane.b32.xlu0 %v2175, 90
        %v2184 = vpop.permute.xlu0 %2183
        %2185 = vrot.lane.b32.xlu0 %v2176, 90
        %v2186 = vpop.permute.xlu0 %2185
        %2187 = vrot.lane.b32.xlu0 %v2177, 90
        %v2188 = vpop.permute.xlu0 %2187
        %2189 = vrot.lane.b32.xlu0 %v2178, 90
        %v2190 = vpop.permute.xlu0 %2189
        %v2191 = vsel %vm1347, %v2184, %v2186
        %v2192 = vsel %vm1347, %v2188, %v2190
        %2195 = vst [vmem:[#allocation4 + $0x4c8] sm:$0xff] %v2191
        %2196 = vst [vmem:[#allocation4 + $0x4d8] sm:$0xff] %v2192
        %v2197 = vpack.c.bf16 %v475, %v475
        %2198 = vst [vmem:[#allocation4 + $0x4e8] sm:$0x3] %v2197
        %2199 = vst [vmem:[#allocation4 + $0x4e0] sm:$0xfc] 0
        %2200 = vst [vmem:[#allocation4 + $0x4e8] sm:$0xfc] 0
        %v2201 = vld [vmem:[%s2] sm:$0xff]
        %v2202 = vld [vmem:[%s2 + $0x8] sm:$0xff]
        %v2203 = vld [vmem:[%s2 + $0x10] sm:$0xff]
        %v2204 = vld [vmem:[%s2 + $0x18] sm:$0xff]
        %v2205 = vld [vmem:[%s2 + $0x20] sm:$0xff]
        %v2206 = vld [vmem:[%s2 + $0x28] sm:$0xff]
        %v2207 = vld [vmem:[%s2 + $0x30] sm:$0xff]
        %v2208 = vld [vmem:[%s2 + $0x38] sm:$0xff]
        %v2209 = vld [vmem:[%s2 + $0x40] sm:$0xff]
        %v2210 = vld [vmem:[%s2 + $0x48] sm:$0xff]
        %v2211 = vld [vmem:[%s2 + $0x50] sm:$0xff]
        %v2212 = vld [vmem:[%s2 + $0x58] sm:$0xff]
        %v2213 = vld [vmem:[%s2 + $0x60] sm:$0xff]
        %v2214 = vld [vmem:[%s2 + $0x68] sm:$0xff]
        %v2215 = vld [vmem:[%s2 + $0x70] sm:$0xff]
        %v2216 = vld [vmem:[%s2 + $0x78] sm:$0xff]
        %v2217 = vld [vmem:[%s2 + $0x80] sm:$0xff]
        %v2218 = vld [vmem:[%s2 + $0x88] sm:$0xff]
        %v2219 = vld [vmem:[%s2 + $0x90] sm:$0xff]
        %v2220 = vld [vmem:[%s2 + $0x98] sm:$0xff]
        %v2221 = vld [vmem:[%s2 + $0xa0] sm:$0xff]
        %v2222 = vld [vmem:[%s2 + $0xa8] sm:$0xff]
        %v2223 = vld [vmem:[%s2 + $0xb0] sm:$0xff]
        %v2224 = vld [vmem:[%s2 + $0xb8] sm:$0xff]
        %v2225 = vld [vmem:[%s2 + $0xc0] sm:$0xff]
        %v2226 = vld [vmem:[%s2 + $0xc8] sm:$0xff]
        %v2227 = vld [vmem:[%s2 + $0xd0] sm:$0xff]
        %v2228 = vld [vmem:[%s2 + $0xd8] sm:$0xff]
        %v2229 = vld [vmem:[%s2 + $0xe0] sm:$0xff]
        %v2230 = vld [vmem:[%s2 + $0xe8] sm:$0xff]
        %v2231 = vld [vmem:[%s2 + $0xf0] sm:$0xff]
        %v2232 = vld [vmem:[%s2 + $0xf8] sm:$0xff]
        %v2233 = vld [vmem:[%s2 + $0x100] sm:$0xff]
        %v2234 = vld [vmem:[%s2 + $0x108] sm:$0xff]
        %v2235 = vld [vmem:[%s2 + $0x110] sm:$0xff]
        %v2236 = vld [vmem:[%s2 + $0x118] sm:$0xff]
        %v2237 = vld [vmem:[%s2 + $0x120] sm:$0xff]
        %v2238 = vld [vmem:[%s2 + $0x128] sm:$0xff]
        %v2239 = vld [vmem:[%s2 + $0x130] sm:$0xff]
        %v2240 = vld [vmem:[%s2 + $0x138] sm:$0xff]
        %v2241 = vld [vmem:[%s2 + $0x140] sm:$0xff]
        %v2242 = vld [vmem:[%s2 + $0x148] sm:$0xff]
        %v2243 = vld [vmem:[%s2 + $0x150] sm:$0xff]
        %v2244 = vld [vmem:[%s2 + $0x158] sm:$0xff]
        %v2245 = vld [vmem:[%s2 + $0x160] sm:$0xff]
        %v2246 = vld [vmem:[%s2 + $0x168] sm:$0xff]
        %v2247 = vld [vmem:[%s2 + $0x170] sm:$0xff]
        %v2248 = vld [vmem:[%s2 + $0x178] sm:$0xff]
        %v2249 = vld [vmem:[%s2 + $0x180] sm:$0xff]
        %v2250 = vld [vmem:[%s2 + $0x188] sm:$0xff]
        %v2251 = vld [vmem:[%s2 + $0x190] sm:$0xff]
        %v2252 = vld [vmem:[%s2 + $0x198] sm:$0xff]
        %v2253 = vld [vmem:[%s2 + $0x1a0] sm:$0xff]
        %v2254 = vld [vmem:[%s2 + $0x1a8] sm:$0xff]
        %v2255 = vld [vmem:[%s2 + $0x1b0] sm:$0xff]
        %v2256 = vld [vmem:[%s2 + $0x1b8] sm:$0xff]
        %v2257 = vld [vmem:[%s2 + $0x1c0] sm:$0xff]
        %v2258 = vld [vmem:[%s2 + $0x1c8] sm:$0xff]
        %v2259 = vld [vmem:[%s2 + $0x1d0] sm:$0xff]
        %v2260 = vld [vmem:[%s2 + $0x1d8] sm:$0xff]
        %v2261 = vld [vmem:[%s2 + $0x1e0] sm:$0xff]
        %v2262 = vld [vmem:[%s2 + $0x1e8] sm:$0xff]
        %v2263 = vld [vmem:[%s2 + $0x1f0] sm:$0xff]
        %v2264 = vld [vmem:[%s2 + $0x1f8] sm:$0xff]
        %v2265 = vld [vmem:[%s2 + $0x200] sm:$0xff]
        %v2266 = vld [vmem:[%s2 + $0x208] sm:$0xff]
        %v2267 = vld [vmem:[%s2 + $0x210] sm:$0xff]
        %v2268 = vld [vmem:[%s2 + $0x218] sm:$0xff]
        %v2269 = vld [vmem:[%s2 + $0x220] sm:$0xff]
        %v2270 = vld [vmem:[%s2 + $0x228] sm:$0xff]
        %v2271 = vld [vmem:[%s2 + $0x230] sm:$0xff]
        %v2272 = vld [vmem:[%s2 + $0x238] sm:$0xff]
        %v2273 = vld [vmem:[%s2 + $0x240] sm:$0xff]
        %v2274 = vld [vmem:[%s2 + $0x248] sm:$0xff]
        %v2275 = vld [vmem:[%s2 + $0x250] sm:$0xff]
        %v2276 = vld [vmem:[%s2 + $0x258] sm:$0xff]
        %v2277 = vld [vmem:[%s2 + $0x260] sm:$0xff]
        %v2278 = vld [vmem:[%s2 + $0x268] sm:$0xff]
        %v2279 = vld [vmem:[%s2 + $0x270] sm:$0xff]
        %v2280 = vld [vmem:[%s2 + $0x278] sm:$0xff]
        %v2281 = vld [vmem:[#allocation4] sm:$0xff]
        %v2282 = vld [vmem:[#allocation4 + $0x8] sm:$0xff]
        %v2283 = vld [vmem:[#allocation4 + $0x10] sm:$0xff]
        %v2284 = vld [vmem:[#allocation4 + $0x18] sm:$0xff]
        %v2285 = vld [vmem:[#allocation4 + $0x20] sm:$0xff]
        %v2286 = vld [vmem:[#allocation4 + $0x28] sm:$0xff]
        %v2287 = vld [vmem:[#allocation4 + $0x30] sm:$0xff]
        %v2288 = vld [vmem:[#allocation4 + $0x38] sm:$0xff]
        %v2289 = vld [vmem:[#allocation4 + $0x40] sm:$0xff]
        %v2290 = vld [vmem:[#allocation4 + $0x48] sm:$0xff]
        %v2291 = vld [vmem:[#allocation4 + $0x50] sm:$0xff]
        %v2292 = vld [vmem:[#allocation4 + $0x58] sm:$0xff]
        %v2293 = vld [vmem:[#allocation4 + $0x60] sm:$0xff]
        %v2294 = vld [vmem:[#allocation4 + $0x68] sm:$0xff]
        %v2295 = vld [vmem:[#allocation4 + $0x70] sm:$0xff]
        %v2296 = vld [vmem:[#allocation4 + $0x78] sm:$0xff]
        %v2297 = vld [vmem:[#allocation4 + $0x80] sm:$0xff]
        %v2298 = vld [vmem:[#allocation4 + $0x88] sm:$0xff]
        %v2299 = vld [vmem:[#allocation4 + $0x90] sm:$0xff]
        %v2300 = vld [vmem:[#allocation4 + $0x98] sm:$0xff]
        %v2301 = vld [vmem:[#allocation4 + $0xa0] sm:$0xff]
        %v2302 = vld [vmem:[#allocation4 + $0xa8] sm:$0xff]
        %v2303 = vld [vmem:[#allocation4 + $0xb0] sm:$0xff]
        %v2304 = vld [vmem:[#allocation4 + $0xb8] sm:$0xff]
        %v2305 = vld [vmem:[#allocation4 + $0xc0] sm:$0xff]
        %v2306 = vld [vmem:[#allocation4 + $0xc8] sm:$0xff]
        %v2307 = vld [vmem:[#allocation4 + $0xd0] sm:$0xff]
        %v2308 = vld [vmem:[#allocation4 + $0xd8] sm:$0xff]
        %v2309 = vld [vmem:[#allocation4 + $0xe0] sm:$0xff]
        %v2310 = vld [vmem:[#allocation4 + $0xe8] sm:$0xff]
        %v2311 = vld [vmem:[#allocation4 + $0xf0] sm:$0xff]
        %v2312 = vld [vmem:[#allocation4 + $0xf8] sm:$0xff]
        %v2313 = vld [vmem:[#allocation4 + $0x100] sm:$0xff]
        %v2314 = vld [vmem:[#allocation4 + $0x108] sm:$0xff]
        %v2315 = vld [vmem:[#allocation4 + $0x110] sm:$0xff]
        %v2316 = vld [vmem:[#allocation4 + $0x118] sm:$0xff]
        %v2317 = vld [vmem:[#allocation4 + $0x120] sm:$0xff]
        %v2318 = vld [vmem:[#allocation4 + $0x128] sm:$0xff]
        %v2319 = vld [vmem:[#allocation4 + $0x130] sm:$0xff]
        %v2320 = vld [vmem:[#allocation4 + $0x138] sm:$0xff]
        %v2321 = vld [vmem:[#allocation4 + $0x140] sm:$0xff]
        %v2322 = vld [vmem:[#allocation4 + $0x148] sm:$0xff]
        %v2323 = vld [vmem:[#allocation4 + $0x150] sm:$0xff]
        %v2324 = vld [vmem:[#allocation4 + $0x158] sm:$0xff]
        %v2325 = vld [vmem:[#allocation4 + $0x160] sm:$0xff]
        %v2326 = vld [vmem:[#allocation4 + $0x168] sm:$0xff]
        %v2327 = vld [vmem:[#allocation4 + $0x170] sm:$0xff]
        %v2328 = vld [vmem:[#allocation4 + $0x178] sm:$0xff]
        %v2329 = vld [vmem:[#allocation4 + $0x180] sm:$0xff]
        %v2330 = vld [vmem:[#allocation4 + $0x188] sm:$0xff]
        %v2331 = vld [vmem:[#allocation4 + $0x190] sm:$0xff]
        %v2332 = vld [vmem:[#allocation4 + $0x198] sm:$0xff]
        %v2333 = vld [vmem:[#allocation4 + $0x1a0] sm:$0xff]
        %v2334 = vld [vmem:[#allocation4 + $0x1a8] sm:$0xff]
        %v2335 = vld [vmem:[#allocation4 + $0x1b0] sm:$0xff]
        %v2336 = vld [vmem:[#allocation4 + $0x1b8] sm:$0xff]
        %v2337 = vld [vmem:[#allocation4 + $0x1c0] sm:$0xff]
        %v2338 = vld [vmem:[#allocation4 + $0x1c8] sm:$0xff]
        %v2339 = vld [vmem:[#allocation4 + $0x1d0] sm:$0xff]
        %v2340 = vld [vmem:[#allocation4 + $0x1d8] sm:$0xff]
        %v2341 = vld [vmem:[#allocation4 + $0x1e0] sm:$0xff]
        %v2342 = vld [vmem:[#allocation4 + $0x1e8] sm:$0xff]
        %v2343 = vld [vmem:[#allocation4 + $0x1f0] sm:$0xff]
        %v2344 = vld [vmem:[#allocation4 + $0x1f8] sm:$0xff]
        %v2345 = vld [vmem:[#allocation4 + $0x200] sm:$0xff]
        %v2346 = vld [vmem:[#allocation4 + $0x208] sm:$0xff]
        %v2347 = vld [vmem:[#allocation4 + $0x210] sm:$0xff]
        %v2348 = vld [vmem:[#allocation4 + $0x218] sm:$0xff]
        %v2349 = vld [vmem:[#allocation4 + $0x220] sm:$0xff]
        %v2350 = vld [vmem:[#allocation4 + $0x228] sm:$0xff]
        %v2351 = vld [vmem:[#allocation4 + $0x230] sm:$0xff]
        %v2352 = vld [vmem:[#allocation4 + $0x238] sm:$0xff]
        %v2353 = vld [vmem:[#allocation4 + $0x240] sm:$0xff]
        %v2354 = vld [vmem:[#allocation4 + $0x248] sm:$0xff]
        %v2355 = vld [vmem:[#allocation4 + $0x250] sm:$0xff]
        %v2356 = vld [vmem:[#allocation4 + $0x258] sm:$0xff]
        %v2357 = vld [vmem:[#allocation4 + $0x260] sm:$0xff]
        %v2358 = vld [vmem:[#allocation4 + $0x268] sm:$0xff]
        %v2359 = vld [vmem:[#allocation4 + $0x270] sm:$0xff]
        %v2360 = vld [vmem:[#allocation4 + $0x278] sm:$0xff]
        %v2361 = vld [vmem:[#allocation4 + $0x280] sm:$0xff]
        %v2362 = vld [vmem:[#allocation4 + $0x288] sm:$0xff]
        %v2363 = vld [vmem:[#allocation4 + $0x290] sm:$0xff]
        %v2364 = vld [vmem:[#allocation4 + $0x298] sm:$0xff]
        %v2365 = vld [vmem:[#allocation4 + $0x2a0] sm:$0xff]
        %v2366 = vld [vmem:[#allocation4 + $0x2a8] sm:$0xff]
        %v2367 = vld [vmem:[#allocation4 + $0x2b0] sm:$0xff]
        %v2368 = vld [vmem:[#allocation4 + $0x2b8] sm:$0xff]
        %v2369 = vld [vmem:[#allocation4 + $0x2c0] sm:$0xff]
        %v2370 = vld [vmem:[#allocation4 + $0x2c8] sm:$0xff]
        %v2371 = vld [vmem:[#allocation4 + $0x2d0] sm:$0xff]
        %v2372 = vld [vmem:[#allocation4 + $0x2d8] sm:$0xff]
        %v2373 = vld [vmem:[#allocation4 + $0x2e0] sm:$0xff]
        %v2374 = vld [vmem:[#allocation4 + $0x2e8] sm:$0xff]
        %v2375 = vld [vmem:[#allocation4 + $0x2f0] sm:$0xff]
        %v2376 = vld [vmem:[#allocation4 + $0x2f8] sm:$0xff]
        %v2377 = vld [vmem:[#allocation4 + $0x300] sm:$0xff]
        %v2378 = vld [vmem:[#allocation4 + $0x308] sm:$0xff]
        %v2379 = vld [vmem:[#allocation4 + $0x310] sm:$0xff]
        %v2380 = vld [vmem:[#allocation4 + $0x318] sm:$0xff]
        %v2381 = vld [vmem:[#allocation4 + $0x320] sm:$0xff]
        %v2382 = vld [vmem:[#allocation4 + $0x328] sm:$0xff]
        %v2383 = vld [vmem:[#allocation4 + $0x330] sm:$0xff]
        %v2384 = vld [vmem:[#allocation4 + $0x338] sm:$0xff]
        %v2385 = vld [vmem:[#allocation4 + $0x340] sm:$0xff]
        %v2386 = vld [vmem:[#allocation4 + $0x348] sm:$0xff]
        %v2387 = vld [vmem:[#allocation4 + $0x350] sm:$0xff]
        %v2388 = vld [vmem:[#allocation4 + $0x358] sm:$0xff]
        %v2389 = vld [vmem:[#allocation4 + $0x360] sm:$0xff]
        %v2390 = vld [vmem:[#allocation4 + $0x368] sm:$0xff]
        %v2391 = vld [vmem:[#allocation4 + $0x370] sm:$0xff]
        %v2392 = vld [vmem:[#allocation4 + $0x378] sm:$0xff]
        %v2393 = vld [vmem:[#allocation4 + $0x380] sm:$0xff]
        %v2394 = vld [vmem:[#allocation4 + $0x388] sm:$0xff]
        %v2395 = vld [vmem:[#allocation4 + $0x390] sm:$0xff]
        %v2396 = vld [vmem:[#allocation4 + $0x398] sm:$0xff]
        %v2397 = vld [vmem:[#allocation4 + $0x3a0] sm:$0xff]
        %v2398 = vld [vmem:[#allocation4 + $0x3a8] sm:$0xff]
        %v2399 = vld [vmem:[#allocation4 + $0x3b0] sm:$0xff]
        %v2400 = vld [vmem:[#allocation4 + $0x3b8] sm:$0xff]
        %v2401 = vld [vmem:[#allocation4 + $0x3c0] sm:$0xff]
        %v2402 = vld [vmem:[#allocation4 + $0x3c8] sm:$0xff]
        %v2403 = vld [vmem:[#allocation4 + $0x3d0] sm:$0xff]
        %v2404 = vld [vmem:[#allocation4 + $0x3d8] sm:$0xff]
        %v2405 = vld [vmem:[#allocation4 + $0x3e0] sm:$0xff]
        %v2406 = vld [vmem:[#allocation4 + $0x3e8] sm:$0xff]
        %v2407 = vld [vmem:[#allocation4 + $0x3f0] sm:$0xff]
        %v2408 = vld [vmem:[#allocation4 + $0x3f8] sm:$0xff]
        %v2409 = vld [vmem:[#allocation4 + $0x400] sm:$0xff]
        %v2410 = vld [vmem:[#allocation4 + $0x408] sm:$0xff]
        %v2411 = vld [vmem:[#allocation4 + $0x410] sm:$0xff]
        %v2412 = vld [vmem:[#allocation4 + $0x418] sm:$0xff]
        %v2413 = vld [vmem:[#allocation4 + $0x420] sm:$0xff]
        %v2414 = vld [vmem:[#allocation4 + $0x428] sm:$0xff]
        %v2415 = vld [vmem:[#allocation4 + $0x430] sm:$0xff]
        %v2416 = vld [vmem:[#allocation4 + $0x438] sm:$0xff]
        %v2417 = vld [vmem:[#allocation4 + $0x440] sm:$0xff]
        %v2418 = vld [vmem:[#allocation4 + $0x448] sm:$0xff]
        %v2419 = vld [vmem:[#allocation4 + $0x450] sm:$0xff]
        %v2420 = vld [vmem:[#allocation4 + $0x458] sm:$0xff]
        %v2421 = vld [vmem:[#allocation4 + $0x460] sm:$0xff]
        %v2422 = vld [vmem:[#allocation4 + $0x468] sm:$0xff]
        %v2423 = vld [vmem:[#allocation4 + $0x470] sm:$0xff]
        %v2424 = vld [vmem:[#allocation4 + $0x478] sm:$0xff]
        %v2425 = vld [vmem:[#allocation4 + $0x480] sm:$0xff]
        %v2426 = vld [vmem:[#allocation4 + $0x488] sm:$0xff]
        %v2427 = vld [vmem:[#allocation4 + $0x490] sm:$0xff]
        %v2428 = vld [vmem:[#allocation4 + $0x498] sm:$0xff]
        %v2429 = vld [vmem:[#allocation4 + $0x4a0] sm:$0xff]
        %v2430 = vld [vmem:[#allocation4 + $0x4a8] sm:$0xff]
        %v2431 = vld [vmem:[#allocation4 + $0x4b0] sm:$0xff]
        %v2432 = vld [vmem:[#allocation4 + $0x4b8] sm:$0xff]
        %v2433 = vld [vmem:[#allocation4 + $0x4c0] sm:$0xff]
        %v2434 = vld [vmem:[#allocation4 + $0x4c8] sm:$0xff]
        %v2435 = vld [vmem:[#allocation4 + $0x4d0] sm:$0xff]
        %v2436 = vld [vmem:[#allocation4 + $0x4d8] sm:$0xff]
        %v2437 = vld [vmem:[#allocation4 + $0x4e0] sm:$0xff]
        %v2438 = vld [vmem:[#allocation4 + $0x4e8] sm:$0xff]
        %v2519 = vunpack.c.l.b16 %v2201
        %v2520 = vunpack.c.h.b16 %v2201
        %v2521 = vunpack.c.l.b16 %v2202
        %v2522 = vunpack.c.h.b16 %v2202
        %v2523 = vunpack.c.l.b16 %v2203
        %v2524 = vunpack.c.h.b16 %v2203
        %v2525 = vunpack.c.l.b16 %v2204
        %v2526 = vunpack.c.h.b16 %v2204
        %v2527 = vunpack.c.l.b16 %v2205
        %v2528 = vunpack.c.h.b16 %v2205
        %v2529 = vunpack.c.l.b16 %v2206
        %v2530 = vunpack.c.h.b16 %v2206
        %v2531 = vunpack.c.l.b16 %v2207
        %v2532 = vunpack.c.h.b16 %v2207
        %v2533 = vunpack.c.l.b16 %v2208
        %v2534 = vunpack.c.h.b16 %v2208
        %v2535 = vunpack.c.l.b16 %v2209
        %v2536 = vunpack.c.h.b16 %v2209
        %v2537 = vunpack.c.l.b16 %v2210
        %v2538 = vunpack.c.h.b16 %v2210
        %v2539 = vunpack.c.l.b16 %v2211
        %v2540 = vunpack.c.h.b16 %v2211
        %v2541 = vunpack.c.l.b16 %v2212
        %v2542 = vunpack.c.h.b16 %v2212
        %v2543 = vunpack.c.l.b16 %v2213
        %v2544 = vunpack.c.h.b16 %v2213
        %v2545 = vunpack.c.l.b16 %v2214
        %v2546 = vunpack.c.h.b16 %v2214
        %v2547 = vunpack.c.l.b16 %v2215
        %v2548 = vunpack.c.h.b16 %v2215
        %v2549 = vunpack.c.l.b16 %v2216
        %v2550 = vunpack.c.h.b16 %v2216
        %v2551 = vunpack.c.l.b16 %v2217
        %v2552 = vunpack.c.h.b16 %v2217
        %v2553 = vunpack.c.l.b16 %v2218
        %v2554 = vunpack.c.h.b16 %v2218
        %v2555 = vunpack.c.l.b16 %v2219
        %v2556 = vunpack.c.h.b16 %v2219
        %v2557 = vunpack.c.l.b16 %v2220
        %v2558 = vunpack.c.h.b16 %v2220
        %v2559 = vunpack.c.l.b16 %v2221
        %v2560 = vunpack.c.h.b16 %v2221
        %v2561 = vunpack.c.l.b16 %v2222
        %v2562 = vunpack.c.h.b16 %v2222
        %v2563 = vunpack.c.l.b16 %v2223
        %v2564 = vunpack.c.h.b16 %v2223
        %v2565 = vunpack.c.l.b16 %v2224
        %v2566 = vunpack.c.h.b16 %v2224
        %v2567 = vunpack.c.l.b16 %v2225
        %v2568 = vunpack.c.h.b16 %v2225
        %v2569 = vunpack.c.l.b16 %v2226
        %v2570 = vunpack.c.h.b16 %v2226
        %v2571 = vunpack.c.l.b16 %v2227
        %v2572 = vunpack.c.h.b16 %v2227
        %v2573 = vunpack.c.l.b16 %v2228
        %v2574 = vunpack.c.h.b16 %v2228
        %v2575 = vunpack.c.l.b16 %v2229
        %v2576 = vunpack.c.h.b16 %v2229
        %v2577 = vunpack.c.l.b16 %v2230
        %v2578 = vunpack.c.h.b16 %v2230
        %v2579 = vunpack.c.l.b16 %v2231
        %v2580 = vunpack.c.h.b16 %v2231
        %v2581 = vunpack.c.l.b16 %v2232
        %v2582 = vunpack.c.h.b16 %v2232
        %v2583 = vunpack.c.l.b16 %v2233
        %v2584 = vunpack.c.h.b16 %v2233
        %v2585 = vunpack.c.l.b16 %v2234
        %v2586 = vunpack.c.h.b16 %v2234
        %v2587 = vunpack.c.l.b16 %v2235
        %v2588 = vunpack.c.h.b16 %v2235
        %v2589 = vunpack.c.l.b16 %v2236
        %v2590 = vunpack.c.h.b16 %v2236
        %v2591 = vunpack.c.l.b16 %v2237
        %v2592 = vunpack.c.h.b16 %v2237
        %v2593 = vunpack.c.l.b16 %v2238
        %v2594 = vunpack.c.h.b16 %v2238
        %v2595 = vunpack.c.l.b16 %v2239
        %v2596 = vunpack.c.h.b16 %v2239
        %v2597 = vunpack.c.l.b16 %v2240
        %v2598 = vunpack.c.h.b16 %v2240
        %v2599 = vunpack.c.l.b16 %v2241
        %v2600 = vunpack.c.h.b16 %v2241
        %v2601 = vunpack.c.l.b16 %v2242
        %v2602 = vunpack.c.h.b16 %v2242
        %v2603 = vunpack.c.l.b16 %v2243
        %v2604 = vunpack.c.h.b16 %v2243
        %v2605 = vunpack.c.l.b16 %v2244
        %v2606 = vunpack.c.h.b16 %v2244
        %v2607 = vunpack.c.l.b16 %v2245
        %v2608 = vunpack.c.h.b16 %v2245
        %v2609 = vunpack.c.l.b16 %v2246
        %v2610 = vunpack.c.h.b16 %v2246
        %v2611 = vunpack.c.l.b16 %v2247
        %v2612 = vunpack.c.h.b16 %v2247
        %v2613 = vunpack.c.l.b16 %v2248
        %v2614 = vunpack.c.h.b16 %v2248
        %v2615 = vunpack.c.l.b16 %v2249
        %v2616 = vunpack.c.h.b16 %v2249
        %v2617 = vunpack.c.l.b16 %v2250
        %v2618 = vunpack.c.h.b16 %v2250
        %v2619 = vunpack.c.l.b16 %v2251
        %v2620 = vunpack.c.h.b16 %v2251
        %v2621 = vunpack.c.l.b16 %v2252
        %v2622 = vunpack.c.h.b16 %v2252
        %v2623 = vunpack.c.l.b16 %v2253
        %v2624 = vunpack.c.h.b16 %v2253
        %v2625 = vunpack.c.l.b16 %v2254
        %v2626 = vunpack.c.h.b16 %v2254
        %v2627 = vunpack.c.l.b16 %v2255
        %v2628 = vunpack.c.h.b16 %v2255
        %v2629 = vunpack.c.l.b16 %v2256
        %v2630 = vunpack.c.h.b16 %v2256
        %v2631 = vunpack.c.l.b16 %v2257
        %v2632 = vunpack.c.h.b16 %v2257
        %v2633 = vunpack.c.l.b16 %v2258
        %v2634 = vunpack.c.h.b16 %v2258
        %v2635 = vunpack.c.l.b16 %v2259
        %v2636 = vunpack.c.h.b16 %v2259
        %v2637 = vunpack.c.l.b16 %v2260
        %v2638 = vunpack.c.h.b16 %v2260
        %v2639 = vunpack.c.l.b16 %v2261
        %v2640 = vunpack.c.h.b16 %v2261
        %v2641 = vunpack.c.l.b16 %v2262
        %v2642 = vunpack.c.h.b16 %v2262
        %v2643 = vunpack.c.l.b16 %v2263
        %v2644 = vunpack.c.h.b16 %v2263
        %v2645 = vunpack.c.l.b16 %v2264
        %v2646 = vunpack.c.h.b16 %v2264
        %v2647 = vunpack.c.l.b16 %v2265
        %v2648 = vunpack.c.h.b16 %v2265
        %v2649 = vunpack.c.l.b16 %v2266
        %v2650 = vunpack.c.h.b16 %v2266
        %v2651 = vunpack.c.l.b16 %v2267
        %v2652 = vunpack.c.h.b16 %v2267
        %v2653 = vunpack.c.l.b16 %v2268
        %v2654 = vunpack.c.h.b16 %v2268
        %v2655 = vunpack.c.l.b16 %v2269
        %v2656 = vunpack.c.h.b16 %v2269
        %v2657 = vunpack.c.l.b16 %v2270
        %v2658 = vunpack.c.h.b16 %v2270
        %v2659 = vunpack.c.l.b16 %v2271
        %v2660 = vunpack.c.h.b16 %v2271
        %v2661 = vunpack.c.l.b16 %v2272
        %v2662 = vunpack.c.h.b16 %v2272
        %v2663 = vunpack.c.l.b16 %v2273
        %v2664 = vunpack.c.h.b16 %v2273
        %v2665 = vunpack.c.l.b16 %v2274
        %v2666 = vunpack.c.h.b16 %v2274
        %v2667 = vunpack.c.l.b16 %v2275
        %v2668 = vunpack.c.h.b16 %v2275
        %v2669 = vunpack.c.l.b16 %v2276
        %v2670 = vunpack.c.h.b16 %v2276
        %v2671 = vunpack.c.l.b16 %v2277
        %v2672 = vunpack.c.h.b16 %v2277
        %v2673 = vunpack.c.l.b16 %v2278
        %v2674 = vunpack.c.h.b16 %v2278
        %v2675 = vunpack.c.l.b16 %v2279
        %v2676 = vunpack.c.h.b16 %v2279
        %v2677 = vunpack.c.l.b16 %v2280
        %v2678 = vunpack.c.h.b16 %v2280
        %v2679 = vpack.c.b16 %v2529, %v2519
        %v2680 = vpack.c.b16 %v2530, %v2520
        %v2681 = vpack.c.b16 %v2531, %v2521
        %v2682 = vpack.c.b16 %v2532, %v2522
        %v2683 = vpack.c.b16 %v2533, %v2523
        %v2684 = vpack.c.b16 %v2534, %v2524
        %v2685 = vpack.c.b16 %v2535, %v2525
        %v2686 = vpack.c.b16 %v2536, %v2526
        %v2687 = vpack.c.b16 %v2537, %v2527
        %v2688 = vpack.c.b16 %v2538, %v2528
        %v2689 = vpack.c.b16 %v2549, %v2539
        %v2690 = vpack.c.b16 %v2550, %v2540
        %v2691 = vpack.c.b16 %v2551, %v2541
        %v2692 = vpack.c.b16 %v2552, %v2542
        %v2693 = vpack.c.b16 %v2553, %v2543
        %v2694 = vpack.c.b16 %v2554, %v2544
        %v2695 = vpack.c.b16 %v2555, %v2545
        %v2696 = vpack.c.b16 %v2556, %v2546
        %v2697 = vpack.c.b16 %v2557, %v2547
        %v2698 = vpack.c.b16 %v2558, %v2548
        %v2699 = vpack.c.b16 %v2569, %v2559
        %v2700 = vpack.c.b16 %v2570, %v2560
        %v2701 = vpack.c.b16 %v2571, %v2561
        %v2702 = vpack.c.b16 %v2572, %v2562
        %v2703 = vpack.c.b16 %v2573, %v2563
        %v2704 = vpack.c.b16 %v2574, %v2564
        %v2705 = vpack.c.b16 %v2575, %v2565
        %v2706 = vpack.c.b16 %v2576, %v2566
        %v2707 = vpack.c.b16 %v2577, %v2567
        %v2708 = vpack.c.b16 %v2578, %v2568
        %v2709 = vpack.c.b16 %v2589, %v2579
        %v2710 = vpack.c.b16 %v2590, %v2580
        %v2711 = vpack.c.b16 %v2591, %v2581
        %v2712 = vpack.c.b16 %v2592, %v2582
        %v2713 = vpack.c.b16 %v2593, %v2583
        %v2714 = vpack.c.b16 %v2594, %v2584
        %v2715 = vpack.c.b16 %v2595, %v2585
        %v2716 = vpack.c.b16 %v2596, %v2586
        %v2717 = vpack.c.b16 %v2597, %v2587
        %v2718 = vpack.c.b16 %v2598, %v2588
        %v2719 = vpack.c.b16 %v2609, %v2599
        %v2720 = vpack.c.b16 %v2610, %v2600
        %v2721 = vpack.c.b16 %v2611, %v2601
        %v2722 = vpack.c.b16 %v2612, %v2602
        %v2723 = vpack.c.b16 %v2613, %v2603
        %v2724 = vpack.c.b16 %v2614, %v2604
        %v2725 = vpack.c.b16 %v2615, %v2605
        %v2726 = vpack.c.b16 %v2616, %v2606
        %v2727 = vpack.c.b16 %v2617, %v2607
        %v2728 = vpack.c.b16 %v2618, %v2608
        %v2729 = vpack.c.b16 %v2629, %v2619
        %v2730 = vpack.c.b16 %v2630, %v2620
        %v2731 = vpack.c.b16 %v2631, %v2621
        %v2732 = vpack.c.b16 %v2632, %v2622
        %v2733 = vpack.c.b16 %v2633, %v2623
        %v2734 = vpack.c.b16 %v2634, %v2624
        %v2735 = vpack.c.b16 %v2635, %v2625
        %v2736 = vpack.c.b16 %v2636, %v2626
        %v2737 = vpack.c.b16 %v2637, %v2627
        %v2738 = vpack.c.b16 %v2638, %v2628
        %v2739 = vpack.c.b16 %v2649, %v2639
        %v2740 = vpack.c.b16 %v2650, %v2640
        %v2741 = vpack.c.b16 %v2651, %v2641
        %v2742 = vpack.c.b16 %v2652, %v2642
        %v2743 = vpack.c.b16 %v2653, %v2643
        %v2744 = vpack.c.b16 %v2654, %v2644
        %v2745 = vpack.c.b16 %v2655, %v2645
        %v2746 = vpack.c.b16 %v2656, %v2646
        %v2747 = vpack.c.b16 %v2657, %v2647
        %v2748 = vpack.c.b16 %v2658, %v2648
        %v2749 = vpack.c.b16 %v2669, %v2659
        %v2750 = vpack.c.b16 %v2670, %v2660
        %v2751 = vpack.c.b16 %v2671, %v2661
        %v2752 = vpack.c.b16 %v2672, %v2662
        %v2753 = vpack.c.b16 %v2673, %v2663
        %v2754 = vpack.c.b16 %v2674, %v2664
        %v2755 = vpack.c.b16 %v2675, %v2665
        %v2756 = vpack.c.b16 %v2676, %v2666
        %v2757 = vpack.c.b16 %v2677, %v2667
        %v2758 = vpack.c.b16 %v2678, %v2668
        %vm2831 = vcmask 916480
        %v2833 = vsel %vm2831, %v2688, 0
        %v2836 = vsel %vm2831, %v2698, 0
        %v2839 = vsel %vm2831, %v2708, 0
        %v2842 = vsel %vm2831, %v2718, 0
        %v2845 = vsel %vm2831, %v2728, 0
        %v2848 = vsel %vm2831, %v2738, 0
        %v2851 = vsel %vm2831, %v2748, 0
        %v2854 = vsel %vm2831, %v2758, 0
        %2856 = vmatprep.subr.bf16.mxu0 %v2282
        %2857 = vmatpush1.bf16.msra.mxu0 %v2281
        %2858 = vmatprep.subr.bf16.mxu0 %v2284
        %2859 = vmatpush1.bf16.msra.mxu0 %v2283
        %2860 = vmatprep.subr.bf16.mxu0 %v2286
        %2861 = vmatpush1.bf16.msra.mxu0 %v2285
        %2862 = vmatprep.subr.bf16.mxu0 %v2288
        %2863 = vmatpush1.bf16.msra.mxu0 %v2287
        %2864 = vmatprep.subr.bf16.mxu0 %v2290
        %2865 = vmatpush1.bf16.msra.mxu0 %v2289
        %2866 = vmatprep.subr.bf16.mxu0 %v2292
        %2867 = vmatpush1.bf16.msra.mxu0 %v2291
        %2868 = vmatprep.subr.bf16.mxu0 %v2294
        %2869 = vmatpush1.bf16.msra.mxu0 %v2293
        %2870 = vmatprep.subr.bf16.mxu0 %v2296
        %2871 = vmatpush1.bf16.msra.mxu0 %v2295
        %2872 = vmatprep.subr.bf16.mxu0 %v2298
        %2873 = vmatpush1.bf16.msra.mxu0 %v2297
        %2874 = vmatprep.subr.bf16.mxu0 %v2300
        %2875 = vmatpush1.bf16.msra.mxu0 %v2299
        %2876 = vmatprep.subr.bf16.mxu0 %v2302
        %2877 = vmatpush1.bf16.msra.mxu0 %v2301
        %2878 = vmatprep.subr.bf16.mxu0 %v2304
        %2879 = vmatpush1.bf16.msra.mxu0 %v2303
        %2880 = vmatprep.subr.bf16.mxu0 %v2306
        %2881 = vmatpush1.bf16.msra.mxu0 %v2305
        %2882 = vmatprep.subr.bf16.mxu0 %v2308
        %2883 = vmatpush1.bf16.msra.mxu0 %v2307
        %2884 = vmatprep.subr.bf16.mxu0 %v2310
        %2885 = vmatpush1.bf16.msra.mxu0 %v2309
        %2886 = vmatprep.subr.bf16.mxu0 %v2312
        %2887 = vmatpush1.bf16.msra.mxu0 %v2311
        %2888 = vmatprep.mubr.bf16.mxu0 %v2680
        %2889 = vmatmul.mubr.bf16.gmra.mrb[0].mxu0 %v2679
        %v2890 = vpop.f32.mrb[0].mxu0
        %v2891 = vadd.f32 0.0, %v2890
        %v2892 = vpop.f32.mrb[0].mxu0
        %v2893 = vadd.f32 0.0, %v2892
        %v2894 = vpop.f32.mrb[0].mxu0
        %v2895 = vadd.f32 0.0, %v2894
        %v2896 = vpop.f32.mrb[0].mxu0
        %v2897 = vadd.f32 0.0, %v2896
        %2898 = vmatprep.mubr.bf16.mxu0 %v2690
        %2899 = vmatmul.mubr.bf16.gmra.mrb[0].mxu0 %v2689
        %v2900 = vpop.f32.mrb[0].mxu0
        %v2901 = vadd.f32 0.0, %v2900
        %v2902 = vpop.f32.mrb[0].mxu0
        %v2903 = vadd.f32 0.0, %v2902
        %v2904 = vpop.f32.mrb[0].mxu0
        %v2905 = vadd.f32 0.0, %v2904
        %v2906 = vpop.f32.mrb[0].mxu0
        %v2907 = vadd.f32 0.0, %v2906
        %2908 = vmatprep.mubr.bf16.mxu0 %v2700
        %2909 = vmatmul.mubr.bf16.gmra.mrb[0].mxu0 %v2699
        %v2910 = vpop.f32.mrb[0].mxu0
        %v2911 = vadd.f32 0.0, %v2910
        %v2912 = vpop.f32.mrb[0].mxu0
        %v2913 = vadd.f32 0.0, %v2912
        %v2914 = vpop.f32.mrb[0].mxu0
        %v2915 = vadd.f32 0.0, %v2914
        %v2916 = vpop.f32.mrb[0].mxu0
        %v2917 = vadd.f32 0.0, %v2916
        %2918 = vmatprep.mubr.bf16.mxu0 %v2710
        %2919 = vmatmul.mubr.bf16.gmra.mrb[0].mxu0 %v2709
        %v2920 = vpop.f32.mrb[0].mxu0
        %v2921 = vadd.f32 0.0, %v2920
        %v2922 = vpop.f32.mrb[0].mxu0
        %v2923 = vadd.f32 0.0, %v2922
        %v2924 = vpop.f32.mrb[0].mxu0
        %v2925 = vadd.f32 0.0, %v2924
        %v2926 = vpop.f32.mrb[0].mxu0
        %v2927 = vadd.f32 0.0, %v2926
        %2928 = vmatprep.mubr.bf16.mxu0 %v2720
        %2929 = vmatmul.mubr.bf16.gmra.mrb[0].mxu0 %v2719
        %v2930 = vpop.f32.mrb[0].mxu0
        %v2931 = vadd.f32 0.0, %v2930
        %v2932 = vpop.f32.mrb[0].mxu0
        %v2933 = vadd.f32 0.0, %v2932
        %v2934 = vpop.f32.mrb[0].mxu0
        %v2935 = vadd.f32 0.0, %v2934
        %v2936 = vpop.f32.mrb[0].mxu0
        %v2937 = vadd.f32 0.0, %v2936
        %2938 = vmatprep.mubr.bf16.mxu0 %v2730
        %2939 = vmatmul.mubr.bf16.gmra.mrb[0].mxu0 %v2729
        %v2940 = vpop.f32.mrb[0].mxu0
        %v2941 = vadd.f32 0.0, %v2940
        %v2942 = vpop.f32.mrb[0].mxu0
        %v2943 = vadd.f32 0.0, %v2942
        %v2944 = vpop.f32.mrb[0].mxu0
        %v2945 = vadd.f32 0.0, %v2944
        %v2946 = vpop.f32.mrb[0].mxu0
        %v2947 = vadd.f32 0.0, %v2946
        %2948 = vmatprep.mubr.bf16.mxu0 %v2740
        %2949 = vmatmul.mubr.bf16.gmra.mrb[0].mxu0 %v2739
        %v2950 = vpop.f32.mrb[0].mxu0
        %v2951 = vadd.f32 0.0, %v2950
        %v2952 = vpop.f32.mrb[0].mxu0
        %v2953 = vadd.f32 0.0, %v2952
        %v2954 = vpop.f32.mrb[0].mxu0
        %v2955 = vadd.f32 0.0, %v2954
        %v2956 = vpop.f32.mrb[0].mxu0
        %v2957 = vadd.f32 0.0, %v2956
        %2958 = vmatprep.mubr.bf16.mxu0 %v2750
        %2959 = vmatmul.mubr.bf16.gmra.mrb[0].mxu0 %v2749
        %v2960 = vpop.f32.mrb[0].mxu0
        %v2961 = vadd.f32 0.0, %v2960
        %v2962 = vpop.f32.mrb[0].mxu0
        %v2963 = vadd.f32 0.0, %v2962
        %v2964 = vpop.f32.mrb[0].mxu0
        %v2965 = vadd.f32 0.0, %v2964
        %v2966 = vpop.f32.mrb[0].mxu0
        %v2967 = vadd.f32 0.0, %v2966
        %2968 = vdwg.mxu0
        %2969 = vmatprep.subr.bf16.mxu0 %v2314
        %2970 = vmatpush1.bf16.msra.mxu0 %v2313
        %2971 = vmatprep.subr.bf16.mxu0 %v2316
        %2972 = vmatpush1.bf16.msra.mxu0 %v2315
        %2973 = vmatprep.subr.bf16.mxu0 %v2318
        %2974 = vmatpush1.bf16.msra.mxu0 %v2317
        %2975 = vmatprep.subr.bf16.mxu0 %v2320
        %2976 = vmatpush1.bf16.msra.mxu0 %v2319
        %2977 = vmatprep.subr.bf16.mxu0 %v2322
        %2978 = vmatpush1.bf16.msra.mxu0 %v2321
        %2979 = vmatprep.subr.bf16.mxu0 %v2324
        %2980 = vmatpush1.bf16.msra.mxu0 %v2323
        %2981 = vmatprep.subr.bf16.mxu0 %v2326
        %2982 = vmatpush1.bf16.msra.mxu0 %v2325
        %2983 = vmatprep.subr.bf16.mxu0 %v2328
        %2984 = vmatpush1.bf16.msra.mxu0 %v2327
        %2985 = vmatprep.subr.bf16.mxu0 %v2330
        %2986 = vmatpush1.bf16.msra.mxu0 %v2329
        %2987 = vmatprep.subr.bf16.mxu0 %v2332
        %2988 = vmatpush1.bf16.msra.mxu0 %v2331
        %2989 = vmatprep.subr.bf16.mxu0 %v2334
        %2990 = vmatpush1.bf16.msra.mxu0 %v2333
        %2991 = vmatprep.subr.bf16.mxu0 %v2336
        %2992 = vmatpush1.bf16.msra.mxu0 %v2335
        %2993 = vmatprep.subr.bf16.mxu0 %v2338
        %2994 = vmatpush1.bf16.msra.mxu0 %v2337
        %2995 = vmatprep.subr.bf16.mxu0 %v2340
        %2996 = vmatpush1.bf16.msra.mxu0 %v2339
        %2997 = vmatprep.subr.bf16.mxu0 %v2342
        %2998 = vmatpush1.bf16.msra.mxu0 %v2341
        %2999 = vmatprep.subr.bf16.mxu0 %v2344
        %3000 = vmatpush1.bf16.msra.mxu0 %v2343
        %3001 = vmatprep.mubr.bf16.mxu0 %v2682
        %3002 = vmatmul.mubr.bf16.gmra.mrb[0].mxu0 %v2681
        %v3003 = vpop.f32.mrb[0].mxu0
        %v3004 = vadd.f32 %v2891, %v3003
        %v3005 = vpop.f32.mrb[0].mxu0
        %v3006 = vadd.f32 %v2893, %v3005
        %v3007 = vpop.f32.mrb[0].mxu0
        %v3008 = vadd.f32 %v2895, %v3007
        %v3009 = vpop.f32.mrb[0].mxu0
        %v3010 = vadd.f32 %v2897, %v3009
        %3011 = vmatprep.mubr.bf16.mxu0 %v2692
        %3012 = vmatmul.mubr.bf16.gmra.mrb[0].mxu0 %v2691
        %v3013 = vpop.f32.mrb[0].mxu0
        %v3014 = vadd.f32 %v2901, %v3013
        %v3015 = vpop.f32.mrb[0].mxu0
        %v3016 = vadd.f32 %v2903, %v3015
        %v3017 = vpop.f32.mrb[0].mxu0
        %v3018 = vadd.f32 %v2905, %v3017
        %v3019 = vpop.f32.mrb[0].mxu0
        %v3020 = vadd.f32 %v2907, %v3019
        %3021 = vmatprep.mubr.bf16.mxu0 %v2702
        %3022 = vmatmul.mubr.bf16.gmra.mrb[0].mxu0 %v2701
        %v3023 = vpop.f32.mrb[0].mxu0
        %v3024 = vadd.f32 %v2911, %v3023
        %v3025 = vpop.f32.mrb[0].mxu0
        %v3026 = vadd.f32 %v2913, %v3025
        %v3027 = vpop.f32.mrb[0].mxu0
        %v3028 = vadd.f32 %v2915, %v3027
        %v3029 = vpop.f32.mrb[0].mxu0
        %v3030 = vadd.f32 %v2917, %v3029
        %3031 = vmatprep.mubr.bf16.mxu0 %v2712
        %3032 = vmatmul.mubr.bf16.gmra.mrb[0].mxu0 %v2711
        %v3033 = vpop.f32.mrb[0].mxu0
        %v3034 = vadd.f32 %v2921, %v3033
        %v3035 = vpop.f32.mrb[0].mxu0
        %v3036 = vadd.f32 %v2923, %v3035
        %v3037 = vpop.f32.mrb[0].mxu0
        %v3038 = vadd.f32 %v2925, %v3037
        %v3039 = vpop.f32.mrb[0].mxu0
        %v3040 = vadd.f32 %v2927, %v3039
        %3041 = vmatprep.mubr.bf16.mxu0 %v2722
        %3042 = vmatmul.mubr.bf16.gmra.mrb[0].mxu0 %v2721
        %v3043 = vpop.f32.mrb[0].mxu0
        %v3044 = vadd.f32 %v2931, %v3043
        %v3045 = vpop.f32.mrb[0].mxu0
        %v3046 = vadd.f32 %v2933, %v3045
        %v3047 = vpop.f32.mrb[0].mxu0
        %v3048 = vadd.f32 %v2935, %v3047
        %v3049 = vpop.f32.mrb[0].mxu0
        %v3050 = vadd.f32 %v2937, %v3049
        %3051 = vmatprep.mubr.bf16.mxu0 %v2732
        %3052 = vmatmul.mubr.bf16.gmra.mrb[0].mxu0 %v2731
        %v3053 = vpop.f32.mrb[0].mxu0
        %v3054 = vadd.f32 %v2941, %v3053
        %v3055 = vpop.f32.mrb[0].mxu0
        %v3056 = vadd.f32 %v2943, %v3055
        %v3057 = vpop.f32.mrb[0].mxu0
        %v3058 = vadd.f32 %v2945, %v3057
        %v3059 = vpop.f32.mrb[0].mxu0
        %v3060 = vadd.f32 %v2947, %v3059
        %3061 = vmatprep.mubr.bf16.mxu0 %v2742
        %3062 = vmatmul.mubr.bf16.gmra.mrb[0].mxu0 %v2741
        %v3063 = vpop.f32.mrb[0].mxu0
        %v3064 = vadd.f32 %v2951, %v3063
        %v3065 = vpop.f32.mrb[0].mxu0
        %v3066 = vadd.f32 %v2953, %v3065
        %v3067 = vpop.f32.mrb[0].mxu0
        %v3068 = vadd.f32 %v2955, %v3067
        %v3069 = vpop.f32.mrb[0].mxu0
        %v3070 = vadd.f32 %v2957, %v3069
        %3071 = vmatprep.mubr.bf16.mxu0 %v2752
        %3072 = vmatmul.mubr.bf16.gmra.mrb[0].mxu0 %v2751
        %v3073 = vpop.f32.mrb[0].mxu0
        %v3074 = vadd.f32 %v2961, %v3073
        %v3075 = vpop.f32.mrb[0].mxu0
        %v3076 = vadd.f32 %v2963, %v3075
        %v3077 = vpop.f32.mrb[0].mxu0
        %v3078 = vadd.f32 %v2965, %v3077
        %v3079 = vpop.f32.mrb[0].mxu0
        %v3080 = vadd.f32 %v2967, %v3079
        %3081 = vdwg.mxu0
        %3082 = vmatprep.subr.bf16.mxu0 %v2346
        %3083 = vmatpush1.bf16.msra.mxu0 %v2345
        %3084 = vmatprep.subr.bf16.mxu0 %v2348
        %3085 = vmatpush1.bf16.msra.mxu0 %v2347
        %3086 = vmatprep.subr.bf16.mxu0 %v2350
        %3087 = vmatpush1.bf16.msra.mxu0 %v2349
        %3088 = vmatprep.subr.bf16.mxu0 %v2352
        %3089 = vmatpush1.bf16.msra.mxu0 %v2351
        %3090 = vmatprep.subr.bf16.mxu0 %v2354
        %3091 = vmatpush1.bf16.msra.mxu0 %v2353
        %3092 = vmatprep.subr.bf16.mxu0 %v2356
        %3093 = vmatpush1.bf16.msra.mxu0 %v2355
        %3094 = vmatprep.subr.bf16.mxu0 %v2358
        %3095 = vmatpush1.bf16.msra.mxu0 %v2357
        %3096 = vmatprep.subr.bf16.mxu0 %v2360
        %3097 = vmatpush1.bf16.msra.mxu0 %v2359
        %3098 = vmatprep.subr.bf16.mxu0 %v2362
        %3099 = vmatpush1.bf16.msra.mxu0 %v2361
        %3100 = vmatprep.subr.bf16.mxu0 %v2364
        %3101 = vmatpush1.bf16.msra.mxu0 %v2363
        %3102 = vmatprep.subr.bf16.mxu0 %v2366
        %3103 = vmatpush1.bf16.msra.mxu0 %v2365
        %3104 = vmatprep.subr.bf16.mxu0 %v2368
        %3105 = vmatpush1.bf16.msra.mxu0 %v2367
        %3106 = vmatprep.subr.bf16.mxu0 %v2370
        %3107 = vmatpush1.bf16.msra.mxu0 %v2369
        %3108 = vmatprep.subr.bf16.mxu0 %v2372
        %3109 = vmatpush1.bf16.msra.mxu0 %v2371
        %3110 = vmatprep.subr.bf16.mxu0 %v2374
        %3111 = vmatpush1.bf16.msra.mxu0 %v2373
        %3112 = vmatprep.subr.bf16.mxu0 %v2376
        %3113 = vmatpush1.bf16.msra.mxu0 %v2375
        %3114 = vmatprep.mubr.bf16.mxu0 %v2684
        %3115 = vmatmul.mubr.bf16.gmra.mrb[0].mxu0 %v2683
        %v3116 = vpop.f32.mrb[0].mxu0
        %v3117 = vadd.f32 %v3004, %v3116
        %v3118 = vpop.f32.mrb[0].mxu0
        %v3119 = vadd.f32 %v3006, %v3118
        %v3120 = vpop.f32.mrb[0].mxu0
        %v3121 = vadd.f32 %v3008, %v3120
        %v3122 = vpop.f32.mrb[0].mxu0
        %v3123 = vadd.f32 %v3010, %v3122
        %3124 = vmatprep.mubr.bf16.mxu0 %v2694
        %3125 = vmatmul.mubr.bf16.gmra.mrb[0].mxu0 %v2693
        %v3126 = vpop.f32.mrb[0].mxu0
        %v3127 = vadd.f32 %v3014, %v3126
        %v3128 = vpop.f32.mrb[0].mxu0
        %v3129 = vadd.f32 %v3016, %v3128
        %v3130 = vpop.f32.mrb[0].mxu0
        %v3131 = vadd.f32 %v3018, %v3130
        %v3132 = vpop.f32.mrb[0].mxu0
        %v3133 = vadd.f32 %v3020, %v3132
        %3134 = vmatprep.mubr.bf16.mxu0 %v2704
        %3135 = vmatmul.mubr.bf16.gmra.mrb[0].mxu0 %v2703
        %v3136 = vpop.f32.mrb[0].mxu0
        %v3137 = vadd.f32 %v3024, %v3136
        %v3138 = vpop.f32.mrb[0].mxu0
        %v3139 = vadd.f32 %v3026, %v3138
        %v3140 = vpop.f32.mrb[0].mxu0
        %v3141 = vadd.f32 %v3028, %v3140
        %v3142 = vpop.f32.mrb[0].mxu0
        %v3143 = vadd.f32 %v3030, %v3142
        %3144 = vmatprep.mubr.bf16.mxu0 %v2714
        %3145 = vmatmul.mubr.bf16.gmra.mrb[0].mxu0 %v2713
        %v3146 = vpop.f32.mrb[0].mxu0
        %v3147 = vadd.f32 %v3034, %v3146
        %v3148 = vpop.f32.mrb[0].mxu0
        %v3149 = vadd.f32 %v3036, %v3148
        %v3150 = vpop.f32.mrb[0].mxu0
        %v3151 = vadd.f32 %v3038, %v3150
        %v3152 = vpop.f32.mrb[0].mxu0
        %v3153 = vadd.f32 %v3040, %v3152
        %3154 = vmatprep.mubr.bf16.mxu0 %v2724
        %3155 = vmatmul.mubr.bf16.gmra.mrb[0].mxu0 %v2723
        %v3156 = vpop.f32.mrb[0].mxu0
        %v3157 = vadd.f32 %v3044, %v3156
        %v3158 = vpop.f32.mrb[0].mxu0
        %v3159 = vadd.f32 %v3046, %v3158
        %v3160 = vpop.f32.mrb[0].mxu0
        %v3161 = vadd.f32 %v3048, %v3160
        %v3162 = vpop.f32.mrb[0].mxu0
        %v3163 = vadd.f32 %v3050, %v3162
        %3164 = vmatprep.mubr.bf16.mxu0 %v2734
        %3165 = vmatmul.mubr.bf16.gmra.mrb[0].mxu0 %v2733
        %v3166 = vpop.f32.mrb[0].mxu0
        %v3167 = vadd.f32 %v3054, %v3166
        %v3168 = vpop.f32.mrb[0].mxu0
        %v3169 = vadd.f32 %v3056, %v3168
        %v3170 = vpop.f32.mrb[0].mxu0
        %v3171 = vadd.f32 %v3058, %v3170
        %v3172 = vpop.f32.mrb[0].mxu0
        %v3173 = vadd.f32 %v3060, %v3172
        %3174 = vmatprep.mubr.bf16.mxu0 %v2744
        %3175 = vmatmul.mubr.bf16.gmra.mrb[0].mxu0 %v2743
        %v3176 = vpop.f32.mrb[0].mxu0
        %v3177 = vadd.f32 %v3064, %v3176
        %v3178 = vpop.f32.mrb[0].mxu0
        %v3179 = vadd.f32 %v3066, %v3178
        %v3180 = vpop.f32.mrb[0].mxu0
        %v3181 = vadd.f32 %v3068, %v3180
        %v3182 = vpop.f32.mrb[0].mxu0
        %v3183 = vadd.f32 %v3070, %v3182
        %3184 = vmatprep.mubr.bf16.mxu0 %v2754
        %3185 = vmatmul.mubr.bf16.gmra.mrb[0].mxu0 %v2753
        %v3186 = vpop.f32.mrb[0].mxu0
        %v3187 = vadd.f32 %v3074, %v3186
        %v3188 = vpop.f32.mrb[0].mxu0
        %v3189 = vadd.f32 %v3076, %v3188
        %v3190 = vpop.f32.mrb[0].mxu0
        %v3191 = vadd.f32 %v3078, %v3190
        %v3192 = vpop.f32.mrb[0].mxu0
        %v3193 = vadd.f32 %v3080, %v3192
        %3194 = vdwg.mxu0
        %3195 = vmatprep.subr.bf16.mxu0 %v2378
        %3196 = vmatpush1.bf16.msra.mxu0 %v2377
        %3197 = vmatprep.subr.bf16.mxu0 %v2380
        %3198 = vmatpush1.bf16.msra.mxu0 %v2379
        %3199 = vmatprep.subr.bf16.mxu0 %v2382
        %3200 = vmatpush1.bf16.msra.mxu0 %v2381
        %3201 = vmatprep.subr.bf16.mxu0 %v2384
        %3202 = vmatpush1.bf16.msra.mxu0 %v2383
        %3203 = vmatprep.subr.bf16.mxu0 %v2386
        %3204 = vmatpush1.bf16.msra.mxu0 %v2385
        %3205 = vmatprep.subr.bf16.mxu0 %v2388
        %3206 = vmatpush1.bf16.msra.mxu0 %v2387
        %3207 = vmatprep.subr.bf16.mxu0 %v2390
        %3208 = vmatpush1.bf16.msra.mxu0 %v2389
        %3209 = vmatprep.subr.bf16.mxu0 %v2392
        %3210 = vmatpush1.bf16.msra.mxu0 %v2391
        %3211 = vmatprep.subr.bf16.mxu0 %v2394
        %3212 = vmatpush1.bf16.msra.mxu0 %v2393
        %3213 = vmatprep.subr.bf16.mxu0 %v2396
        %3214 = vmatpush1.bf16.msra.mxu0 %v2395
        %3215 = vmatprep.subr.bf16.mxu0 %v2398
        %3216 = vmatpush1.bf16.msra.mxu0 %v2397
        %3217 = vmatprep.subr.bf16.mxu0 %v2400
        %3218 = vmatpush1.bf16.msra.mxu0 %v2399
        %3219 = vmatprep.subr.bf16.mxu0 %v2402
        %3220 = vmatpush1.bf16.msra.mxu0 %v2401
        %3221 = vmatprep.subr.bf16.mxu0 %v2404
        %3222 = vmatpush1.bf16.msra.mxu0 %v2403
        %3223 = vmatprep.subr.bf16.mxu0 %v2406
        %3224 = vmatpush1.bf16.msra.mxu0 %v2405
        %3225 = vmatprep.subr.bf16.mxu0 %v2408
        %3226 = vmatpush1.bf16.msra.mxu0 %v2407
        %3227 = vmatprep.mubr.bf16.mxu0 %v2686
        %3228 = vmatmul.mubr.bf16.gmra.mrb[0].mxu0 %v2685
        %v3229 = vpop.f32.mrb[0].mxu0
        %v3230 = vadd.f32 %v3117, %v3229
        %v3231 = vpop.f32.mrb[0].mxu0
        %v3232 = vadd.f32 %v3119, %v3231
        %v3233 = vpop.f32.mrb[0].mxu0
        %v3234 = vadd.f32 %v3121, %v3233
        %v3235 = vpop.f32.mrb[0].mxu0
        %v3236 = vadd.f32 %v3123, %v3235
        %3237 = vmatprep.mubr.bf16.mxu0 %v2696
        %3238 = vmatmul.mubr.bf16.gmra.mrb[0].mxu0 %v2695
        %v3239 = vpop.f32.mrb[0].mxu0
        %v3240 = vadd.f32 %v3127, %v3239
        %v3241 = vpop.f32.mrb[0].mxu0
        %v3242 = vadd.f32 %v3129, %v3241
        %v3243 = vpop.f32.mrb[0].mxu0
        %v3244 = vadd.f32 %v3131, %v3243
        %v3245 = vpop.f32.mrb[0].mxu0
        %v3246 = vadd.f32 %v3133, %v3245
        %3247 = vmatprep.mubr.bf16.mxu0 %v2706
        %3248 = vmatmul.mubr.bf16.gmra.mrb[0].mxu0 %v2705
        %v3249 = vpop.f32.mrb[0].mxu0
        %v3250 = vadd.f32 %v3137, %v3249
        %v3251 = vpop.f32.mrb[0].mxu0
        %v3252 = vadd.f32 %v3139, %v3251
        %v3253 = vpop.f32.mrb[0].mxu0
        %v3254 = vadd.f32 %v3141, %v3253
        %v3255 = vpop.f32.mrb[0].mxu0
        %v3256 = vadd.f32 %v3143, %v3255
        %3257 = vmatprep.mubr.bf16.mxu0 %v2716
        %3258 = vmatmul.mubr.bf16.gmra.mrb[0].mxu0 %v2715
        %v3259 = vpop.f32.mrb[0].mxu0
        %v3260 = vadd.f32 %v3147, %v3259
        %v3261 = vpop.f32.mrb[0].mxu0
        %v3262 = vadd.f32 %v3149, %v3261
        %v3263 = vpop.f32.mrb[0].mxu0
        %v3264 = vadd.f32 %v3151, %v3263
        %v3265 = vpop.f32.mrb[0].mxu0
        %v3266 = vadd.f32 %v3153, %v3265
        %3267 = vmatprep.mubr.bf16.mxu0 %v2726
        %3268 = vmatmul.mubr.bf16.gmra.mrb[0].mxu0 %v2725
        %v3269 = vpop.f32.mrb[0].mxu0
        %v3270 = vadd.f32 %v3157, %v3269
        %v3271 = vpop.f32.mrb[0].mxu0
        %v3272 = vadd.f32 %v3159, %v3271
        %v3273 = vpop.f32.mrb[0].mxu0
        %v3274 = vadd.f32 %v3161, %v3273
        %v3275 = vpop.f32.mrb[0].mxu0
        %v3276 = vadd.f32 %v3163, %v3275
        %3277 = vmatprep.mubr.bf16.mxu0 %v2736
        %3278 = vmatmul.mubr.bf16.gmra.mrb[0].mxu0 %v2735
        %v3279 = vpop.f32.mrb[0].mxu0
        %v3280 = vadd.f32 %v3167, %v3279
        %v3281 = vpop.f32.mrb[0].mxu0
        %v3282 = vadd.f32 %v3169, %v3281
        %v3283 = vpop.f32.mrb[0].mxu0
        %v3284 = vadd.f32 %v3171, %v3283
        %v3285 = vpop.f32.mrb[0].mxu0
        %v3286 = vadd.f32 %v3173, %v3285
        %3287 = vmatprep.mubr.bf16.mxu0 %v2746
        %3288 = vmatmul.mubr.bf16.gmra.mrb[0].mxu0 %v2745
        %v3289 = vpop.f32.mrb[0].mxu0
        %v3290 = vadd.f32 %v3177, %v3289
        %v3291 = vpop.f32.mrb[0].mxu0
        %v3292 = vadd.f32 %v3179, %v3291
        %v3293 = vpop.f32.mrb[0].mxu0
        %v3294 = vadd.f32 %v3181, %v3293
        %v3295 = vpop.f32.mrb[0].mxu0
        %v3296 = vadd.f32 %v3183, %v3295
        %3297 = vmatprep.mubr.bf16.mxu0 %v2756
        %3298 = vmatmul.mubr.bf16.gmra.mrb[0].mxu0 %v2755
        %v3299 = vpop.f32.mrb[0].mxu0
        %v3300 = vadd.f32 %v3187, %v3299
        %v3301 = vpop.f32.mrb[0].mxu0
        %v3302 = vadd.f32 %v3189, %v3301
        %v3303 = vpop.f32.mrb[0].mxu0
        %v3304 = vadd.f32 %v3191, %v3303
        %v3305 = vpop.f32.mrb[0].mxu0
        %v3306 = vadd.f32 %v3193, %v3305
        %3307 = vdwg.mxu0
        %3308 = vmatprep.subr.bf16.mxu0 %v2410
        %3309 = vmatpush1.bf16.msra.mxu0 %v2409
        %3310 = vmatprep.subr.bf16.mxu0 %v2412
        %3311 = vmatpush1.bf16.msra.mxu0 %v2411
        %3312 = vmatprep.subr.bf16.mxu0 %v2414
        %3313 = vmatpush1.bf16.msra.mxu0 %v2413
        %3314 = vmatprep.subr.bf16.mxu0 %v2416
        %3315 = vmatpush1.bf16.msra.mxu0 %v2415
        %3316 = vmatprep.subr.bf16.mxu0 %v2418
        %3317 = vmatpush1.bf16.msra.mxu0 %v2417
        %3318 = vmatprep.subr.bf16.mxu0 %v2420
        %3319 = vmatpush1.bf16.msra.mxu0 %v2419
        %3320 = vmatprep.subr.bf16.mxu0 %v2422
        %3321 = vmatpush1.bf16.msra.mxu0 %v2421
        %3322 = vmatprep.subr.bf16.mxu0 %v2424
        %3323 = vmatpush1.bf16.msra.mxu0 %v2423
        %3324 = vmatprep.subr.bf16.mxu0 %v2426
        %3325 = vmatpush1.bf16.msra.mxu0 %v2425
        %3326 = vmatprep.subr.bf16.mxu0 %v2428
        %3327 = vmatpush1.bf16.msra.mxu0 %v2427
        %3328 = vmatprep.subr.bf16.mxu0 %v2430
        %3329 = vmatpush1.bf16.msra.mxu0 %v2429
        %3330 = vmatprep.subr.bf16.mxu0 %v2432
        %3331 = vmatpush1.bf16.msra.mxu0 %v2431
        %3332 = vmatprep.subr.bf16.mxu0 %v2434
        %3333 = vmatpush1.bf16.msra.mxu0 %v2433
        %3334 = vmatprep.subr.bf16.mxu0 %v2436
        %3335 = vmatpush1.bf16.msra.mxu0 %v2435
        %3336 = vmatprep.subr.bf16.mxu0 %v2438
        %3337 = vmatpush1.bf16.msra.mxu0 %v2437
        %3338 = vmatprep.subr.bf16.mxu0 0
        %3339 = vmatpush1.bf16.msra.mxu0 0
        %3340 = vmatprep.mubr.bf16.mxu0 %v2833
        %3341 = vmatmul.mubr.bf16.gmra.mrb[0].mxu0 %v2687
        %v3342 = vpop.f32.mrb[0].mxu0
        %v3343 = vadd.f32 %v3230, %v3342
        %v3344 = vpop.f32.mrb[0].mxu0
        %v3345 = vadd.f32 %v3232, %v3344
        %v3346 = vpop.f32.mrb[0].mxu0
        %v3347 = vadd.f32 %v3234, %v3346
        %v3348 = vpop.f32.mrb[0].mxu0
        %v3349 = vadd.f32 %v3236, %v3348
        %3350 = vmatprep.mubr.bf16.mxu0 %v2836
        %3351 = vmatmul.mubr.bf16.gmra.mrb[0].mxu0 %v2697
        %v3352 = vpop.f32.mrb[0].mxu0
        %v3353 = vadd.f32 %v3240, %v3352
        %v3354 = vpop.f32.mrb[0].mxu0
        %v3355 = vadd.f32 %v3242, %v3354
        %v3356 = vpop.f32.mrb[0].mxu0
        %v3357 = vadd.f32 %v3244, %v3356
        %v3358 = vpop.f32.mrb[0].mxu0
        %v3359 = vadd.f32 %v3246, %v3358
        %3360 = vmatprep.mubr.bf16.mxu0 %v2839
        %3361 = vmatmul.mubr.bf16.gmra.mrb[0].mxu0 %v2707
        %v3362 = vpop.f32.mrb[0].mxu0
        %v3363 = vadd.f32 %v3250, %v3362
        %v3364 = vpop.f32.mrb[0].mxu0
        %v3365 = vadd.f32 %v3252, %v3364
        %v3366 = vpop.f32.mrb[0].mxu0
        %v3367 = vadd.f32 %v3254, %v3366
        %v3368 = vpop.f32.mrb[0].mxu0
        %v3369 = vadd.f32 %v3256, %v3368
        %3370 = vmatprep.mubr.bf16.mxu0 %v2842
        %3371 = vmatmul.mubr.bf16.gmra.mrb[0].mxu0 %v2717
        %v3372 = vpop.f32.mrb[0].mxu0
        %v3373 = vadd.f32 %v3260, %v3372
        %v3374 = vpop.f32.mrb[0].mxu0
        %v3375 = vadd.f32 %v3262, %v3374
        %v3376 = vpop.f32.mrb[0].mxu0
        %v3377 = vadd.f32 %v3264, %v3376
        %v3378 = vpop.f32.mrb[0].mxu0
        %v3379 = vadd.f32 %v3266, %v3378
        %3380 = vmatprep.mubr.bf16.mxu0 %v2845
        %3381 = vmatmul.mubr.bf16.gmra.mrb[0].mxu0 %v2727
        %v3382 = vpop.f32.mrb[0].mxu0
        %v3383 = vadd.f32 %v3270, %v3382
        %v3384 = vpop.f32.mrb[0].mxu0
        %v3385 = vadd.f32 %v3272, %v3384
        %v3386 = vpop.f32.mrb[0].mxu0
        %v3387 = vadd.f32 %v3274, %v3386
        %v3388 = vpop.f32.mrb[0].mxu0
        %v3389 = vadd.f32 %v3276, %v3388
        %3390 = vmatprep.mubr.bf16.mxu0 %v2848
        %3391 = vmatmul.mubr.bf16.gmra.mrb[0].mxu0 %v2737
        %v3392 = vpop.f32.mrb[0].mxu0
        %v3393 = vadd.f32 %v3280, %v3392
        %v3394 = vpop.f32.mrb[0].mxu0
        %v3395 = vadd.f32 %v3282, %v3394
        %v3396 = vpop.f32.mrb[0].mxu0
        %v3397 = vadd.f32 %v3284, %v3396
        %v3398 = vpop.f32.mrb[0].mxu0
        %v3399 = vadd.f32 %v3286, %v3398
        %3400 = vmatprep.mubr.bf16.mxu0 %v2851
        %3401 = vmatmul.mubr.bf16.gmra.mrb[0].mxu0 %v2747
        %v3402 = vpop.f32.mrb[0].mxu0
        %v3403 = vadd.f32 %v3290, %v3402
        %v3404 = vpop.f32.mrb[0].mxu0
        %v3405 = vadd.f32 %v3292, %v3404
        %v3406 = vpop.f32.mrb[0].mxu0
        %v3407 = vadd.f32 %v3294, %v3406
        %v3408 = vpop.f32.mrb[0].mxu0
        %v3409 = vadd.f32 %v3296, %v3408
        %3410 = vmatprep.mubr.bf16.mxu0 %v2854
        %3411 = vmatmul.mubr.bf16.gmra.mrb[0].mxu0 %v2757
        %v3412 = vpop.f32.mrb[0].mxu0
        %v3413 = vadd.f32 %v3300, %v3412
        %v3414 = vpop.f32.mrb[0].mxu0
        %v3415 = vadd.f32 %v3302, %v3414
        %v3416 = vpop.f32.mrb[0].mxu0
        %v3417 = vadd.f32 %v3304, %v3416
        %v3418 = vpop.f32.mrb[0].mxu0
        %v3419 = vadd.f32 %v3306, %v3418
        %3420 = vdwg.mxu0
        %v3421 = vadd.f32 %v3343, %v3345
        %3422 = vadd.xlane.f32.xlu0 %v3421
        %v3423 = vpop.xlane.xlu0 %3422
        %v3424 = vadd.f32 %v3347, %v3349
        %3425 = vadd.xlane.f32.xlu0 %v3424
        %v3426 = vpop.xlane.xlu0 %3425
        %v3427 = vadd.f32 %v3353, %v3355
        %3428 = vadd.xlane.f32.xlu0 %v3427
        %v3429 = vpop.xlane.xlu0 %3428
        %v3430 = vadd.f32 %v3357, %v3359
        %3431 = vadd.xlane.f32.xlu0 %v3430
        %v3432 = vpop.xlane.xlu0 %3431
        %v3433 = vadd.f32 %v3363, %v3365
        %3434 = vadd.xlane.f32.xlu0 %v3433
        %v3435 = vpop.xlane.xlu0 %3434
        %v3436 = vadd.f32 %v3367, %v3369
        %3437 = vadd.xlane.f32.xlu0 %v3436
        %v3438 = vpop.xlane.xlu0 %3437
        %v3439 = vadd.f32 %v3373, %v3375
        %3440 = vadd.xlane.f32.xlu0 %v3439
        %v3441 = vpop.xlane.xlu0 %3440
        %v3442 = vadd.f32 %v3377, %v3379
        %3443 = vadd.xlane.f32.xlu0 %v3442
        %v3444 = vpop.xlane.xlu0 %3443
        %v3445 = vadd.f32 %v3383, %v3385
        %3446 = vadd.xlane.f32.xlu0 %v3445
        %v3447 = vpop.xlane.xlu0 %3446
        %v3448 = vadd.f32 %v3387, %v3389
        %3449 = vadd.xlane.f32.xlu0 %v3448
        %v3450 = vpop.xlane.xlu0 %3449
        %v3451 = vadd.f32 %v3393, %v3395
        %3452 = vadd.xlane.f32.xlu0 %v3451
        %v3453 = vpop.xlane.xlu0 %3452
        %v3454 = vadd.f32 %v3397, %v3399
        %3455 = vadd.xlane.f32.xlu0 %v3454
        %v3456 = vpop.xlane.xlu0 %3455
        %v3457 = vadd.f32 %v3403, %v3405
        %3458 = vadd.xlane.f32.xlu0 %v3457
        %v3459 = vpop.xlane.xlu0 %3458
        %v3460 = vadd.f32 %v3407, %v3409
        %3461 = vadd.xlane.f32.xlu0 %v3460
        %v3462 = vpop.xlane.xlu0 %3461
        %v3463 = vadd.f32 %v3413, %v3415
        %3464 = vadd.xlane.f32.xlu0 %v3463
        %v3465 = vpop.xlane.xlu0 %3464
        %v3466 = vadd.f32 %v3417, %v3419
        %3467 = vadd.xlane.f32.xlu0 %v3466
        %v3468 = vpop.xlane.xlu0 %3467
        %v3485 = vlaneseq
        %v3486 = vand.u32 %v3485, 127
        %v3487 = vlaneseq
        %v3488 = vshrl.u32 %v3487, 7
        %v3489 = vsub.s32 %v3486, %v3488
        %v3490 = vrot.slane %v3423, %v3489
        %v3491 = vadd.s32 %v3486, 4294967288
        %v3492 = vlaneseq
        %v3493 = vshrl.u32 %v3492, 7
        %v3494 = vsub.s32 %v3491, %v3493
        %v3495 = vrot.slane %v3426, %v3494
        %vm3496 = vcmask 130112
        %v3497 = vsel %vm3496, %v3495, %v3490
        %v3498 = vadd.s32 %v3486, 4294967280
        %v3499 = vlaneseq
        %v3500 = vshrl.u32 %v3499, 7
        %v3501 = vsub.s32 %v3498, %v3500
        %v3502 = vrot.slane %v3429, %v3501
        %vm3503 = vcmask 195712
        %v3504 = vsel %vm3503, %v3502, %v3497
        %v3505 = vadd.s32 %v3486, 4294967272
        %v3506 = vlaneseq
        %v3507 = vshrl.u32 %v3506, 7
        %v3508 = vsub.s32 %v3505, %v3507
        %v3509 = vrot.slane %v3432, %v3508
        %vm3510 = vcmask 261312
        %v3511 = vsel %vm3510, %v3509, %v3504
        %v3512 = vadd.s32 %v3486, 4294967264
        %v3513 = vlaneseq
        %v3514 = vshrl.u32 %v3513, 7
        %v3515 = vsub.s32 %v3512, %v3514
        %v3516 = vrot.slane %v3435, %v3515
        %vm3517 = vcmask 326912
        %v3518 = vsel %vm3517, %v3516, %v3511
        %v3519 = vadd.s32 %v3486, 4294967256
        %v3520 = vlaneseq
        %v3521 = vshrl.u32 %v3520, 7
        %v3522 = vsub.s32 %v3519, %v3521
        %v3523 = vrot.slane %v3438, %v3522
        %vm3524 = vcmask 392512
        %v3525 = vsel %vm3524, %v3523, %v3518
        %v3526 = vadd.s32 %v3486, 4294967248
        %v3527 = vlaneseq
        %v3528 = vshrl.u32 %v3527, 7
        %v3529 = vsub.s32 %v3526, %v3528
        %v3530 = vrot.slane %v3441, %v3529
        %vm3531 = vcmask 458112
        %v3532 = vsel %vm3531, %v3530, %v3525
        %v3533 = vadd.s32 %v3486, 4294967240
        %v3534 = vlaneseq
        %v3535 = vshrl.u32 %v3534, 7
        %v3536 = vsub.s32 %v3533, %v3535
        %v3537 = vrot.slane %v3444, %v3536
        %vm3538 = vcmask 523712
        %v3539 = vsel %vm3538, %v3537, %v3532
        %v3540 = vadd.s32 %v3486, 4294967232
        %v3541 = vlaneseq
        %v3542 = vshrl.u32 %v3541, 7
        %v3543 = vsub.s32 %v3540, %v3542
        %v3544 = vrot.slane %v3447, %v3543
        %vm3545 = vcmask 589312
        %v3546 = vsel %vm3545, %v3544, %v3539
        %v3547 = vadd.s32 %v3486, 4294967224
        %v3548 = vlaneseq
        %v3549 = vshrl.u32 %v3548, 7
        %v3550 = vsub.s32 %v3547, %v3549
        %v3551 = vrot.slane %v3450, %v3550
        %vm3552 = vcmask 654912
        %v3553 = vsel %vm3552, %v3551, %v3546
        %v3554 = vadd.s32 %v3486, 4294967216
        %v3555 = vlaneseq
        %v3556 = vshrl.u32 %v3555, 7
        %v3557 = vsub.s32 %v3554, %v3556
        %v3558 = vrot.slane %v3453, %v3557
        %vm3559 = vcmask 720512
        %v3560 = vsel %vm3559, %v3558, %v3553
        %v3561 = vadd.s32 %v3486, 4294967208
        %v3562 = vlaneseq
        %v3563 = vshrl.u32 %v3562, 7
        %v3564 = vsub.s32 %v3561, %v3563
        %v3565 = vrot.slane %v3456, %v3564
        %vm3566 = vcmask 786112
        %v3567 = vsel %vm3566, %v3565, %v3560
        %v3568 = vadd.s32 %v3486, 4294967200
        %v3569 = vlaneseq
        %v3570 = vshrl.u32 %v3569, 7
        %v3571 = vsub.s32 %v3568, %v3570
        %v3572 = vrot.slane %v3459, %v3571
        %vm3573 = vcmask 851712
        %v3574 = vsel %vm3573, %v3572, %v3567
        %v3575 = vadd.s32 %v3486, 4294967192
        %v3576 = vlaneseq
        %v3577 = vshrl.u32 %v3576, 7
        %v3578 = vsub.s32 %v3575, %v3577
        %v3579 = vrot.slane %v3462, %v3578
        %vm3580 = vcmask 917312
        %v3581 = vsel %vm3580, %v3579, %v3574
        %v3582 = vadd.s32 %v3486, 4294967184
        %v3583 = vlaneseq
        %v3584 = vshrl.u32 %v3583, 7
        %v3585 = vsub.s32 %v3582, %v3584
        %v3586 = vrot.slane %v3465, %v3585
        %vm3587 = vcmask 982912
        %v3588 = vsel %vm3587, %v3586, %v3581
        %v3589 = vadd.s32 %v3486, 4294967176
        %v3590 = vlaneseq
        %v3591 = vshrl.u32 %v3590, 7
        %v3592 = vsub.s32 %v3589, %v3591
        %v3593 = vrot.slane %v3468, %v3592
        %vm3594 = vcmask 1048512
        %v3595 = vsel %vm3594, %v3593, %v3588
        %3597 = vst [vmem:[%s209] sm:$0x1] %v3595
        %v3598 = vmul.f32 %v3343, %v3343
        %v3599 = vmul.f32 %v3345, %v3345
        %v3600 = vmul.f32 %v3347, %v3347
        %v3601 = vmul.f32 %v3349, %v3349
        %v3602 = vmul.f32 %v3353, %v3353
        %v3603 = vmul.f32 %v3355, %v3355
        %v3604 = vmul.f32 %v3357, %v3357
        %v3605 = vmul.f32 %v3359, %v3359
        %v3606 = vmul.f32 %v3363, %v3363
        %v3607 = vmul.f32 %v3365, %v3365
        %v3608 = vmul.f32 %v3367, %v3367
        %v3609 = vmul.f32 %v3369, %v3369
        %v3610 = vmul.f32 %v3373, %v3373
        %v3611 = vmul.f32 %v3375, %v3375
        %v3612 = vmul.f32 %v3377, %v3377
        %v3613 = vmul.f32 %v3379, %v3379
        %v3614 = vmul.f32 %v3383, %v3383
        %v3615 = vmul.f32 %v3385, %v3385
        %v3616 = vmul.f32 %v3387, %v3387
        %v3617 = vmul.f32 %v3389, %v3389
        %v3618 = vmul.f32 %v3393, %v3393
        %v3619 = vmul.f32 %v3395, %v3395
        %v3620 = vmul.f32 %v3397, %v3397
        %v3621 = vmul.f32 %v3399, %v3399
        %v3622 = vmul.f32 %v3403, %v3403
        %v3623 = vmul.f32 %v3405, %v3405
        %v3624 = vmul.f32 %v3407, %v3407
        %v3625 = vmul.f32 %v3409, %v3409
        %v3626 = vmul.f32 %v3413, %v3413
        %v3627 = vmul.f32 %v3415, %v3415
        %v3628 = vmul.f32 %v3417, %v3417
        %v3629 = vmul.f32 %v3419, %v3419
        %v3630 = vadd.f32 %v3598, %v3599
        %3631 = vadd.xlane.f32.xlu0 %v3630
        %v3632 = vpop.xlane.xlu0 %3631
        %v3633 = vadd.f32 %v3600, %v3601
        %3634 = vadd.xlane.f32.xlu0 %v3633
        %v3635 = vpop.xlane.xlu0 %3634
        %v3636 = vadd.f32 %v3602, %v3603
        %3637 = vadd.xlane.f32.xlu0 %v3636
        %v3638 = vpop.xlane.xlu0 %3637
        %v3639 = vadd.f32 %v3604, %v3605
        %3640 = vadd.xlane.f32.xlu0 %v3639
        %v3641 = vpop.xlane.xlu0 %3640
        %v3642 = vadd.f32 %v3606, %v3607
        %3643 = vadd.xlane.f32.xlu0 %v3642
        %v3644 = vpop.xlane.xlu0 %3643
        %v3645 = vadd.f32 %v3608, %v3609
        %3646 = vadd.xlane.f32.xlu0 %v3645
        %v3647 = vpop.xlane.xlu0 %3646
        %v3648 = vadd.f32 %v3610, %v3611
        %3649 = vadd.xlane.f32.xlu0 %v3648
        %v3650 = vpop.xlane.xlu0 %3649
        %v3651 = vadd.f32 %v3612, %v3613
        %3652 = vadd.xlane.f32.xlu0 %v3651
        %v3653 = vpop.xlane.xlu0 %3652
        %v3654 = vadd.f32 %v3614, %v3615
        %3655 = vadd.xlane.f32.xlu0 %v3654
        %v3656 = vpop.xlane.xlu0 %3655
        %v3657 = vadd.f32 %v3616, %v3617
        %3658 = vadd.xlane.f32.xlu0 %v3657
        %v3659 = vpop.xlane.xlu0 %3658
        %v3660 = vadd.f32 %v3618, %v3619
        %3661 = vadd.xlane.f32.xlu0 %v3660
        %v3662 = vpop.xlane.xlu0 %3661
        %v3663 = vadd.f32 %v3620, %v3621
        %3664 = vadd.xlane.f32.xlu0 %v3663
        %v3665 = vpop.xlane.xlu0 %3664
        %v3666 = vadd.f32 %v3622, %v3623
        %3667 = vadd.xlane.f32.xlu0 %v3666
        %v3668 = vpop.xlane.xlu0 %3667
        %v3669 = vadd.f32 %v3624, %v3625
        %3670 = vadd.xlane.f32.xlu0 %v3669
        %v3671 = vpop.xlane.xlu0 %3670
        %v3672 = vadd.f32 %v3626, %v3627
        %3673 = vadd.xlane.f32.xlu0 %v3672
        %v3674 = vpop.xlane.xlu0 %3673
        %v3675 = vadd.f32 %v3628, %v3629
        %3676 = vadd.xlane.f32.xlu0 %v3675
        %v3677 = vpop.xlane.xlu0 %3676
        %v3694 = vlaneseq
        %v3695 = vshrl.u32 %v3694, 7
        %v3696 = vsub.s32 %v3486, %v3695
        %v3697 = vrot.slane %v3632, %v3696
        %v3698 = vlaneseq
        %v3699 = vshrl.u32 %v3698, 7
        %v3700 = vsub.s32 %v3491, %v3699
        %v3701 = vrot.slane %v3635, %v3700
        %v3702 = vsel %vm3496, %v3701, %v3697
        %v3703 = vlaneseq
        %v3704 = vshrl.u32 %v3703, 7
        %v3705 = vsub.s32 %v3498, %v3704
        %v3706 = vrot.slane %v3638, %v3705
        %v3707 = vsel %vm3503, %v3706, %v3702
        %v3708 = vlaneseq
        %v3709 = vshrl.u32 %v3708, 7
        %v3710 = vsub.s32 %v3505, %v3709
        %v3711 = vrot.slane %v3641, %v3710
        %v3712 = vsel %vm3510, %v3711, %v3707
        %v3713 = vlaneseq
        %v3714 = vshrl.u32 %v3713, 7
        %v3715 = vsub.s32 %v3512, %v3714
        %v3716 = vrot.slane %v3644, %v3715
        %v3717 = vsel %vm3517, %v3716, %v3712
        %v3718 = vlaneseq
        %v3719 = vshrl.u32 %v3718, 7
        %v3720 = vsub.s32 %v3519, %v3719
        %v3721 = vrot.slane %v3647, %v3720
        %v3722 = vsel %vm3524, %v3721, %v3717
        %v3723 = vlaneseq
        %v3724 = vshrl.u32 %v3723, 7
        %v3725 = vsub.s32 %v3526, %v3724
        %v3726 = vrot.slane %v3650, %v3725
        %v3727 = vsel %vm3531, %v3726, %v3722
        %v3728 = vlaneseq
        %v3729 = vshrl.u32 %v3728, 7
        %v3730 = vsub.s32 %v3533, %v3729
        %v3731 = vrot.slane %v3653, %v3730
        %v3732 = vsel %vm3538, %v3731, %v3727
        %v3733 = vlaneseq
        %v3734 = vshrl.u32 %v3733, 7
        %v3735 = vsub.s32 %v3540, %v3734
        %v3736 = vrot.slane %v3656, %v3735
        %v3737 = vsel %vm3545, %v3736, %v3732
        %v3738 = vlaneseq
        %v3739 = vshrl.u32 %v3738, 7
        %v3740 = vsub.s32 %v3547, %v3739
        %v3741 = vrot.slane %v3659, %v3740
        %v3742 = vsel %vm3552, %v3741, %v3737
        %v3743 = vlaneseq
        %v3744 = vshrl.u32 %v3743, 7
        %v3745 = vsub.s32 %v3554, %v3744
        %v3746 = vrot.slane %v3662, %v3745
        %v3747 = vsel %vm3559, %v3746, %v3742
        %v3748 = vlaneseq
        %v3749 = vshrl.u32 %v3748, 7
        %v3750 = vsub.s32 %v3561, %v3749
        %v3751 = vrot.slane %v3665, %v3750
        %v3752 = vsel %vm3566, %v3751, %v3747
        %v3753 = vlaneseq
        %v3754 = vshrl.u32 %v3753, 7
        %v3755 = vsub.s32 %v3568, %v3754
        %v3756 = vrot.slane %v3668, %v3755
        %v3757 = vsel %vm3573, %v3756, %v3752
        %v3758 = vlaneseq
        %v3759 = vshrl.u32 %v3758, 7
        %v3760 = vsub.s32 %v3575, %v3759
        %v3761 = vrot.slane %v3671, %v3760
        %v3762 = vsel %vm3580, %v3761, %v3757
        %v3763 = vlaneseq
        %v3764 = vshrl.u32 %v3763, 7
        %v3765 = vsub.s32 %v3582, %v3764
        %v3766 = vrot.slane %v3674, %v3765
        %v3767 = vsel %vm3587, %v3766, %v3762
        %v3768 = vlaneseq
        %v3769 = vshrl.u32 %v3768, 7
        %v3770 = vsub.s32 %v3589, %v3769
        %v3771 = vrot.slane %v3677, %v3770
        %v3772 = vsel %vm3594, %v3771, %v3767
        %3774 = vst [vmem:[%s209 + $0x1] sm:$0x1] %v3772
        %3775 = vst [vmem:[%s192] sm:$0xff] %v3343
        %3776 = vst [vmem:[%s192 + $0x8] sm:$0xff] %v3347
        %3777 = vst [vmem:[%s192 + $0x10] sm:$0xff] %v3353
        %3778 = vst [vmem:[%s192 + $0x18] sm:$0xff] %v3357
        %3779 = vst [vmem:[%s192 + $0x20] sm:$0xff] %v3363
        %3780 = vst [vmem:[%s192 + $0x28] sm:$0xff] %v3367
        %3781 = vst [vmem:[%s192 + $0x30] sm:$0xff] %v3373
        %3782 = vst [vmem:[%s192 + $0x38] sm:$0xff] %v3377
        %3783 = vst [vmem:[%s192 + $0x40] sm:$0xff] %v3383
        %3784 = vst [vmem:[%s192 + $0x48] sm:$0xff] %v3387
        %3785 = vst [vmem:[%s192 + $0x50] sm:$0xff] %v3393
        %3786 = vst [vmem:[%s192 + $0x58] sm:$0xff] %v3397
        %3787 = vst [vmem:[%s192 + $0x60] sm:$0xff] %v3403
        %3788 = vst [vmem:[%s192 + $0x68] sm:$0xff] %v3407
        %3789 = vst [vmem:[%s192 + $0x70] sm:$0xff] %v3413
        %3790 = vst [vmem:[%s192 + $0x78] sm:$0xff] %v3417
        %s3791 = scalar_lea.vmem %s192, 128 [#allocation5]
        %3792 = vst [vmem:[%s3791] sm:$0xff] %v3345
        %3793 = vst [vmem:[%s3791 + $0x8] sm:$0xff] %v3349
        %3794 = vst [vmem:[%s3791 + $0x10] sm:$0xff] %v3355
        %3795 = vst [vmem:[%s3791 + $0x18] sm:$0xff] %v3359
        %3796 = vst [vmem:[%s3791 + $0x20] sm:$0xff] %v3365
        %3797 = vst [vmem:[%s3791 + $0x28] sm:$0xff] %v3369
        %3798 = vst [vmem:[%s3791 + $0x30] sm:$0xff] %v3375
        %3799 = vst [vmem:[%s3791 + $0x38] sm:$0xff] %v3379
        %3800 = vst [vmem:[%s3791 + $0x40] sm:$0xff] %v3385
        %3801 = vst [vmem:[%s3791 + $0x48] sm:$0xff] %v3389
        %3802 = vst [vmem:[%s3791 + $0x50] sm:$0xff] %v3395
        %3803 = vst [vmem:[%s3791 + $0x58] sm:$0xff] %v3399
        %3804 = vst [vmem:[%s3791 + $0x60] sm:$0xff] %v3405
        %3805 = vst [vmem:[%s3791 + $0x68] sm:$0xff] %v3409
        %3806 = vst [vmem:[%s3791 + $0x70] sm:$0xff] %v3415
        %3807 = vst [vmem:[%s3791 + $0x78] sm:$0xff] %v3419
        %s3808 = sand.u32 %s95, 1
        %s3809 = scalar_lea.sflag [#allocation6], %s3808
        %s3810 = sand.u32 %s95, 1
        %s3811 = smul.addr %s3810, 256
        %s3812 = scalar_lea.vmem [#allocation5], %s3811
        %p3813 = scmp.lt.s32.totalorder %s19, 1
        %s3814 = scalar_select %p3813, %s19, 1
        %s3815 = smul.addr %s3814, 2
        %s3816 = scalar_lea.vmem %s4, %s3815
        // Predicated region
        $region33: #{inception_module_forward.2} parent=31 // pred_check
          %p3817 = pneg %p105
        $region34: #{inception_module_forward.2} parent=31 // pred_check_branch
          %3819 = sbr.rel (%p3817) target = $region36
        $region35: #{inception_module_forward.2} parent=31 // pred_region
          %s3820 = smul.u32 2, %s19
          %s3822 = ssub.s32 4096, 4096
          %3823 = vsyncadd %s3809, %s3822
          %s3824 = smul.addr %s3820, 16
          %s3825 = smul.addr %s3824, 128
          %s3826 = scalar_lea.hbm %s3, %s3825
          %s3827 = sshll.u32 %s3812, 4
          %s3828 = int_to_ptr.vmem [resolvable:$true] %s3827
          %3833 = dma.vmem_to_hbm [thread:$0]  %s3828, 4096, %s3826, %s3809, 128, 128, 8
        $region36: #{inception_module_forward.2} parent=31 // pred_fallthru
          _
        // Predicated region
        $region37: #{inception_module_forward.2} parent=31 // pred_check
          %p3834 = pneg %p131
        $region38: #{inception_module_forward.2} parent=31 // pred_check_branch
          %3836 = sbr.rel (%p3834) target = $region40
        $region39: #{inception_module_forward.2} parent=31 // pred_region
          _
        $region40: #{inception_module_forward.2} parent=31 // pred_fallthru
          _
      $region32: #{inception_module_forward.2} parent=5 // pred_fallthru
        _
      %p3837 = scmp.le.s32.totalorder 2, %s14
      // Predicated region
      $region41: #{inception_module_forward.2} parent=5 // pred_check
        %p3838 = pneg %p3837
      $region42: #{inception_module_forward.2} parent=5 // pred_check_branch
        %3840 = sbr.rel (%p3838) target = $region44
      $region43: #{inception_module_forward.2} parent=5 // pred_region
        %s3841 = ssub.s32 %s14, 2
        // Predicated region
        $region45: #{inception_module_forward.2} parent=43 // pred_check
          %p3842 = pneg %p111
        $region46: #{inception_module_forward.2} parent=43 // pred_check_branch
          %3844 = sbr.rel (%p3842) target = $region48
        $region47: #{inception_module_forward.2} parent=43 // pred_region
          %s3845 = sand.u32 %s96, 1
          %s3846 = scalar_lea.sflag [#allocation6], %s3845
          %s3847 = sand.u32 %s96, 1
          %s3848 = smul.addr %s3847, 256
          %s3849 = scalar_lea.vmem [#allocation5], %s3848
          %3850 = dma.done %s3846, 4096
        $region48: #{inception_module_forward.2} parent=43 // pred_fallthru
          _
        // Predicated region
        $region49: #{inception_module_forward.2} parent=43 // pred_check
          %p3851 = pneg %p137
        $region50: #{inception_module_forward.2} parent=43 // pred_check_branch
          %3853 = sbr.rel (%p3851) target = $region52
        $region51: #{inception_module_forward.2} parent=43 // pred_region
          %p3854 = scmp.lt.s32.totalorder %s20, 1
          %s3855 = scalar_select %p3854, %s20, 1
          %s3856 = smul.addr %s3855, 2
          %s3857 = scalar_lea.vmem %s4, %s3856
        $region52: #{inception_module_forward.2} parent=43 // pred_fallthru
          _
      $region44: #{inception_module_forward.2} parent=5 // pred_fallthru
        _
    $region6: #{inception_module_forward.2} parent=1 // loop_footer
      %s18 = sadd.s32 1, %s14
    $region7: #{inception_module_forward.2} parent=1 // loop_footer_branch
      %13 = sbr.rel target = $region3
    $region8: #{inception_module_forward.2} parent=1 // loop_exit
      _
    %3858 = vsyncpa [#allocation6], 1
    %s3859 = scalar_lea.sflag [#allocation6], 1
    %3860 = vsyncpa %s3859, 1

</llo_original>
